<compile_context>
chip_gen: v7x
topology: tpu7x:2x2x1
jax: 0.10.0
libtpu: 0.0.40
codegen_flags: <defaults>
</compile_context>

<pallas_src>
import functools
import numpy as np
import jax
import jax.numpy as jnp
from jax.experimental import pallas as pl
from jax.experimental.pallas import tpu as pltpu


# ----------------------------------------------------------------------------
# Fixed 2D sin-cos positional embedding (MAE-style, cls_token=False)
# ----------------------------------------------------------------------------
def get_2d_sincos_pos_embed(embed_dim, grid_size):
    def _1d(dim, pos):
        omega = np.arange(dim // 2, dtype=np.float64) / (dim / 2.0)
        omega = 1.0 / 10000.0 ** omega
        out = np.einsum("m,d->md", pos.reshape(-1).astype(np.float64), omega)
        return np.concatenate([np.sin(out), np.cos(out)], axis=1)

    grid_h = np.arange(grid_size, dtype=np.float32)
    grid_w = np.arange(grid_size, dtype=np.float32)
    grid = np.stack(np.meshgrid(grid_w, grid_h), axis=0)
    grid = grid.reshape([2, 1, grid_size, grid_size])
    emb_h = _1d(embed_dim // 2, grid[0])
    emb_w = _1d(embed_dim // 2, grid[1])
    return np.concatenate([emb_h, emb_w], axis=1).astype(np.float32)  # (grid^2, C)


# ----------------------------------------------------------------------------
# In-kernel helpers
# ----------------------------------------------------------------------------
def _layernorm(x, g, b, eps):
    mu = jnp.mean(x, axis=-1, keepdims=True)
    var = jnp.mean((x - mu) ** 2, axis=-1, keepdims=True)
    return (x - mu) * jax.lax.rsqrt(var + eps) * g + b


def _softmax(s):
    s = s - jnp.max(s, axis=-1, keepdims=True)
    e = jnp.exp(s)
    return e / jnp.sum(e, axis=-1, keepdims=True)


# ----------------------------------------------------------------------------
# Single fused kernel: pos-embed + concat, all Blocks, collapsed out_linears.
# Grid = (B,), one batch element per step (kept "parallel" so a >1 batch would
# shard across TensorCores on v7x).
# ----------------------------------------------------------------------------
def _fused_kernel(z_ref, x_ref, pu_ref, ps_ref,
                  ln1g_ref, ln1b_ref, wqkv_ref, bqkv_ref, wproj_ref, bproj_ref,
                  ln2g_ref, ln2b_ref, wfc1_ref, bfc1_ref, wfc2_ref, bfc2_ref,
                  wout_ref, bout_ref, out_ref, *,
                  num_heads, num_layers, n_t, n_s, eps):
    C = z_ref.shape[-1]
    N = n_t + n_s
    hd = C // num_heads

    # ---- token assembly: [template + pos_uav ; search + pos_sat]  (pos_drop = id) ----
    x = jnp.concatenate([z_ref[0] + pu_ref[0], x_ref[0] + ps_ref[0]], axis=0)   # (N, C)

    # ---- additive mask: template rows (< n_t) cannot attend to search cols (>= n_t) ----
    row = jax.lax.broadcasted_iota(jnp.int32, (N, N), 0)
    col = jax.lax.broadcasted_iota(jnp.int32, (N, N), 1)
    mask = jnp.where((row < n_t) & (col >= n_t),
                     jnp.float32(-1e30), jnp.float32(0.0))                       # (N, N)

    for l in range(num_layers):   # static unroll; all layer weights already in VMEM
        # ---- attention branch (single masked softmax, batched over heads) ----
        xn = _layernorm(x, ln1g_ref[l], ln1b_ref[l], eps)
        qkv = jnp.dot(xn, wqkv_ref[l], preferred_element_type=jnp.float32) + bqkv_ref[l]
        # Attention scale is pre-folded into the Q columns of w_qkv / b_qkv.
        q = jnp.stack([qkv[:, h * hd:(h + 1) * hd] for h in range(num_heads)], axis=0)
        k = jnp.stack([qkv[:, C + h * hd:C + (h + 1) * hd] for h in range(num_heads)], axis=0)
        v = jnp.stack([qkv[:, 2 * C + h * hd:2 * C + (h + 1) * hd] for h in range(num_heads)], axis=0)
        s = jnp.einsum("hnd,hmd->hnm", q, k, preferred_element_type=jnp.float32) + mask
        p = _softmax(s)                                                          # (H, N, N)
        o = jnp.einsum("hnm,hmd->hnd", p, v, preferred_element_type=jnp.float32)
        o = jnp.concatenate([o[h] for h in range(num_heads)], axis=1)            # (N, C)
        x = x + jnp.dot(o, wproj_ref[l], preferred_element_type=jnp.float32) + bproj_ref[l]

        # ---- MLP branch ----
        xn2 = _layernorm(x, ln2g_ref[l], ln2b_ref[l], eps)
        h1 = jnp.dot(xn2, wfc1_ref[l], preferred_element_type=jnp.float32) + bfc1_ref[l]
        h1 = 0.5 * h1 * (1.0 + jax.lax.erf(h1 * 0.7071067811865476))             # exact GELU
        x = x + jnp.dot(h1, wfc2_ref[l], preferred_element_type=jnp.float32) + bfc2_ref[l]

    # ---- collapsed out_linears on search tokens; lane-dense (1, n_s) output ----
    x_s = x[n_t:, :]                                                             # (n_s, C)
    out = jax.lax.dot_general(wout_ref[...], x_s, (((1,), (1,)), ((), ())),
                              preferred_element_type=jnp.float32)                # (1, n_s)
    out_ref[...] = out + bout_ref[...]


# ----------------------------------------------------------------------------
# pallas_call wrapper
# ----------------------------------------------------------------------------
_PACKED_KEYS = ("ln1_g", "ln1_b", "w_qkv", "b_qkv", "w_proj", "b_proj",
                "ln2_g", "ln2_b", "w_fc1", "b_fc1", "w_fc2", "b_fc2",
                "w_out", "b_out")


def attention_fusion_forward(z, x, packed, pos_uav, pos_sat,
                             grid_uav, grid_sat, num_heads, num_layers):
    """z: (B, C, Hu, Wu), x: (B, C, Hs, Ws) -> (B, 1, Hs, Ws)."""
    B, C = z.shape[0], z.shape[1]
    n_t, n_s = grid_uav * grid_uav, grid_sat * grid_sat

    # NCHW -> (B, N, C) tokens  (== torch .flatten(2).transpose(1, 2)); layout plumbing in XLA.
    z_tok = z.reshape(B, C, n_t).transpose(0, 2, 1)
    x_tok = x.reshape(B, C, n_s).transpose(0, 2, 1)

    kernel = functools.partial(_fused_kernel, num_heads=num_heads,
                               num_layers=num_layers, n_t=n_t, n_s=n_s, eps=1e-6)
    weights = [packed[k] for k in _PACKED_KEYS]

    def full_spec(a):
        nd = a.ndim
        return pl.BlockSpec(a.shape, lambda b, _nd=nd: (0,) * _nd)

    in_specs = ([pl.BlockSpec((1, n_t, C), lambda b: (b, 0, 0)),
                 pl.BlockSpec((1, n_s, C), lambda b: (b, 0, 0)),
                 full_spec(pos_uav), full_spec(pos_sat)]
                + [full_spec(a) for a in weights])

    out = pl.pallas_call(
        kernel,
        out_shape=jax.ShapeDtypeStruct((B, n_s), jnp.float32),
        grid=(B,),
        in_specs=in_specs,
        out_specs=pl.BlockSpec((1, n_s), lambda b: (b, 0)),
        compiler_params=pltpu.CompilerParams(dimension_semantics=("parallel",)),
    )(z_tok, x_tok, pos_uav, pos_sat, *weights)

    # (B, n_s) -> (B, 1, Hs, Ws)   (same ordering as torch transpose(1,2).reshape)
    return out.reshape(B, 1, grid_sat, grid_sat)


# ----------------------------------------------------------------------------
# Parameter construction (deterministic, synthetic — Linear weights stored (in, out))
# and packing into the fused-kernel layout.
# ----------------------------------------------------------------------------
def init_params(key, dim, mlp_hidden, mid_ndim, num_layers):
    def linear(k, fan_in, fan_out):
        w = 0.02 * jax.random.normal(k, (fan_in, fan_out), jnp.float32)
        b = jnp.zeros((1, fan_out), jnp.float32)
        return w, b

    blocks = []
    for _ in range(num_layers):
        key, k1, k2, k3, k4 = jax.random.split(key, 5)
        w_qkv, b_qkv = linear(k1, dim, 3 * dim)
        w_proj, b_proj = linear(k2, dim, dim)
        w_fc1, b_fc1 = linear(k3, dim, mlp_hidden)
        w_fc2, b_fc2 = linear(k4, mlp_hidden, dim)
        blocks.append(dict(
            ln1_g=jnp.ones((1, dim), jnp.float32), ln1_b=jnp.zeros((1, dim), jnp.float32),
            w_qkv=w_qkv, b_qkv=b_qkv, w_proj=w_proj, b_proj=b_proj,
            ln2_g=jnp.ones((1, dim), jnp.float32), ln2_b=jnp.zeros((1, dim), jnp.float32),
            w_fc1=w_fc1, b_fc1=b_fc1, w_fc2=w_fc2, b_fc2=b_fc2,
        ))

    out_linears = []
    last = dim
    for ch in mid_ndim:
        key, k = jax.random.split(key)
        out_linears.append(linear(k, last, ch))
        last = ch
    return blocks, out_linears


def pack_params(blocks, out_linears, num_heads):
    """Stack per-layer params, fold the attention scale into Q, collapse out_linears."""
    dim = blocks[0]["w_qkv"].shape[0]
    scale = float(dim // num_heads) ** -0.5

    def stack(k):
        return jnp.stack([b[k] for b in blocks], axis=0)

    w_qkv = stack("w_qkv")                               # (L, C, 3C)
    b_qkv = stack("b_qkv")                               # (L, 1, 3C)
    w_qkv = w_qkv.at[:, :, :dim].multiply(scale)         # fold head_dim**-0.5 into Q
    b_qkv = b_qkv.at[:, :, :dim].multiply(scale)

    packed = dict(
        ln1_g=stack("ln1_g"), ln1_b=stack("ln1_b"),
        w_qkv=w_qkv, b_qkv=b_qkv,
        w_proj=stack("w_proj"), b_proj=stack("b_proj"),
        ln2_g=stack("ln2_g"), ln2_b=stack("ln2_b"),
        w_fc1=stack("w_fc1"), b_fc1=stack("b_fc1"),
        w_fc2=stack("w_fc2"), b_fc2=stack("b_fc2"),
    )

    # out_linears are purely linear (no activation) -> one (C -> 1) affine map.
    w, b = out_linears[0]
    for (wi, bi) in out_linears[1:]:
        b = b @ wi + bi
        w = w @ wi
    packed["w_out"] = w.T                                # (1, C) row form (lane-dense epilogue)
    packed["b_out"] = b                                  # (1, 1)
    return packed


# ----------------------------------------------------------------------------
# Pure-JAX reference (original unpacked params, chained out_linears) — correctness only
# ----------------------------------------------------------------------------
def _ref_block(x, p, num_heads, n_t, eps=1e-6):
    def ln(v, g, b):
        mu = v.mean(-1, keepdims=True)
        var = ((v - mu) ** 2).mean(-1, keepdims=True)
        return (v - mu) / jnp.sqrt(var + eps) * g + b

    B, N, C = x.shape
    hd = C // num_heads
    xn = ln(x, p["ln1_g"][0], p["ln1_b"][0])
    qkv = xn @ p["w_qkv"] + p["b_qkv"][0]
    qkv = qkv.reshape(B, N, 3, num_heads, hd).transpose(2, 0, 3, 1, 4)
    q, k, v = qkv[0], qkv[1], qkv[2]
    scale = hd ** -0.5
    q_mt, q_s = q[:, :, :n_t], q[:, :, n_t:]
    k_mt, v_mt = k[:, :, :n_t], v[:, :, :n_t]
    a_mt = jax.nn.softmax(q_mt @ jnp.swapaxes(k_mt, -2, -1) * scale, axis=-1)
    x_mt = (a_mt @ v_mt).transpose(0, 2, 1, 3).reshape(B, n_t, C)
    a_s = jax.nn.softmax(q_s @ jnp.swapaxes(k, -2, -1) * scale, axis=-1)
    x_s = (a_s @ v).transpose(0, 2, 1, 3).reshape(B, N - n_t, C)
    attn = jnp.concatenate([x_mt, x_s], axis=1) @ p["w_proj"] + p["b_proj"][0]
    x = x + attn
    xn2 = ln(x, p["ln2_g"][0], p["ln2_b"][0])
    h1 = xn2 @ p["w_fc1"] + p["b_fc1"][0]
    h1 = jax.nn.gelu(h1, approximate=False)
    return x + h1 @ p["w_fc2"] + p["b_fc2"][0]


def _ref_forward(z, x, blocks, out_linears, pos_uav, pos_sat, g_uav, g_sat, nh):
    B, C = z.shape[0], z.shape[1]
    n_t, n_s = g_uav * g_uav, g_sat * g_sat
    z_tok = z.reshape(B, C, n_t).transpose(0, 2, 1)
    x_tok = x.reshape(B, C, n_s).transpose(0, 2, 1)
    t = jnp.concatenate([z_tok + pos_uav, x_tok + pos_sat], axis=1)
    for p in blocks:
        t = _ref_block(t, p, nh, n_t)
    s = t[:, n_t:, :]
    for (w, b) in out_linears:
        s = s @ w + b[0]
    return s.transpose(0, 2, 1).reshape(B, 1, g_sat, g_sat)


# ----------------------------------------------------------------------------
if __name__ == "__main__":
    # Small config (input_ndim divisible by 8 heads; final mid channel = 1 so the
    # module's trailing reshape to (B, 1, Hs, Ws) is valid, exactly as in torch).
    img_size_uav, img_size_satellite, patch_size = 32, 64, 16
    input_ndim, num_heads, mlp_ratio = 32, 8, 4
    attention_layer_num = 2
    mid_ndim = [32, 16, 1]
    B = 1  # forward_single hard-codes B = 1

    grid_uav = img_size_uav // patch_size            # 2
    grid_sat = img_size_satellite // patch_size      # 4

    pos_uav = jnp.asarray(get_2d_sincos_pos_embed(input_ndim, grid_uav))[None]   # (1, 4, 32)
    pos_sat = jnp.asarray(get_2d_sincos_pos_embed(input_ndim, grid_sat))[None]   # (1, 16, 32)

    key = jax.random.PRNGKey(0)
    key, kz, kx, kp = jax.random.split(key, 4)
    z = jax.random.normal(kz, (B, input_ndim, grid_uav, grid_uav), jnp.float32)
    x = jax.random.normal(kx, (B, input_ndim, grid_sat, grid_sat), jnp.float32)

    blocks, out_linears = init_params(kp, input_ndim, input_ndim * mlp_ratio,
                                      mid_ndim, attention_layer_num)
    packed = pack_params(blocks, out_linears, num_heads)

    out = attention_fusion_forward(z, x, packed, pos_uav, pos_sat,
                                   grid_uav, grid_sat, num_heads, attention_layer_num)
    out = jax.block_until_ready(out)
    assert out.shape == (B, 1, grid_sat, grid_sat)

    ref = _ref_forward(z, x, blocks, out_linears, pos_uav, pos_sat,
                       grid_uav, grid_sat, num_heads)
    np.testing.assert_allclose(np.asarray(out), np.asarray(ref), rtol=1e-3, atol=1e-3)

    print("KERNEL_OK")
</pallas_src>

<mosaic_0001>
module attributes {stable_mosaic.version = 11 : i64} {
  func.func @_fused_kernel(%arg0: i32, %arg1: memref<1x4x32xf32, #tpu.memory_space<vmem>>, %arg2: memref<1x16x32xf32, #tpu.memory_space<vmem>>, %arg3: memref<1x4x32xf32, #tpu.memory_space<vmem>>, %arg4: memref<1x16x32xf32, #tpu.memory_space<vmem>>, %arg5: memref<2x1x32xf32, #tpu.memory_space<vmem>>, %arg6: memref<2x1x32xf32, #tpu.memory_space<vmem>>, %arg7: memref<2x32x96xf32, #tpu.memory_space<vmem>>, %arg8: memref<2x1x96xf32, #tpu.memory_space<vmem>>, %arg9: memref<2x32x32xf32, #tpu.memory_space<vmem>>, %arg10: memref<2x1x32xf32, #tpu.memory_space<vmem>>, %arg11: memref<2x1x32xf32, #tpu.memory_space<vmem>>, %arg12: memref<2x1x32xf32, #tpu.memory_space<vmem>>, %arg13: memref<2x32x128xf32, #tpu.memory_space<vmem>>, %arg14: memref<2x1x128xf32, #tpu.memory_space<vmem>>, %arg15: memref<2x128x32xf32, #tpu.memory_space<vmem>>, %arg16: memref<2x1x32xf32, #tpu.memory_space<vmem>>, %arg17: memref<1x32xf32, #tpu.memory_space<vmem>>, %arg18: memref<1x1xf32, #tpu.memory_space<vmem>>, %arg19: memref<1x16xf32, #tpu.memory_space<vmem>>) attributes {dimension_semantics = [#tpu.dimension_semantics<parallel>], iteration_bounds = array<i64: 1>, scalar_prefetch = 0 : i64, scratch_operands = 0 : i64, tpu.core_type = #tpu.core_type<tc>, window_params = [{transform_indices = @transform_0, window_bounds = array<i64: 1, 4, 32>}, {transform_indices = @transform_1, window_bounds = array<i64: 1, 16, 32>}, {pipeline_mode = #tpu.pipeline_mode<synchronous>, transform_indices = @transform_2, window_bounds = array<i64: 1, 4, 32>}, {pipeline_mode = #tpu.pipeline_mode<synchronous>, transform_indices = @transform_3, window_bounds = array<i64: 1, 16, 32>}, {pipeline_mode = #tpu.pipeline_mode<synchronous>, transform_indices = @transform_4, window_bounds = array<i64: 2, 1, 32>}, {pipeline_mode = #tpu.pipeline_mode<synchronous>, transform_indices = @transform_5, window_bounds = array<i64: 2, 1, 32>}, {pipeline_mode = #tpu.pipeline_mode<synchronous>, transform_indices = @transform_6, window_bounds = array<i64: 2, 32, 96>}, {pipeline_mode = #tpu.pipeline_mode<synchronous>, transform_indices = @transform_7, window_bounds = array<i64: 2, 1, 96>}, {pipeline_mode = #tpu.pipeline_mode<synchronous>, transform_indices = @transform_8, window_bounds = array<i64: 2, 32, 32>}, {pipeline_mode = #tpu.pipeline_mode<synchronous>, transform_indices = @transform_9, window_bounds = array<i64: 2, 1, 32>}, {pipeline_mode = #tpu.pipeline_mode<synchronous>, transform_indices = @transform_10, window_bounds = array<i64: 2, 1, 32>}, {pipeline_mode = #tpu.pipeline_mode<synchronous>, transform_indices = @transform_11, window_bounds = array<i64: 2, 1, 32>}, {pipeline_mode = #tpu.pipeline_mode<synchronous>, transform_indices = @transform_12, window_bounds = array<i64: 2, 32, 128>}, {pipeline_mode = #tpu.pipeline_mode<synchronous>, transform_indices = @transform_13, window_bounds = array<i64: 2, 1, 128>}, {pipeline_mode = #tpu.pipeline_mode<synchronous>, transform_indices = @transform_14, window_bounds = array<i64: 2, 128, 32>}, {pipeline_mode = #tpu.pipeline_mode<synchronous>, transform_indices = @transform_15, window_bounds = array<i64: 2, 1, 32>}, {pipeline_mode = #tpu.pipeline_mode<synchronous>, transform_indices = @transform_16, window_bounds = array<i64: 1, 32>}, {pipeline_mode = #tpu.pipeline_mode<synchronous>, transform_indices = @transform_17, window_bounds = array<i64: 1, 1>}, {transform_indices = @transform_18, window_bounds = array<i64: 1, 16>}]} {
    %c0 = arith.constant 0 : index
    %c0_0 = arith.constant 0 : index
    %c0_1 = arith.constant 0 : index
    %0 = vector.load %arg1[%c0, %c0_0, %c0_1] : memref<1x4x32xf32, #tpu.memory_space<vmem>>, vector<1x4x32xf32>
    %1 = vector.shape_cast %0 : vector<1x4x32xf32> to vector<4x32xf32>
    %c0_2 = arith.constant 0 : index
    %c0_3 = arith.constant 0 : index
    %c0_4 = arith.constant 0 : index
    %2 = vector.load %arg3[%c0_2, %c0_3, %c0_4] : memref<1x4x32xf32, #tpu.memory_space<vmem>>, vector<1x4x32xf32>
    %3 = vector.shape_cast %2 : vector<1x4x32xf32> to vector<4x32xf32>
    %4 = arith.addf %1, %3 : vector<4x32xf32>
    %c0_5 = arith.constant 0 : index
    %c0_6 = arith.constant 0 : index
    %c0_7 = arith.constant 0 : index
    %5 = vector.load %arg2[%c0_5, %c0_6, %c0_7] : memref<1x16x32xf32, #tpu.memory_space<vmem>>, vector<1x16x32xf32>
    %6 = vector.shape_cast %5 : vector<1x16x32xf32> to vector<16x32xf32>
    %c0_8 = arith.constant 0 : index
    %c0_9 = arith.constant 0 : index
    %c0_10 = arith.constant 0 : index
    %7 = vector.load %arg4[%c0_8, %c0_9, %c0_10] : memref<1x16x32xf32, #tpu.memory_space<vmem>>, vector<1x16x32xf32>
    %8 = vector.shape_cast %7 : vector<1x16x32xf32> to vector<16x32xf32>
    %9 = arith.addf %6, %8 : vector<16x32xf32>
    %10 = tpu.concatenate %4, %9 in 0 : vector<4x32xf32>, vector<16x32xf32> -> vector<20x32xf32>
    %11 = tpu.iota {dimensions = array<i32: 0>} : vector<20x20xi32>
    %12 = tpu.iota {dimensions = array<i32: 1>} : vector<20x20xi32>
    %c4_i32 = arith.constant 4 : i32
    %13 = vector.broadcast %c4_i32 : i32 to vector<20x20xi32>
    %14 = arith.cmpi slt, %11, %13 : vector<20x20xi32>
    %c4_i32_11 = arith.constant 4 : i32
    %15 = vector.broadcast %c4_i32_11 : i32 to vector<20x20xi32>
    %16 = arith.cmpi sge, %12, %15 : vector<20x20xi32>
    %17 = arith.andi %14, %16 : vector<20x20xi1>
    %cst = arith.constant -1.000000e+30 : f32
    %cst_12 = arith.constant 0.000000e+00 : f32
    %18 = vector.broadcast %cst : f32 to vector<20x20xf32>
    %19 = vector.broadcast %cst_12 : f32 to vector<20x20xf32>
    %20 = arith.select %17, %18, %19 : vector<20x20xi1>, vector<20x20xf32>
    %c0_13 = arith.constant 0 : index
    %c0_14 = arith.constant 0 : index
    %c0_15 = arith.constant 0 : index
    %21 = vector.load %arg5[%c0_13, %c0_14, %c0_15] : memref<2x1x32xf32, #tpu.memory_space<vmem>>, vector<1x1x32xf32>
    %22 = vector.shape_cast %21 : vector<1x1x32xf32> to vector<1x32xf32>
    %c0_16 = arith.constant 0 : index
    %c0_17 = arith.constant 0 : index
    %c0_18 = arith.constant 0 : index
    %23 = vector.load %arg6[%c0_16, %c0_17, %c0_18] : memref<2x1x32xf32, #tpu.memory_space<vmem>>, vector<1x1x32xf32>
    %24 = vector.shape_cast %23 : vector<1x1x32xf32> to vector<1x32xf32>
    %cst_19 = arith.constant dense<0.000000e+00> : vector<20xf32>
    %25 = vector.multi_reduction <add>, %10, %cst_19 [1] : vector<20x32xf32> to vector<20xf32>
    %26 = vector.shape_cast %25 : vector<20xf32> to vector<20x1xf32>
    %cst_20 = arith.constant 3.200000e+01 : f32
    %27 = vector.broadcast %cst_20 : f32 to vector<20x1xf32>
    %28 = arith.divf %26, %27 : vector<20x1xf32>
    %29 = vector.broadcast %28 : vector<20x1xf32> to vector<20x32xf32>
    %30 = arith.subf %10, %29 : vector<20x32xf32>
    %31 = arith.mulf %30, %30 : vector<20x32xf32>
    %cst_21 = arith.constant dense<0.000000e+00> : vector<20xf32>
    %32 = vector.multi_reduction <add>, %31, %cst_21 [1] : vector<20x32xf32> to vector<20xf32>
    %33 = vector.shape_cast %32 : vector<20xf32> to vector<20x1xf32>
    %cst_22 = arith.constant 3.200000e+01 : f32
    %34 = vector.broadcast %cst_22 : f32 to vector<20x1xf32>
    %35 = arith.divf %33, %34 : vector<20x1xf32>
    %36 = vector.broadcast %28 : vector<20x1xf32> to vector<20x32xf32>
    %37 = arith.subf %10, %36 : vector<20x32xf32>
    %cst_23 = arith.constant 9.99999997E-7 : f32
    %38 = vector.broadcast %cst_23 : f32 to vector<20x1xf32>
    %39 = arith.addf %35, %38 : vector<20x1xf32>
    %40 = math.rsqrt %39 : vector<20x1xf32>
    %41 = vector.broadcast %40 : vector<20x1xf32> to vector<20x32xf32>
    %42 = arith.mulf %37, %41 : vector<20x32xf32>
    %43 = vector.broadcast %22 : vector<1x32xf32> to vector<20x32xf32>
    %44 = arith.mulf %42, %43 : vector<20x32xf32>
    %45 = vector.broadcast %24 : vector<1x32xf32> to vector<20x32xf32>
    %46 = arith.addf %44, %45 : vector<20x32xf32>
    %c0_24 = arith.constant 0 : index
    %c0_25 = arith.constant 0 : index
    %c0_26 = arith.constant 0 : index
    %47 = vector.load %arg7[%c0_24, %c0_25, %c0_26] : memref<2x32x96xf32, #tpu.memory_space<vmem>>, vector<1x32x96xf32>
    %48 = vector.shape_cast %47 : vector<1x32x96xf32> to vector<32x96xf32>
    %cst_27 = arith.constant dense<0.000000e+00> : vector<20x96xf32>
    %49 = tpu.matmul %46, %48, %cst_27 {dimension_numbers = #tpu.dot_dimension_numbers<[1], [0], [0], [1], [0, 0, 1, 1], [], []>} : vector<20x32xf32>, vector<32x96xf32>, vector<20x96xf32> -> vector<20x96xf32>
    %c0_28 = arith.constant 0 : index
    %c0_29 = arith.constant 0 : index
    %c0_30 = arith.constant 0 : index
    %50 = vector.load %arg8[%c0_28, %c0_29, %c0_30] : memref<2x1x96xf32, #tpu.memory_space<vmem>>, vector<1x1x96xf32>
    %51 = vector.shape_cast %50 : vector<1x1x96xf32> to vector<1x96xf32>
    %52 = vector.broadcast %51 : vector<1x96xf32> to vector<20x96xf32>
    %53 = arith.addf %49, %52 : vector<20x96xf32>
    %54 = vector.extract_strided_slice %53 {offsets = [0, 0], sizes = [20, 4], strides = [1, 1]} : vector<20x96xf32> to vector<20x4xf32>
    %55 = vector.extract_strided_slice %53 {offsets = [0, 4], sizes = [20, 4], strides = [1, 1]} : vector<20x96xf32> to vector<20x4xf32>
    %56 = vector.extract_strided_slice %53 {offsets = [0, 8], sizes = [20, 4], strides = [1, 1]} : vector<20x96xf32> to vector<20x4xf32>
    %57 = vector.extract_strided_slice %53 {offsets = [0, 12], sizes = [20, 4], strides = [1, 1]} : vector<20x96xf32> to vector<20x4xf32>
    %58 = vector.extract_strided_slice %53 {offsets = [0, 16], sizes = [20, 4], strides = [1, 1]} : vector<20x96xf32> to vector<20x4xf32>
    %59 = vector.extract_strided_slice %53 {offsets = [0, 20], sizes = [20, 4], strides = [1, 1]} : vector<20x96xf32> to vector<20x4xf32>
    %60 = vector.extract_strided_slice %53 {offsets = [0, 24], sizes = [20, 4], strides = [1, 1]} : vector<20x96xf32> to vector<20x4xf32>
    %61 = vector.extract_strided_slice %53 {offsets = [0, 28], sizes = [20, 4], strides = [1, 1]} : vector<20x96xf32> to vector<20x4xf32>
    %62 = vector.shape_cast %54 : vector<20x4xf32> to vector<1x20x4xf32>
    %63 = vector.shape_cast %55 : vector<20x4xf32> to vector<1x20x4xf32>
    %64 = vector.shape_cast %56 : vector<20x4xf32> to vector<1x20x4xf32>
    %65 = vector.shape_cast %57 : vector<20x4xf32> to vector<1x20x4xf32>
    %66 = vector.shape_cast %58 : vector<20x4xf32> to vector<1x20x4xf32>
    %67 = vector.shape_cast %59 : vector<20x4xf32> to vector<1x20x4xf32>
    %68 = vector.shape_cast %60 : vector<20x4xf32> to vector<1x20x4xf32>
    %69 = vector.shape_cast %61 : vector<20x4xf32> to vector<1x20x4xf32>
    %70 = tpu.concatenate %62, %63, %64, %65, %66, %67, %68, %69 in 0 : vector<1x20x4xf32>, vector<1x20x4xf32>, vector<1x20x4xf32>, vector<1x20x4xf32>, vector<1x20x4xf32>, vector<1x20x4xf32>, vector<1x20x4xf32>, vector<1x20x4xf32> -> vector<8x20x4xf32>
    %71 = vector.extract_strided_slice %53 {offsets = [0, 32], sizes = [20, 4], strides = [1, 1]} : vector<20x96xf32> to vector<20x4xf32>
    %72 = vector.extract_strided_slice %53 {offsets = [0, 36], sizes = [20, 4], strides = [1, 1]} : vector<20x96xf32> to vector<20x4xf32>
    %73 = vector.extract_strided_slice %53 {offsets = [0, 40], sizes = [20, 4], strides = [1, 1]} : vector<20x96xf32> to vector<20x4xf32>
    %74 = vector.extract_strided_slice %53 {offsets = [0, 44], sizes = [20, 4], strides = [1, 1]} : vector<20x96xf32> to vector<20x4xf32>
    %75 = vector.extract_strided_slice %53 {offsets = [0, 48], sizes = [20, 4], strides = [1, 1]} : vector<20x96xf32> to vector<20x4xf32>
    %76 = vector.extract_strided_slice %53 {offsets = [0, 52], sizes = [20, 4], strides = [1, 1]} : vector<20x96xf32> to vector<20x4xf32>
    %77 = vector.extract_strided_slice %53 {offsets = [0, 56], sizes = [20, 4], strides = [1, 1]} : vector<20x96xf32> to vector<20x4xf32>
    %78 = vector.extract_strided_slice %53 {offsets = [0, 60], sizes = [20, 4], strides = [1, 1]} : vector<20x96xf32> to vector<20x4xf32>
    %79 = vector.shape_cast %71 : vector<20x4xf32> to vector<1x20x4xf32>
    %80 = vector.shape_cast %72 : vector<20x4xf32> to vector<1x20x4xf32>
    %81 = vector.shape_cast %73 : vector<20x4xf32> to vector<1x20x4xf32>
    %82 = vector.shape_cast %74 : vector<20x4xf32> to vector<1x20x4xf32>
    %83 = vector.shape_cast %75 : vector<20x4xf32> to vector<1x20x4xf32>
    %84 = vector.shape_cast %76 : vector<20x4xf32> to vector<1x20x4xf32>
    %85 = vector.shape_cast %77 : vector<20x4xf32> to vector<1x20x4xf32>
    %86 = vector.shape_cast %78 : vector<20x4xf32> to vector<1x20x4xf32>
    %87 = tpu.concatenate %79, %80, %81, %82, %83, %84, %85, %86 in 0 : vector<1x20x4xf32>, vector<1x20x4xf32>, vector<1x20x4xf32>, vector<1x20x4xf32>, vector<1x20x4xf32>, vector<1x20x4xf32>, vector<1x20x4xf32>, vector<1x20x4xf32> -> vector<8x20x4xf32>
    %88 = vector.extract_strided_slice %53 {offsets = [0, 64], sizes = [20, 4], strides = [1, 1]} : vector<20x96xf32> to vector<20x4xf32>
    %89 = vector.extract_strided_slice %53 {offsets = [0, 68], sizes = [20, 4], strides = [1, 1]} : vector<20x96xf32> to vector<20x4xf32>
    %90 = vector.extract_strided_slice %53 {offsets = [0, 72], sizes = [20, 4], strides = [1, 1]} : vector<20x96xf32> to vector<20x4xf32>
    %91 = vector.extract_strided_slice %53 {offsets = [0, 76], sizes = [20, 4], strides = [1, 1]} : vector<20x96xf32> to vector<20x4xf32>
    %92 = vector.extract_strided_slice %53 {offsets = [0, 80], sizes = [20, 4], strides = [1, 1]} : vector<20x96xf32> to vector<20x4xf32>
    %93 = vector.extract_strided_slice %53 {offsets = [0, 84], sizes = [20, 4], strides = [1, 1]} : vector<20x96xf32> to vector<20x4xf32>
    %94 = vector.extract_strided_slice %53 {offsets = [0, 88], sizes = [20, 4], strides = [1, 1]} : vector<20x96xf32> to vector<20x4xf32>
    %95 = vector.extract_strided_slice %53 {offsets = [0, 92], sizes = [20, 4], strides = [1, 1]} : vector<20x96xf32> to vector<20x4xf32>
    %96 = vector.shape_cast %88 : vector<20x4xf32> to vector<1x20x4xf32>
    %97 = vector.shape_cast %89 : vector<20x4xf32> to vector<1x20x4xf32>
    %98 = vector.shape_cast %90 : vector<20x4xf32> to vector<1x20x4xf32>
    %99 = vector.shape_cast %91 : vector<20x4xf32> to vector<1x20x4xf32>
    %100 = vector.shape_cast %92 : vector<20x4xf32> to vector<1x20x4xf32>
    %101 = vector.shape_cast %93 : vector<20x4xf32> to vector<1x20x4xf32>
    %102 = vector.shape_cast %94 : vector<20x4xf32> to vector<1x20x4xf32>
    %103 = vector.shape_cast %95 : vector<20x4xf32> to vector<1x20x4xf32>
    %104 = tpu.concatenate %96, %97, %98, %99, %100, %101, %102, %103 in 0 : vector<1x20x4xf32>, vector<1x20x4xf32>, vector<1x20x4xf32>, vector<1x20x4xf32>, vector<1x20x4xf32>, vector<1x20x4xf32>, vector<1x20x4xf32>, vector<1x20x4xf32> -> vector<8x20x4xf32>
    "tpu.trace_start"() <{level = 10 : i32, message = "hnd,hmd->hnm"}> : () -> ()
    %cst_31 = arith.constant dense<0.000000e+00> : vector<8x20x20xf32>
    %105 = tpu.matmul %70, %87, %cst_31 {dimension_numbers = #tpu.dot_dimension_numbers<[2], [2], [1], [1], [0, 0, 0, 1, 1, 1], [0], [0]>} : vector<8x20x4xf32>, vector<8x20x4xf32>, vector<8x20x20xf32> -> vector<8x20x20xf32>
    "tpu.trace_stop"() : () -> ()
    %106 = vector.shape_cast %20 : vector<20x20xf32> to vector<1x20x20xf32>
    %107 = vector.broadcast %106 : vector<1x20x20xf32> to vector<8x20x20xf32>
    %108 = arith.addf %105, %107 : vector<8x20x20xf32>
    %cst_32 = arith.constant dense<0xFF800000> : vector<8x20xf32>
    %109 = vector.multi_reduction <maximumf>, %108, %cst_32 [2] : vector<8x20x20xf32> to vector<8x20xf32>
    %110 = vector.shape_cast %109 : vector<8x20xf32> to vector<8x20x1xf32>
    %111 = vector.broadcast %110 : vector<8x20x1xf32> to vector<8x20x20xf32>
    %112 = arith.subf %108, %111 : vector<8x20x20xf32>
    %113 = math.exp %112 : vector<8x20x20xf32>
    %cst_33 = arith.constant dense<0.000000e+00> : vector<8x20xf32>
    %114 = vector.multi_reduction <add>, %113, %cst_33 [2] : vector<8x20x20xf32> to vector<8x20xf32>
    %115 = vector.shape_cast %114 : vector<8x20xf32> to vector<8x20x1xf32>
    %116 = vector.broadcast %115 : vector<8x20x1xf32> to vector<8x20x20xf32>
    %117 = arith.divf %113, %116 : vector<8x20x20xf32>
    "tpu.trace_start"() <{level = 10 : i32, message = "hnm,hmd->hnd"}> : () -> ()
    %cst_34 = arith.constant dense<0.000000e+00> : vector<8x20x4xf32>
    %118 = tpu.matmul %117, %104, %cst_34 {dimension_numbers = #tpu.dot_dimension_numbers<[2], [1], [1], [2], [0, 0, 0, 1, 1, 2], [0], [0]>} : vector<8x20x20xf32>, vector<8x20x4xf32>, vector<8x20x4xf32> -> vector<8x20x4xf32>
    "tpu.trace_stop"() : () -> ()
    %119 = vector.extract_strided_slice %118 {offsets = [0, 0, 0], sizes = [1, 20, 4], strides = [1, 1, 1]} : vector<8x20x4xf32> to vector<1x20x4xf32>
    %120 = vector.shape_cast %119 : vector<1x20x4xf32> to vector<20x4xf32>
    %121 = vector.extract_strided_slice %118 {offsets = [1, 0, 0], sizes = [1, 20, 4], strides = [1, 1, 1]} : vector<8x20x4xf32> to vector<1x20x4xf32>
    %122 = vector.shape_cast %121 : vector<1x20x4xf32> to vector<20x4xf32>
    %123 = vector.extract_strided_slice %118 {offsets = [2, 0, 0], sizes = [1, 20, 4], strides = [1, 1, 1]} : vector<8x20x4xf32> to vector<1x20x4xf32>
    %124 = vector.shape_cast %123 : vector<1x20x4xf32> to vector<20x4xf32>
    %125 = vector.extract_strided_slice %118 {offsets = [3, 0, 0], sizes = [1, 20, 4], strides = [1, 1, 1]} : vector<8x20x4xf32> to vector<1x20x4xf32>
    %126 = vector.shape_cast %125 : vector<1x20x4xf32> to vector<20x4xf32>
    %127 = vector.extract_strided_slice %118 {offsets = [4, 0, 0], sizes = [1, 20, 4], strides = [1, 1, 1]} : vector<8x20x4xf32> to vector<1x20x4xf32>
    %128 = vector.shape_cast %127 : vector<1x20x4xf32> to vector<20x4xf32>
    %129 = vector.extract_strided_slice %118 {offsets = [5, 0, 0], sizes = [1, 20, 4], strides = [1, 1, 1]} : vector<8x20x4xf32> to vector<1x20x4xf32>
    %130 = vector.shape_cast %129 : vector<1x20x4xf32> to vector<20x4xf32>
    %131 = vector.extract_strided_slice %118 {offsets = [6, 0, 0], sizes = [1, 20, 4], strides = [1, 1, 1]} : vector<8x20x4xf32> to vector<1x20x4xf32>
    %132 = vector.shape_cast %131 : vector<1x20x4xf32> to vector<20x4xf32>
    %133 = vector.extract_strided_slice %118 {offsets = [7, 0, 0], sizes = [1, 20, 4], strides = [1, 1, 1]} : vector<8x20x4xf32> to vector<1x20x4xf32>
    %134 = vector.shape_cast %133 : vector<1x20x4xf32> to vector<20x4xf32>
    %135 = tpu.concatenate %120, %122, %124, %126, %128, %130, %132, %134 in 1 : vector<20x4xf32>, vector<20x4xf32>, vector<20x4xf32>, vector<20x4xf32>, vector<20x4xf32>, vector<20x4xf32>, vector<20x4xf32>, vector<20x4xf32> -> vector<20x32xf32>
    %c0_35 = arith.constant 0 : index
    %c0_36 = arith.constant 0 : index
    %c0_37 = arith.constant 0 : index
    %136 = vector.load %arg9[%c0_35, %c0_36, %c0_37] : memref<2x32x32xf32, #tpu.memory_space<vmem>>, vector<1x32x32xf32>
    %137 = vector.shape_cast %136 : vector<1x32x32xf32> to vector<32x32xf32>
    %cst_38 = arith.constant dense<0.000000e+00> : vector<20x32xf32>
    %138 = tpu.matmul %135, %137, %cst_38 {dimension_numbers = #tpu.dot_dimension_numbers<[1], [0], [0], [1], [0, 0, 1, 1], [], []>} : vector<20x32xf32>, vector<32x32xf32>, vector<20x32xf32> -> vector<20x32xf32>
    %139 = arith.addf %10, %138 : vector<20x32xf32>
    %c0_39 = arith.constant 0 : index
    %c0_40 = arith.constant 0 : index
    %c0_41 = arith.constant 0 : index
    %140 = vector.load %arg10[%c0_39, %c0_40, %c0_41] : memref<2x1x32xf32, #tpu.memory_space<vmem>>, vector<1x1x32xf32>
    %141 = vector.shape_cast %140 : vector<1x1x32xf32> to vector<1x32xf32>
    %142 = vector.broadcast %141 : vector<1x32xf32> to vector<20x32xf32>
    %143 = arith.addf %139, %142 : vector<20x32xf32>
    %c0_42 = arith.constant 0 : index
    %c0_43 = arith.constant 0 : index
    %c0_44 = arith.constant 0 : index
    %144 = vector.load %arg11[%c0_42, %c0_43, %c0_44] : memref<2x1x32xf32, #tpu.memory_space<vmem>>, vector<1x1x32xf32>
    %145 = vector.shape_cast %144 : vector<1x1x32xf32> to vector<1x32xf32>
    %c0_45 = arith.constant 0 : index
    %c0_46 = arith.constant 0 : index
    %c0_47 = arith.constant 0 : index
    %146 = vector.load %arg12[%c0_45, %c0_46, %c0_47] : memref<2x1x32xf32, #tpu.memory_space<vmem>>, vector<1x1x32xf32>
    %147 = vector.shape_cast %146 : vector<1x1x32xf32> to vector<1x32xf32>
    %cst_48 = arith.constant dense<0.000000e+00> : vector<20xf32>
    %148 = vector.multi_reduction <add>, %143, %cst_48 [1] : vector<20x32xf32> to vector<20xf32>
    %149 = vector.shape_cast %148 : vector<20xf32> to vector<20x1xf32>
    %cst_49 = arith.constant 3.200000e+01 : f32
    %150 = vector.broadcast %cst_49 : f32 to vector<20x1xf32>
    %151 = arith.divf %149, %150 : vector<20x1xf32>
    %152 = vector.broadcast %151 : vector<20x1xf32> to vector<20x32xf32>
    %153 = arith.subf %143, %152 : vector<20x32xf32>
    %154 = arith.mulf %153, %153 : vector<20x32xf32>
    %cst_50 = arith.constant dense<0.000000e+00> : vector<20xf32>
    %155 = vector.multi_reduction <add>, %154, %cst_50 [1] : vector<20x32xf32> to vector<20xf32>
    %156 = vector.shape_cast %155 : vector<20xf32> to vector<20x1xf32>
    %cst_51 = arith.constant 3.200000e+01 : f32
    %157 = vector.broadcast %cst_51 : f32 to vector<20x1xf32>
    %158 = arith.divf %156, %157 : vector<20x1xf32>
    %159 = vector.broadcast %151 : vector<20x1xf32> to vector<20x32xf32>
    %160 = arith.subf %143, %159 : vector<20x32xf32>
    %cst_52 = arith.constant 9.99999997E-7 : f32
    %161 = vector.broadcast %cst_52 : f32 to vector<20x1xf32>
    %162 = arith.addf %158, %161 : vector<20x1xf32>
    %163 = math.rsqrt %162 : vector<20x1xf32>
    %164 = vector.broadcast %163 : vector<20x1xf32> to vector<20x32xf32>
    %165 = arith.mulf %160, %164 : vector<20x32xf32>
    %166 = vector.broadcast %145 : vector<1x32xf32> to vector<20x32xf32>
    %167 = arith.mulf %165, %166 : vector<20x32xf32>
    %168 = vector.broadcast %147 : vector<1x32xf32> to vector<20x32xf32>
    %169 = arith.addf %167, %168 : vector<20x32xf32>
    %c0_53 = arith.constant 0 : index
    %c0_54 = arith.constant 0 : index
    %c0_55 = arith.constant 0 : index
    %170 = vector.load %arg13[%c0_53, %c0_54, %c0_55] : memref<2x32x128xf32, #tpu.memory_space<vmem>>, vector<1x32x128xf32>
    %171 = vector.shape_cast %170 : vector<1x32x128xf32> to vector<32x128xf32>
    %cst_56 = arith.constant dense<0.000000e+00> : vector<20x128xf32>
    %172 = tpu.matmul %169, %171, %cst_56 {dimension_numbers = #tpu.dot_dimension_numbers<[1], [0], [0], [1], [0, 0, 1, 1], [], []>} : vector<20x32xf32>, vector<32x128xf32>, vector<20x128xf32> -> vector<20x128xf32>
    %c0_57 = arith.constant 0 : index
    %c0_58 = arith.constant 0 : index
    %c0_59 = arith.constant 0 : index
    %173 = vector.load %arg14[%c0_57, %c0_58, %c0_59] : memref<2x1x128xf32, #tpu.memory_space<vmem>>, vector<1x1x128xf32>
    %174 = vector.shape_cast %173 : vector<1x1x128xf32> to vector<1x128xf32>
    %175 = vector.broadcast %174 : vector<1x128xf32> to vector<20x128xf32>
    %176 = arith.addf %172, %175 : vector<20x128xf32>
    %cst_60 = arith.constant 5.000000e-01 : f32
    %177 = vector.broadcast %cst_60 : f32 to vector<20x128xf32>
    %178 = arith.mulf %177, %176 : vector<20x128xf32>
    %cst_61 = arith.constant 0.707106769 : f32
    %179 = vector.broadcast %cst_61 : f32 to vector<20x128xf32>
    %180 = arith.mulf %176, %179 : vector<20x128xf32>
    %181 = math.erf %180 : vector<20x128xf32>
    %cst_62 = arith.constant 1.000000e+00 : f32
    %182 = vector.broadcast %cst_62 : f32 to vector<20x128xf32>
    %183 = arith.addf %182, %181 : vector<20x128xf32>
    %184 = arith.mulf %178, %183 : vector<20x128xf32>
    %c0_63 = arith.constant 0 : index
    %c0_64 = arith.constant 0 : index
    %c0_65 = arith.constant 0 : index
    %185 = vector.load %arg15[%c0_63, %c0_64, %c0_65] : memref<2x128x32xf32, #tpu.memory_space<vmem>>, vector<1x128x32xf32>
    %186 = vector.shape_cast %185 : vector<1x128x32xf32> to vector<128x32xf32>
    %cst_66 = arith.constant dense<0.000000e+00> : vector<20x32xf32>
    %187 = tpu.matmul %184, %186, %cst_66 {dimension_numbers = #tpu.dot_dimension_numbers<[1], [0], [0], [1], [0, 0, 1, 1], [], []>} : vector<20x128xf32>, vector<128x32xf32>, vector<20x32xf32> -> vector<20x32xf32>
    %188 = arith.addf %143, %187 : vector<20x32xf32>
    %c0_67 = arith.constant 0 : index
    %c0_68 = arith.constant 0 : index
    %c0_69 = arith.constant 0 : index
    %189 = vector.load %arg16[%c0_67, %c0_68, %c0_69] : memref<2x1x32xf32, #tpu.memory_space<vmem>>, vector<1x1x32xf32>
    %190 = vector.shape_cast %189 : vector<1x1x32xf32> to vector<1x32xf32>
    %191 = vector.broadcast %190 : vector<1x32xf32> to vector<20x32xf32>
    %192 = arith.addf %188, %191 : vector<20x32xf32>
    %c1 = arith.constant 1 : index
    %c0_70 = arith.constant 0 : index
    %c0_71 = arith.constant 0 : index
    %193 = vector.load %arg5[%c1, %c0_70, %c0_71] : memref<2x1x32xf32, #tpu.memory_space<vmem>>, vector<1x1x32xf32>
    %194 = vector.shape_cast %193 : vector<1x1x32xf32> to vector<1x32xf32>
    %c1_72 = arith.constant 1 : index
    %c0_73 = arith.constant 0 : index
    %c0_74 = arith.constant 0 : index
    %195 = vector.load %arg6[%c1_72, %c0_73, %c0_74] : memref<2x1x32xf32, #tpu.memory_space<vmem>>, vector<1x1x32xf32>
    %196 = vector.shape_cast %195 : vector<1x1x32xf32> to vector<1x32xf32>
    %cst_75 = arith.constant dense<0.000000e+00> : vector<20xf32>
    %197 = vector.multi_reduction <add>, %192, %cst_75 [1] : vector<20x32xf32> to vector<20xf32>
    %198 = vector.shape_cast %197 : vector<20xf32> to vector<20x1xf32>
    %cst_76 = arith.constant 3.200000e+01 : f32
    %199 = vector.broadcast %cst_76 : f32 to vector<20x1xf32>
    %200 = arith.divf %198, %199 : vector<20x1xf32>
    %201 = vector.broadcast %200 : vector<20x1xf32> to vector<20x32xf32>
    %202 = arith.subf %192, %201 : vector<20x32xf32>
    %203 = arith.mulf %202, %202 : vector<20x32xf32>
    %cst_77 = arith.constant dense<0.000000e+00> : vector<20xf32>
    %204 = vector.multi_reduction <add>, %203, %cst_77 [1] : vector<20x32xf32> to vector<20xf32>
    %205 = vector.shape_cast %204 : vector<20xf32> to vector<20x1xf32>
    %cst_78 = arith.constant 3.200000e+01 : f32
    %206 = vector.broadcast %cst_78 : f32 to vector<20x1xf32>
    %207 = arith.divf %205, %206 : vector<20x1xf32>
    %208 = vector.broadcast %200 : vector<20x1xf32> to vector<20x32xf32>
    %209 = arith.subf %192, %208 : vector<20x32xf32>
    %cst_79 = arith.constant 9.99999997E-7 : f32
    %210 = vector.broadcast %cst_79 : f32 to vector<20x1xf32>
    %211 = arith.addf %207, %210 : vector<20x1xf32>
    %212 = math.rsqrt %211 : vector<20x1xf32>
    %213 = vector.broadcast %212 : vector<20x1xf32> to vector<20x32xf32>
    %214 = arith.mulf %209, %213 : vector<20x32xf32>
    %215 = vector.broadcast %194 : vector<1x32xf32> to vector<20x32xf32>
    %216 = arith.mulf %214, %215 : vector<20x32xf32>
    %217 = vector.broadcast %196 : vector<1x32xf32> to vector<20x32xf32>
    %218 = arith.addf %216, %217 : vector<20x32xf32>
    %c1_80 = arith.constant 1 : index
    %c0_81 = arith.constant 0 : index
    %c0_82 = arith.constant 0 : index
    %219 = vector.load %arg7[%c1_80, %c0_81, %c0_82] : memref<2x32x96xf32, #tpu.memory_space<vmem>>, vector<1x32x96xf32>
    %220 = vector.shape_cast %219 : vector<1x32x96xf32> to vector<32x96xf32>
    %cst_83 = arith.constant dense<0.000000e+00> : vector<20x96xf32>
    %221 = tpu.matmul %218, %220, %cst_83 {dimension_numbers = #tpu.dot_dimension_numbers<[1], [0], [0], [1], [0, 0, 1, 1], [], []>} : vector<20x32xf32>, vector<32x96xf32>, vector<20x96xf32> -> vector<20x96xf32>
    %c1_84 = arith.constant 1 : index
    %c0_85 = arith.constant 0 : index
    %c0_86 = arith.constant 0 : index
    %222 = vector.load %arg8[%c1_84, %c0_85, %c0_86] : memref<2x1x96xf32, #tpu.memory_space<vmem>>, vector<1x1x96xf32>
    %223 = vector.shape_cast %222 : vector<1x1x96xf32> to vector<1x96xf32>
    %224 = vector.broadcast %223 : vector<1x96xf32> to vector<20x96xf32>
    %225 = arith.addf %221, %224 : vector<20x96xf32>
    %226 = vector.extract_strided_slice %225 {offsets = [0, 0], sizes = [20, 4], strides = [1, 1]} : vector<20x96xf32> to vector<20x4xf32>
    %227 = vector.extract_strided_slice %225 {offsets = [0, 4], sizes = [20, 4], strides = [1, 1]} : vector<20x96xf32> to vector<20x4xf32>
    %228 = vector.extract_strided_slice %225 {offsets = [0, 8], sizes = [20, 4], strides = [1, 1]} : vector<20x96xf32> to vector<20x4xf32>
    %229 = vector.extract_strided_slice %225 {offsets = [0, 12], sizes = [20, 4], strides = [1, 1]} : vector<20x96xf32> to vector<20x4xf32>
    %230 = vector.extract_strided_slice %225 {offsets = [0, 16], sizes = [20, 4], strides = [1, 1]} : vector<20x96xf32> to vector<20x4xf32>
    %231 = vector.extract_strided_slice %225 {offsets = [0, 20], sizes = [20, 4], strides = [1, 1]} : vector<20x96xf32> to vector<20x4xf32>
    %232 = vector.extract_strided_slice %225 {offsets = [0, 24], sizes = [20, 4], strides = [1, 1]} : vector<20x96xf32> to vector<20x4xf32>
    %233 = vector.extract_strided_slice %225 {offsets = [0, 28], sizes = [20, 4], strides = [1, 1]} : vector<20x96xf32> to vector<20x4xf32>
    %234 = vector.shape_cast %226 : vector<20x4xf32> to vector<1x20x4xf32>
    %235 = vector.shape_cast %227 : vector<20x4xf32> to vector<1x20x4xf32>
    %236 = vector.shape_cast %228 : vector<20x4xf32> to vector<1x20x4xf32>
    %237 = vector.shape_cast %229 : vector<20x4xf32> to vector<1x20x4xf32>
    %238 = vector.shape_cast %230 : vector<20x4xf32> to vector<1x20x4xf32>
    %239 = vector.shape_cast %231 : vector<20x4xf32> to vector<1x20x4xf32>
    %240 = vector.shape_cast %232 : vector<20x4xf32> to vector<1x20x4xf32>
    %241 = vector.shape_cast %233 : vector<20x4xf32> to vector<1x20x4xf32>
    %242 = tpu.concatenate %234, %235, %236, %237, %238, %239, %240, %241 in 0 : vector<1x20x4xf32>, vector<1x20x4xf32>, vector<1x20x4xf32>, vector<1x20x4xf32>, vector<1x20x4xf32>, vector<1x20x4xf32>, vector<1x20x4xf32>, vector<1x20x4xf32> -> vector<8x20x4xf32>
    %243 = vector.extract_strided_slice %225 {offsets = [0, 32], sizes = [20, 4], strides = [1, 1]} : vector<20x96xf32> to vector<20x4xf32>
    %244 = vector.extract_strided_slice %225 {offsets = [0, 36], sizes = [20, 4], strides = [1, 1]} : vector<20x96xf32> to vector<20x4xf32>
    %245 = vector.extract_strided_slice %225 {offsets = [0, 40], sizes = [20, 4], strides = [1, 1]} : vector<20x96xf32> to vector<20x4xf32>
    %246 = vector.extract_strided_slice %225 {offsets = [0, 44], sizes = [20, 4], strides = [1, 1]} : vector<20x96xf32> to vector<20x4xf32>
    %247 = vector.extract_strided_slice %225 {offsets = [0, 48], sizes = [20, 4], strides = [1, 1]} : vector<20x96xf32> to vector<20x4xf32>
    %248 = vector.extract_strided_slice %225 {offsets = [0, 52], sizes = [20, 4], strides = [1, 1]} : vector<20x96xf32> to vector<20x4xf32>
    %249 = vector.extract_strided_slice %225 {offsets = [0, 56], sizes = [20, 4], strides = [1, 1]} : vector<20x96xf32> to vector<20x4xf32>
    %250 = vector.extract_strided_slice %225 {offsets = [0, 60], sizes = [20, 4], strides = [1, 1]} : vector<20x96xf32> to vector<20x4xf32>
    %251 = vector.shape_cast %243 : vector<20x4xf32> to vector<1x20x4xf32>
    %252 = vector.shape_cast %244 : vector<20x4xf32> to vector<1x20x4xf32>
    %253 = vector.shape_cast %245 : vector<20x4xf32> to vector<1x20x4xf32>
    %254 = vector.shape_cast %246 : vector<20x4xf32> to vector<1x20x4xf32>
    %255 = vector.shape_cast %247 : vector<20x4xf32> to vector<1x20x4xf32>
    %256 = vector.shape_cast %248 : vector<20x4xf32> to vector<1x20x4xf32>
    %257 = vector.shape_cast %249 : vector<20x4xf32> to vector<1x20x4xf32>
    %258 = vector.shape_cast %250 : vector<20x4xf32> to vector<1x20x4xf32>
    %259 = tpu.concatenate %251, %252, %253, %254, %255, %256, %257, %258 in 0 : vector<1x20x4xf32>, vector<1x20x4xf32>, vector<1x20x4xf32>, vector<1x20x4xf32>, vector<1x20x4xf32>, vector<1x20x4xf32>, vector<1x20x4xf32>, vector<1x20x4xf32> -> vector<8x20x4xf32>
    %260 = vector.extract_strided_slice %225 {offsets = [0, 64], sizes = [20, 4], strides = [1, 1]} : vector<20x96xf32> to vector<20x4xf32>
    %261 = vector.extract_strided_slice %225 {offsets = [0, 68], sizes = [20, 4], strides = [1, 1]} : vector<20x96xf32> to vector<20x4xf32>
    %262 = vector.extract_strided_slice %225 {offsets = [0, 72], sizes = [20, 4], strides = [1, 1]} : vector<20x96xf32> to vector<20x4xf32>
    %263 = vector.extract_strided_slice %225 {offsets = [0, 76], sizes = [20, 4], strides = [1, 1]} : vector<20x96xf32> to vector<20x4xf32>
    %264 = vector.extract_strided_slice %225 {offsets = [0, 80], sizes = [20, 4], strides = [1, 1]} : vector<20x96xf32> to vector<20x4xf32>
    %265 = vector.extract_strided_slice %225 {offsets = [0, 84], sizes = [20, 4], strides = [1, 1]} : vector<20x96xf32> to vector<20x4xf32>
    %266 = vector.extract_strided_slice %225 {offsets = [0, 88], sizes = [20, 4], strides = [1, 1]} : vector<20x96xf32> to vector<20x4xf32>
    %267 = vector.extract_strided_slice %225 {offsets = [0, 92], sizes = [20, 4], strides = [1, 1]} : vector<20x96xf32> to vector<20x4xf32>
    %268 = vector.shape_cast %260 : vector<20x4xf32> to vector<1x20x4xf32>
    %269 = vector.shape_cast %261 : vector<20x4xf32> to vector<1x20x4xf32>
    %270 = vector.shape_cast %262 : vector<20x4xf32> to vector<1x20x4xf32>
    %271 = vector.shape_cast %263 : vector<20x4xf32> to vector<1x20x4xf32>
    %272 = vector.shape_cast %264 : vector<20x4xf32> to vector<1x20x4xf32>
    %273 = vector.shape_cast %265 : vector<20x4xf32> to vector<1x20x4xf32>
    %274 = vector.shape_cast %266 : vector<20x4xf32> to vector<1x20x4xf32>
    %275 = vector.shape_cast %267 : vector<20x4xf32> to vector<1x20x4xf32>
    %276 = tpu.concatenate %268, %269, %270, %271, %272, %273, %274, %275 in 0 : vector<1x20x4xf32>, vector<1x20x4xf32>, vector<1x20x4xf32>, vector<1x20x4xf32>, vector<1x20x4xf32>, vector<1x20x4xf32>, vector<1x20x4xf32>, vector<1x20x4xf32> -> vector<8x20x4xf32>
    "tpu.trace_start"() <{level = 10 : i32, message = "hnd,hmd->hnm"}> : () -> ()
    %cst_87 = arith.constant dense<0.000000e+00> : vector<8x20x20xf32>
    %277 = tpu.matmul %242, %259, %cst_87 {dimension_numbers = #tpu.dot_dimension_numbers<[2], [2], [1], [1], [0, 0, 0, 1, 1, 1], [0], [0]>} : vector<8x20x4xf32>, vector<8x20x4xf32>, vector<8x20x20xf32> -> vector<8x20x20xf32>
    "tpu.trace_stop"() : () -> ()
    %278 = vector.shape_cast %20 : vector<20x20xf32> to vector<1x20x20xf32>
    %279 = vector.broadcast %278 : vector<1x20x20xf32> to vector<8x20x20xf32>
    %280 = arith.addf %277, %279 : vector<8x20x20xf32>
    %cst_88 = arith.constant dense<0xFF800000> : vector<8x20xf32>
    %281 = vector.multi_reduction <maximumf>, %280, %cst_88 [2] : vector<8x20x20xf32> to vector<8x20xf32>
    %282 = vector.shape_cast %281 : vector<8x20xf32> to vector<8x20x1xf32>
    %283 = vector.broadcast %282 : vector<8x20x1xf32> to vector<8x20x20xf32>
    %284 = arith.subf %280, %283 : vector<8x20x20xf32>
    %285 = math.exp %284 : vector<8x20x20xf32>
    %cst_89 = arith.constant dense<0.000000e+00> : vector<8x20xf32>
    %286 = vector.multi_reduction <add>, %285, %cst_89 [2] : vector<8x20x20xf32> to vector<8x20xf32>
    %287 = vector.shape_cast %286 : vector<8x20xf32> to vector<8x20x1xf32>
    %288 = vector.broadcast %287 : vector<8x20x1xf32> to vector<8x20x20xf32>
    %289 = arith.divf %285, %288 : vector<8x20x20xf32>
    "tpu.trace_start"() <{level = 10 : i32, message = "hnm,hmd->hnd"}> : () -> ()
    %cst_90 = arith.constant dense<0.000000e+00> : vector<8x20x4xf32>
    %290 = tpu.matmul %289, %276, %cst_90 {dimension_numbers = #tpu.dot_dimension_numbers<[2], [1], [1], [2], [0, 0, 0, 1, 1, 2], [0], [0]>} : vector<8x20x20xf32>, vector<8x20x4xf32>, vector<8x20x4xf32> -> vector<8x20x4xf32>
    "tpu.trace_stop"() : () -> ()
    %291 = vector.extract_strided_slice %290 {offsets = [0, 0, 0], sizes = [1, 20, 4], strides = [1, 1, 1]} : vector<8x20x4xf32> to vector<1x20x4xf32>
    %292 = vector.shape_cast %291 : vector<1x20x4xf32> to vector<20x4xf32>
    %293 = vector.extract_strided_slice %290 {offsets = [1, 0, 0], sizes = [1, 20, 4], strides = [1, 1, 1]} : vector<8x20x4xf32> to vector<1x20x4xf32>
    %294 = vector.shape_cast %293 : vector<1x20x4xf32> to vector<20x4xf32>
    %295 = vector.extract_strided_slice %290 {offsets = [2, 0, 0], sizes = [1, 20, 4], strides = [1, 1, 1]} : vector<8x20x4xf32> to vector<1x20x4xf32>
    %296 = vector.shape_cast %295 : vector<1x20x4xf32> to vector<20x4xf32>
    %297 = vector.extract_strided_slice %290 {offsets = [3, 0, 0], sizes = [1, 20, 4], strides = [1, 1, 1]} : vector<8x20x4xf32> to vector<1x20x4xf32>
    %298 = vector.shape_cast %297 : vector<1x20x4xf32> to vector<20x4xf32>
    %299 = vector.extract_strided_slice %290 {offsets = [4, 0, 0], sizes = [1, 20, 4], strides = [1, 1, 1]} : vector<8x20x4xf32> to vector<1x20x4xf32>
    %300 = vector.shape_cast %299 : vector<1x20x4xf32> to vector<20x4xf32>
    %301 = vector.extract_strided_slice %290 {offsets = [5, 0, 0], sizes = [1, 20, 4], strides = [1, 1, 1]} : vector<8x20x4xf32> to vector<1x20x4xf32>
    %302 = vector.shape_cast %301 : vector<1x20x4xf32> to vector<20x4xf32>
    %303 = vector.extract_strided_slice %290 {offsets = [6, 0, 0], sizes = [1, 20, 4], strides = [1, 1, 1]} : vector<8x20x4xf32> to vector<1x20x4xf32>
    %304 = vector.shape_cast %303 : vector<1x20x4xf32> to vector<20x4xf32>
    %305 = vector.extract_strided_slice %290 {offsets = [7, 0, 0], sizes = [1, 20, 4], strides = [1, 1, 1]} : vector<8x20x4xf32> to vector<1x20x4xf32>
    %306 = vector.shape_cast %305 : vector<1x20x4xf32> to vector<20x4xf32>
    %307 = tpu.concatenate %292, %294, %296, %298, %300, %302, %304, %306 in 1 : vector<20x4xf32>, vector<20x4xf32>, vector<20x4xf32>, vector<20x4xf32>, vector<20x4xf32>, vector<20x4xf32>, vector<20x4xf32>, vector<20x4xf32> -> vector<20x32xf32>
    %c1_91 = arith.constant 1 : index
    %c0_92 = arith.constant 0 : index
    %c0_93 = arith.constant 0 : index
    %308 = vector.load %arg9[%c1_91, %c0_92, %c0_93] : memref<2x32x32xf32, #tpu.memory_space<vmem>>, vector<1x32x32xf32>
    %309 = vector.shape_cast %308 : vector<1x32x32xf32> to vector<32x32xf32>
    %cst_94 = arith.constant dense<0.000000e+00> : vector<20x32xf32>
    %310 = tpu.matmul %307, %309, %cst_94 {dimension_numbers = #tpu.dot_dimension_numbers<[1], [0], [0], [1], [0, 0, 1, 1], [], []>} : vector<20x32xf32>, vector<32x32xf32>, vector<20x32xf32> -> vector<20x32xf32>
    %311 = arith.addf %192, %310 : vector<20x32xf32>
    %c1_95 = arith.constant 1 : index
    %c0_96 = arith.constant 0 : index
    %c0_97 = arith.constant 0 : index
    %312 = vector.load %arg10[%c1_95, %c0_96, %c0_97] : memref<2x1x32xf32, #tpu.memory_space<vmem>>, vector<1x1x32xf32>
    %313 = vector.shape_cast %312 : vector<1x1x32xf32> to vector<1x32xf32>
    %314 = vector.broadcast %313 : vector<1x32xf32> to vector<20x32xf32>
    %315 = arith.addf %311, %314 : vector<20x32xf32>
    %c1_98 = arith.constant 1 : index
    %c0_99 = arith.constant 0 : index
    %c0_100 = arith.constant 0 : index
    %316 = vector.load %arg11[%c1_98, %c0_99, %c0_100] : memref<2x1x32xf32, #tpu.memory_space<vmem>>, vector<1x1x32xf32>
    %317 = vector.shape_cast %316 : vector<1x1x32xf32> to vector<1x32xf32>
    %c1_101 = arith.constant 1 : index
    %c0_102 = arith.constant 0 : index
    %c0_103 = arith.constant 0 : index
    %318 = vector.load %arg12[%c1_101, %c0_102, %c0_103] : memref<2x1x32xf32, #tpu.memory_space<vmem>>, vector<1x1x32xf32>
    %319 = vector.shape_cast %318 : vector<1x1x32xf32> to vector<1x32xf32>
    %cst_104 = arith.constant dense<0.000000e+00> : vector<20xf32>
    %320 = vector.multi_reduction <add>, %315, %cst_104 [1] : vector<20x32xf32> to vector<20xf32>
    %321 = vector.shape_cast %320 : vector<20xf32> to vector<20x1xf32>
    %cst_105 = arith.constant 3.200000e+01 : f32
    %322 = vector.broadcast %cst_105 : f32 to vector<20x1xf32>
    %323 = arith.divf %321, %322 : vector<20x1xf32>
    %324 = vector.broadcast %323 : vector<20x1xf32> to vector<20x32xf32>
    %325 = arith.subf %315, %324 : vector<20x32xf32>
    %326 = arith.mulf %325, %325 : vector<20x32xf32>
    %cst_106 = arith.constant dense<0.000000e+00> : vector<20xf32>
    %327 = vector.multi_reduction <add>, %326, %cst_106 [1] : vector<20x32xf32> to vector<20xf32>
    %328 = vector.shape_cast %327 : vector<20xf32> to vector<20x1xf32>
    %cst_107 = arith.constant 3.200000e+01 : f32
    %329 = vector.broadcast %cst_107 : f32 to vector<20x1xf32>
    %330 = arith.divf %328, %329 : vector<20x1xf32>
    %331 = vector.broadcast %323 : vector<20x1xf32> to vector<20x32xf32>
    %332 = arith.subf %315, %331 : vector<20x32xf32>
    %cst_108 = arith.constant 9.99999997E-7 : f32
    %333 = vector.broadcast %cst_108 : f32 to vector<20x1xf32>
    %334 = arith.addf %330, %333 : vector<20x1xf32>
    %335 = math.rsqrt %334 : vector<20x1xf32>
    %336 = vector.broadcast %335 : vector<20x1xf32> to vector<20x32xf32>
    %337 = arith.mulf %332, %336 : vector<20x32xf32>
    %338 = vector.broadcast %317 : vector<1x32xf32> to vector<20x32xf32>
    %339 = arith.mulf %337, %338 : vector<20x32xf32>
    %340 = vector.broadcast %319 : vector<1x32xf32> to vector<20x32xf32>
    %341 = arith.addf %339, %340 : vector<20x32xf32>
    %c1_109 = arith.constant 1 : index
    %c0_110 = arith.constant 0 : index
    %c0_111 = arith.constant 0 : index
    %342 = vector.load %arg13[%c1_109, %c0_110, %c0_111] : memref<2x32x128xf32, #tpu.memory_space<vmem>>, vector<1x32x128xf32>
    %343 = vector.shape_cast %342 : vector<1x32x128xf32> to vector<32x128xf32>
    %cst_112 = arith.constant dense<0.000000e+00> : vector<20x128xf32>
    %344 = tpu.matmul %341, %343, %cst_112 {dimension_numbers = #tpu.dot_dimension_numbers<[1], [0], [0], [1], [0, 0, 1, 1], [], []>} : vector<20x32xf32>, vector<32x128xf32>, vector<20x128xf32> -> vector<20x128xf32>
    %c1_113 = arith.constant 1 : index
    %c0_114 = arith.constant 0 : index
    %c0_115 = arith.constant 0 : index
    %345 = vector.load %arg14[%c1_113, %c0_114, %c0_115] : memref<2x1x128xf32, #tpu.memory_space<vmem>>, vector<1x1x128xf32>
    %346 = vector.shape_cast %345 : vector<1x1x128xf32> to vector<1x128xf32>
    %347 = vector.broadcast %346 : vector<1x128xf32> to vector<20x128xf32>
    %348 = arith.addf %344, %347 : vector<20x128xf32>
    %cst_116 = arith.constant 5.000000e-01 : f32
    %349 = vector.broadcast %cst_116 : f32 to vector<20x128xf32>
    %350 = arith.mulf %349, %348 : vector<20x128xf32>
    %cst_117 = arith.constant 0.707106769 : f32
    %351 = vector.broadcast %cst_117 : f32 to vector<20x128xf32>
    %352 = arith.mulf %348, %351 : vector<20x128xf32>
    %353 = math.erf %352 : vector<20x128xf32>
    %cst_118 = arith.constant 1.000000e+00 : f32
    %354 = vector.broadcast %cst_118 : f32 to vector<20x128xf32>
    %355 = arith.addf %354, %353 : vector<20x128xf32>
    %356 = arith.mulf %350, %355 : vector<20x128xf32>
    %c1_119 = arith.constant 1 : index
    %c0_120 = arith.constant 0 : index
    %c0_121 = arith.constant 0 : index
    %357 = vector.load %arg15[%c1_119, %c0_120, %c0_121] : memref<2x128x32xf32, #tpu.memory_space<vmem>>, vector<1x128x32xf32>
    %358 = vector.shape_cast %357 : vector<1x128x32xf32> to vector<128x32xf32>
    %cst_122 = arith.constant dense<0.000000e+00> : vector<20x32xf32>
    %359 = tpu.matmul %356, %358, %cst_122 {dimension_numbers = #tpu.dot_dimension_numbers<[1], [0], [0], [1], [0, 0, 1, 1], [], []>} : vector<20x128xf32>, vector<128x32xf32>, vector<20x32xf32> -> vector<20x32xf32>
    %360 = arith.addf %315, %359 : vector<20x32xf32>
    %c1_123 = arith.constant 1 : index
    %c0_124 = arith.constant 0 : index
    %c0_125 = arith.constant 0 : index
    %361 = vector.load %arg16[%c1_123, %c0_124, %c0_125] : memref<2x1x32xf32, #tpu.memory_space<vmem>>, vector<1x1x32xf32>
    %362 = vector.shape_cast %361 : vector<1x1x32xf32> to vector<1x32xf32>
    %363 = vector.broadcast %362 : vector<1x32xf32> to vector<20x32xf32>
    %364 = arith.addf %360, %363 : vector<20x32xf32>
    %365 = vector.extract_strided_slice %364 {offsets = [4, 0], sizes = [16, 32], strides = [1, 1]} : vector<20x32xf32> to vector<16x32xf32>
    %c0_126 = arith.constant 0 : index
    %c0_127 = arith.constant 0 : index
    %366 = vector.load %arg17[%c0_126, %c0_127] : memref<1x32xf32, #tpu.memory_space<vmem>>, vector<1x32xf32>
    %cst_128 = arith.constant dense<0.000000e+00> : vector<1x16xf32>
    %367 = tpu.matmul %366, %365, %cst_128 {dimension_numbers = #tpu.dot_dimension_numbers<[1], [1], [0], [0], [0, 0, 1, 0], [], []>} : vector<1x32xf32>, vector<16x32xf32>, vector<1x16xf32> -> vector<1x16xf32>
    %c0_129 = arith.constant 0 : index
    %c0_130 = arith.constant 0 : index
    %368 = vector.load %arg18[%c0_129, %c0_130] : memref<1x1xf32, #tpu.memory_space<vmem>>, vector<1x1xf32>
    %369 = vector.broadcast %368 : vector<1x1xf32> to vector<1x16xf32>
    %370 = arith.addf %367, %369 : vector<1x16xf32>
    %c0_131 = arith.constant 0 : index
    %c0_132 = arith.constant 0 : index
    %371 = vector.load %arg19[%c0_131, %c0_132] : memref<1x16xf32, #tpu.memory_space<vmem>>, vector<1x16xf32>
    tpu.vector_store %arg19[%c0_131, %c0_132], %370 {strides = array<i32>} : memref<1x16xf32, #tpu.memory_space<vmem>>, vector<1x16xf32>,
    return
  }
  func.func @transform_0(%arg0: i32) -> (i32, i32, i32) {
    %c0_i32 = arith.constant 0 : i32
    %c0_i32_0 = arith.constant 0 : i32
    %c0_i32_1 = arith.constant 0 : i32
    return %arg0, %c0_i32, %c0_i32_0 : i32, i32, i32
  }
  func.func @transform_1(%arg0: i32) -> (i32, i32, i32) {
    %c0_i32 = arith.constant 0 : i32
    %c0_i32_0 = arith.constant 0 : i32
    %c0_i32_1 = arith.constant 0 : i32
    return %arg0, %c0_i32, %c0_i32_0 : i32, i32, i32
  }
  func.func @transform_2(%arg0: i32) -> (i32, i32, i32) {
    %c0_i32 = arith.constant 0 : i32
    %c0_i32_0 = arith.constant 0 : i32
    %c0_i32_1 = arith.constant 0 : i32
    %c0_i32_2 = arith.constant 0 : i32
    return %c0_i32, %c0_i32_0, %c0_i32_1 : i32, i32, i32
  }
  func.func @transform_3(%arg0: i32) -> (i32, i32, i32) {
    %c0_i32 = arith.constant 0 : i32
    %c0_i32_0 = arith.constant 0 : i32
    %c0_i32_1 = arith.constant 0 : i32
    %c0_i32_2 = arith.constant 0 : i32
    return %c0_i32, %c0_i32_0, %c0_i32_1 : i32, i32, i32
  }
  func.func @transform_4(%arg0: i32) -> (i32, i32, i32) {
    %c0_i32 = arith.constant 0 : i32
    %c0_i32_0 = arith.constant 0 : i32
    %c0_i32_1 = arith.constant 0 : i32
    %c0_i32_2 = arith.constant 0 : i32
    return %c0_i32, %c0_i32_0, %c0_i32_1 : i32, i32, i32
  }
  func.func @transform_5(%arg0: i32) -> (i32, i32, i32) {
    %c0_i32 = arith.constant 0 : i32
    %c0_i32_0 = arith.constant 0 : i32
    %c0_i32_1 = arith.constant 0 : i32
    %c0_i32_2 = arith.constant 0 : i32
    return %c0_i32, %c0_i32_0, %c0_i32_1 : i32, i32, i32
  }
  func.func @transform_6(%arg0: i32) -> (i32, i32, i32) {
    %c0_i32 = arith.constant 0 : i32
    %c0_i32_0 = arith.constant 0 : i32
    %c0_i32_1 = arith.constant 0 : i32
    %c0_i32_2 = arith.constant 0 : i32
    return %c0_i32, %c0_i32_0, %c0_i32_1 : i32, i32, i32
  }
  func.func @transform_7(%arg0: i32) -> (i32, i32, i32) {
    %c0_i32 = arith.constant 0 : i32
    %c0_i32_0 = arith.constant 0 : i32
    %c0_i32_1 = arith.constant 0 : i32
    %c0_i32_2 = arith.constant 0 : i32
    return %c0_i32, %c0_i32_0, %c0_i32_1 : i32, i32, i32
  }
  func.func @transform_8(%arg0: i32) -> (i32, i32, i32) {
    %c0_i32 = arith.constant 0 : i32
    %c0_i32_0 = arith.constant 0 : i32
    %c0_i32_1 = arith.constant 0 : i32
    %c0_i32_2 = arith.constant 0 : i32
    return %c0_i32, %c0_i32_0, %c0_i32_1 : i32, i32, i32
  }
  func.func @transform_9(%arg0: i32) -> (i32, i32, i32) {
    %c0_i32 = arith.constant 0 : i32
    %c0_i32_0 = arith.constant 0 : i32
    %c0_i32_1 = arith.constant 0 : i32
    %c0_i32_2 = arith.constant 0 : i32
    return %c0_i32, %c0_i32_0, %c0_i32_1 : i32, i32, i32
  }
  func.func @transform_10(%arg0: i32) -> (i32, i32, i32) {
    %c0_i32 = arith.constant 0 : i32
    %c0_i32_0 = arith.constant 0 : i32
    %c0_i32_1 = arith.constant 0 : i32
    %c0_i32_2 = arith.constant 0 : i32
    return %c0_i32, %c0_i32_0, %c0_i32_1 : i32, i32, i32
  }
  func.func @transform_11(%arg0: i32) -> (i32, i32, i32) {
    %c0_i32 = arith.constant 0 : i32
    %c0_i32_0 = arith.constant 0 : i32
    %c0_i32_1 = arith.constant 0 : i32
    %c0_i32_2 = arith.constant 0 : i32
    return %c0_i32, %c0_i32_0, %c0_i32_1 : i32, i32, i32
  }
  func.func @transform_12(%arg0: i32) -> (i32, i32, i32) {
    %c0_i32 = arith.constant 0 : i32
    %c0_i32_0 = arith.constant 0 : i32
    %c0_i32_1 = arith.constant 0 : i32
    %c0_i32_2 = arith.constant 0 : i32
    return %c0_i32, %c0_i32_0, %c0_i32_1 : i32, i32, i32
  }
  func.func @transform_13(%arg0: i32) -> (i32, i32, i32) {
    %c0_i32 = arith.constant 0 : i32
    %c0_i32_0 = arith.constant 0 : i32
    %c0_i32_1 = arith.constant 0 : i32
    %c0_i32_2 = arith.constant 0 : i32
    return %c0_i32, %c0_i32_0, %c0_i32_1 : i32, i32, i32
  }
  func.func @transform_14(%arg0: i32) -> (i32, i32, i32) {
    %c0_i32 = arith.constant 0 : i32
    %c0_i32_0 = arith.constant 0 : i32
    %c0_i32_1 = arith.constant 0 : i32
    %c0_i32_2 = arith.constant 0 : i32
    return %c0_i32, %c0_i32_0, %c0_i32_1 : i32, i32, i32
  }
  func.func @transform_15(%arg0: i32) -> (i32, i32, i32) {
    %c0_i32 = arith.constant 0 : i32
    %c0_i32_0 = arith.constant 0 : i32
    %c0_i32_1 = arith.constant 0 : i32
    %c0_i32_2 = arith.constant 0 : i32
    return %c0_i32, %c0_i32_0, %c0_i32_1 : i32, i32, i32
  }
  func.func @transform_16(%arg0: i32) -> (i32, i32) {
    %c0_i32 = arith.constant 0 : i32
    %c0_i32_0 = arith.constant 0 : i32
    %c0_i32_1 = arith.constant 0 : i32
    return %c0_i32, %c0_i32_0 : i32, i32
  }
  func.func @transform_17(%arg0: i32) -> (i32, i32) {
    %c0_i32 = arith.constant 0 : i32
    %c0_i32_0 = arith.constant 0 : i32
    %c0_i32_1 = arith.constant 0 : i32
    return %c0_i32, %c0_i32_0 : i32, i32
  }
  func.func @transform_18(%arg0: i32) -> (i32, i32) {
    %c0_i32 = arith.constant 0 : i32
    %c0_i32_0 = arith.constant 0 : i32
    return %arg0, %c0_i32 : i32, i32
  }
}

</mosaic_0001>

<llo_original>
// kernel: tpu_custom_call.1
$region0: #{tpu_custom_call.1}
  #allocation0 [shape = 'u32[]', space=smem, size = 0x4, offset = 0x4, fixed_abs, tag = 'smem constant byte address 0x4 - core index']
  #allocation1 [shape = 'u32[144,128]{1,0:T(1,128)}', space=vmem, size = 0x12000, scoped, tag = 'internal scratch']
  #allocation2 [shape = 'f32[1,1]{1,0:T(1,128)S(1)}', space=vmem, size = 0x200, scoped, tag = 'scoped memory for tpu_custom_call.1']
  %s0 = inlined_call_operand.vmem [shape: f32[1,4,32], index: 0, kind: input, shape index: {}]
  %s1 = inlined_call_operand.vmem [shape: f32[1,16,32], index: 1, kind: input, shape index: {}]
  %s2 = inlined_call_operand.vmem [shape: f32[1,4,32], index: 2, kind: input, shape index: {}]
  %s3 = inlined_call_operand.vmem [shape: f32[1,16,32], index: 3, kind: input, shape index: {}]
  %s4 = inlined_call_operand.vmem [shape: f32[2,1,32], index: 4, kind: input, shape index: {}]
  %s5 = inlined_call_operand.vmem [shape: f32[2,1,32], index: 5, kind: input, shape index: {}]
  %s6 = inlined_call_operand.vmem [shape: f32[2,32,96], index: 6, kind: input, shape index: {}]
  %s7 = inlined_call_operand.vmem [shape: f32[2,1,96], index: 7, kind: input, shape index: {}]
  %s8 = inlined_call_operand.vmem [shape: f32[2,32,32], index: 8, kind: input, shape index: {}]
  %s9 = inlined_call_operand.vmem [shape: f32[2,1,32], index: 9, kind: input, shape index: {}]
  %s10 = inlined_call_operand.vmem [shape: f32[2,1,32], index: 10, kind: input, shape index: {}]
  %s11 = inlined_call_operand.vmem [shape: f32[2,1,32], index: 11, kind: input, shape index: {}]
  %s12 = inlined_call_operand.vmem [shape: f32[2,32,128], index: 12, kind: input, shape index: {}]
  %s13 = inlined_call_operand.vmem [shape: f32[2,1,128], index: 13, kind: input, shape index: {}]
  %s14 = inlined_call_operand.vmem [shape: f32[2,128,32], index: 14, kind: input, shape index: {}]
  %s15 = inlined_call_operand.vmem [shape: f32[2,1,32], index: 15, kind: input, shape index: {}]
  %s16 = inlined_call_operand.vmem [shape: f32[1,32], index: 16, kind: input, shape index: {}]
  %s17 = inlined_call_operand.<no memory space> [shape: f32[1,1], index: 17, kind: input, shape index: {}]
  %s18 = inlined_call_operand.hbm [shape: f32[1,16], index: 18, kind: output, shape index: {}]
  %s19 = sld [smem:[#allocation0]]
  $region82: #{tpu_custom_call.1} parent=0
    _
  %s21 = ssub.s32 1, %s19
  %s22 = scalar_select 0, %s21, %s19
  %v23 = vstv %s17
  %24 = vst [vmem:[#allocation2] sm:$0x1] %v23
  $region1: #{tpu_custom_call.1} parent=0
    #allocation3 [shape = 'u8[512]{0}', space=vmem, size = 0x400, scoped, tag = 'output window, operand 0, single buffered']
    #allocation4 [shape = 's32[1]{0}', space=sflag, size = 0x4, scoped, tag = 'scoped memory for tpu_custom_call.1']
    %25 = vsyncpa [#allocation4], 0
    // Predicated region
    $region2: #{tpu_custom_call.1} parent=1 // pred_check
      _
    $region3: #{tpu_custom_call.1} parent=1 // pred_check_branch
      %27 = sbr.rel (0) target = $region5
    $region4: #{tpu_custom_call.1} parent=1 // pred_region
      _
    $region5: #{tpu_custom_call.1} parent=1 // pred_fallthru
      _
    // Predicated region
    $region6: #{tpu_custom_call.1} parent=1 // pred_check
      _
    $region7: #{tpu_custom_call.1} parent=1 // pred_check_branch
      %29 = sbr.rel (0) target = $region9
    $region8: #{tpu_custom_call.1} parent=1 // pred_region
      _
    $region9: #{tpu_custom_call.1} parent=1 // pred_fallthru
      _
    // Predicated region
    $region10: #{tpu_custom_call.1} parent=1 // pred_check
      _
    $region11: #{tpu_custom_call.1} parent=1 // pred_check_branch
      %31 = sbr.rel (0) target = $region13
    $region12: #{tpu_custom_call.1} parent=1 // pred_region
      _
    $region13: #{tpu_custom_call.1} parent=1 // pred_fallthru
      _
    // Predicated region
    $region14: #{tpu_custom_call.1} parent=1 // pred_check
      _
    $region15: #{tpu_custom_call.1} parent=1 // pred_check_branch
      %33 = sbr.rel (0) target = $region17
    $region16: #{tpu_custom_call.1} parent=1 // pred_region
      _
    $region17: #{tpu_custom_call.1} parent=1 // pred_fallthru
      _
    // Predicated region
    $region18: #{tpu_custom_call.1} parent=1 // pred_check
      _
    $region19: #{tpu_custom_call.1} parent=1 // pred_check_branch
      %35 = sbr.rel (0) target = $region21
    $region20: #{tpu_custom_call.1} parent=1 // pred_region
      _
    $region21: #{tpu_custom_call.1} parent=1 // pred_fallthru
      _
    // Predicated region
    $region22: #{tpu_custom_call.1} parent=1 // pred_check
      _
    $region23: #{tpu_custom_call.1} parent=1 // pred_check_branch
      %37 = sbr.rel (0) target = $region25
    $region24: #{tpu_custom_call.1} parent=1 // pred_region
      _
    $region25: #{tpu_custom_call.1} parent=1 // pred_fallthru
      _
    // Predicated region
    $region26: #{tpu_custom_call.1} parent=1 // pred_check
      _
    $region27: #{tpu_custom_call.1} parent=1 // pred_check_branch
      %39 = sbr.rel (0) target = $region29
    $region28: #{tpu_custom_call.1} parent=1 // pred_region
      _
    $region29: #{tpu_custom_call.1} parent=1 // pred_fallthru
      _
    // Predicated region
    $region30: #{tpu_custom_call.1} parent=1 // pred_check
      _
    $region31: #{tpu_custom_call.1} parent=1 // pred_check_branch
      %41 = sbr.rel (0) target = $region33
    $region32: #{tpu_custom_call.1} parent=1 // pred_region
      _
    $region33: #{tpu_custom_call.1} parent=1 // pred_fallthru
      _
    // Predicated region
    $region34: #{tpu_custom_call.1} parent=1 // pred_check
      _
    $region35: #{tpu_custom_call.1} parent=1 // pred_check_branch
      %43 = sbr.rel (0) target = $region37
    $region36: #{tpu_custom_call.1} parent=1 // pred_region
      _
    $region37: #{tpu_custom_call.1} parent=1 // pred_fallthru
      _
    // Predicated region
    $region38: #{tpu_custom_call.1} parent=1 // pred_check
      _
    $region39: #{tpu_custom_call.1} parent=1 // pred_check_branch
      %45 = sbr.rel (0) target = $region41
    $region40: #{tpu_custom_call.1} parent=1 // pred_region
      _
    $region41: #{tpu_custom_call.1} parent=1 // pred_fallthru
      _
    // Predicated region
    $region42: #{tpu_custom_call.1} parent=1 // pred_check
      _
    $region43: #{tpu_custom_call.1} parent=1 // pred_check_branch
      %47 = sbr.rel (0) target = $region45
    $region44: #{tpu_custom_call.1} parent=1 // pred_region
      _
    $region45: #{tpu_custom_call.1} parent=1 // pred_fallthru
      _
    // Predicated region
    $region46: #{tpu_custom_call.1} parent=1 // pred_check
      _
    $region47: #{tpu_custom_call.1} parent=1 // pred_check_branch
      %49 = sbr.rel (0) target = $region49
    $region48: #{tpu_custom_call.1} parent=1 // pred_region
      _
    $region49: #{tpu_custom_call.1} parent=1 // pred_fallthru
      _
    // Predicated region
    $region50: #{tpu_custom_call.1} parent=1 // pred_check
      _
    $region51: #{tpu_custom_call.1} parent=1 // pred_check_branch
      %51 = sbr.rel (0) target = $region53
    $region52: #{tpu_custom_call.1} parent=1 // pred_region
      _
    $region53: #{tpu_custom_call.1} parent=1 // pred_fallthru
      _
    // Predicated region
    $region54: #{tpu_custom_call.1} parent=1 // pred_check
      _
    $region55: #{tpu_custom_call.1} parent=1 // pred_check_branch
      %53 = sbr.rel (0) target = $region57
    $region56: #{tpu_custom_call.1} parent=1 // pred_region
      _
    $region57: #{tpu_custom_call.1} parent=1 // pred_fallthru
      _
    // Predicated region
    $region58: #{tpu_custom_call.1} parent=1 // pred_check
      _
    $region59: #{tpu_custom_call.1} parent=1 // pred_check_branch
      %55 = sbr.rel (0) target = $region61
    $region60: #{tpu_custom_call.1} parent=1 // pred_region
      _
    $region61: #{tpu_custom_call.1} parent=1 // pred_fallthru
      _
    // Predicated region
    $region62: #{tpu_custom_call.1} parent=1 // pred_check
      _
    $region63: #{tpu_custom_call.1} parent=1 // pred_check_branch
      %57 = sbr.rel (0) target = $region65
    $region64: #{tpu_custom_call.1} parent=1 // pred_region
      _
    $region65: #{tpu_custom_call.1} parent=1 // pred_fallthru
      _
    // Predicated region
    $region66: #{tpu_custom_call.1} parent=1 // pred_check
      _
    $region67: #{tpu_custom_call.1} parent=1 // pred_check_branch
      %59 = sbr.rel (0) target = $region69
    $region68: #{tpu_custom_call.1} parent=1 // pred_region
      _
    $region69: #{tpu_custom_call.1} parent=1 // pred_fallthru
      _
    // Predicated region
    $region70: #{tpu_custom_call.1} parent=1 // pred_check
      _
    $region71: #{tpu_custom_call.1} parent=1 // pred_check_branch
      %61 = sbr.rel (0) target = $region73
    $region72: #{tpu_custom_call.1} parent=1 // pred_region
      _
    $region73: #{tpu_custom_call.1} parent=1 // pred_fallthru
      _
    %v62 = vld [vmem:[%s0] sm:$0xf]
    %v63 = vld [vmem:[%s2] sm:$0xf]
    %v64 = vadd.f32 %v62, %v63
    %v65 = vld [vmem:[%s1] sm:$0xff]
    %v66 = vld [vmem:[%s1 + $0x8] sm:$0xff]
    %v67 = vld [vmem:[%s3] sm:$0xff]
    %v68 = vld [vmem:[%s3 + $0x8] sm:$0xff]
    %v69 = vadd.f32 %v65, %v67
    %v70 = vadd.f32 %v66, %v68
    %vm73 = vcmask 1043456
    %v74 = vrot.slane %v69, 4
    %v75 = vrot.slane %v70, 4
    %v76 = vsel %vm73, %v74, %v75
    %v80 = vsel %vm73, %v64, %v74
    %v81 = vlaneseq
    %v82 = vshrl.u32 %v81, 7
    %v83 = vadd.s32 %v82, 8
    %v84 = vadd.s32 %v82, 16
    %v85 = vlaneseq
    %v86 = vand.u32 %v85, 127
    %vm87 = vcmp.lt.s32.totalorder %v82, 4
    %vm88 = vcmp.lt.s32.totalorder %v83, 4
    %vm89 = vcmp.lt.s32.totalorder %v84, 4
    %vm90 = vcmp.ge.s32.totalorder %v86, 4
    %vm91 = vmand %vm87, %vm90
    %vm92 = vmand %vm88, %vm90
    %vm93 = vmand %vm89, %vm90
    %v94 = vsel %vm91, -1e+30, 0.0
    %v95 = vsel %vm92, -1e+30, 0.0
    %v96 = vsel %vm93, -1e+30, 0.0
    %v97 = vld [vmem:[%s4] sm:$0x1]
    %v98 = vld [vmem:[%s5] sm:$0x1]
    %vm99 = vcmask 261120
    %v100 = vsel %vm99, %v80, 0.0
    %101 = vadd.xlane.f32.xlu0 %v100
    %v102 = vpop.xlane.xlu0 %101
    %v103 = vsel %vm99, %v76, 0.0
    %104 = vadd.xlane.f32.xlu0 %v103
    %v105 = vpop.xlane.xlu0 %104
    %vm106 = vcmask 257024
    %v107 = vsel %vm106, %v75, 0.0
    %108 = vadd.xlane.f32.xlu0 %v107
    %v109 = vpop.xlane.xlu0 %108
    %v110 = vrcp.pop 32.0
    %v111 = vmul.f32 %v102, %v110
    %v112 = vmul.f32 %v105, %v110
    %v113 = vmul.f32 %v109, %v110
    %v114 = vsub.f32 %v80, %v111
    %v115 = vsub.f32 %v76, %v112
    %v116 = vsub.f32 %v75, %v113
    %v117 = vmul.f32 %v114, %v114
    %v118 = vmul.f32 %v115, %v115
    %v119 = vmul.f32 %v116, %v116
    %v120 = vsel %vm99, %v117, 0.0
    %121 = vadd.xlane.f32.xlu0 %v120
    %v122 = vpop.xlane.xlu0 %121
    %v123 = vsel %vm99, %v118, 0.0
    %124 = vadd.xlane.f32.xlu0 %v123
    %v125 = vpop.xlane.xlu0 %124
    %v126 = vsel %vm106, %v119, 0.0
    %127 = vadd.xlane.f32.xlu0 %v126
    %v128 = vpop.xlane.xlu0 %127
    %v129 = vmul.f32 %v122, %v110
    %v130 = vmul.f32 %v125, %v110
    %v131 = vmul.f32 %v128, %v110
    %v132 = vadd.f32 %v129, 1e-06
    %v133 = vadd.f32 %v130, 1e-06
    %v134 = vadd.f32 %v131, 1e-06
    %v135 = vrsqrt.pop %v132
    %v136 = vrsqrt.pop %v133
    %v137 = vrsqrt.pop %v134
    %v138 = vmul.f32 %v114, %v135
    %v139 = vmul.f32 %v115, %v136
    %v140 = vmul.f32 %v116, %v137
    %v142 = vlaneseq
    %v143 = vshrl.u32 %v142, 7
    %v144 = vsub.s32 0, %v143
    %v145 = vrot.slane %v97, %v144
    %v147 = vmul.f32 %v138, %v145
    %v148 = vmul.f32 %v139, %v145
    %v149 = vmul.f32 %v140, %v145
    %v151 = vlaneseq
    %v152 = vshrl.u32 %v151, 7
    %v153 = vsub.s32 0, %v152
    %v154 = vrot.slane %v98, %v153
    %v156 = vadd.f32 %v147, %v154
    %v157 = vadd.f32 %v148, %v154
    %v158 = vadd.f32 %v149, %v154
    %v159 = vld [vmem:[%s6] sm:$0xff]
    %v160 = vld [vmem:[%s6 + $0x8] sm:$0xff]
    %v161 = vld [vmem:[%s6 + $0x10] sm:$0xff]
    %v162 = vld [vmem:[%s6 + $0x18] sm:$0xff]
    %v163 = vld [vmem:[%s7] sm:$0x1]
    %v165 = vlaneseq
    %v166 = vshrl.u32 %v165, 7
    %v167 = vsub.s32 0, %v166
    %v168 = vrot.slane %v163, %v167
    %v171 = vsel %vm99, %v156, 0
    %v174 = vsel %vm99, %v157, 0
    %v177 = vsel %vm99, %v158, 0
    %179 = vmatprep.subr.mxu0 0.0
    %180 = vmatpush1.msra.mxu0 %v159
    %181 = vmatprep.subr.mxu0 0.0
    %182 = vmatpush1.msra.mxu0 %v160
    %183 = vmatprep.subr.mxu0 0.0
    %184 = vmatpush1.msra.mxu0 %v161
    %185 = vmatprep.subr.mxu0 0.0
    %186 = vmatpush1.msra.mxu0 %v162
    %187 = vmatprep.subr.mxu0 0.0
    %188 = vmatpush1.msra.mxu0 0.0
    %189 = vmatprep.subr.mxu0 0.0
    %190 = vmatpush1.msra.mxu0 0.0
    %191 = vmatprep.subr.mxu0 0.0
    %192 = vmatpush1.msra.mxu0 0.0
    %193 = vmatprep.subr.mxu0 0.0
    %194 = vmatpush1.msra.mxu0 0.0
    %195 = vmatprep.subr.mxu0 0.0
    %196 = vmatpush1.msra.mxu0 0.0
    %197 = vmatprep.subr.mxu0 0.0
    %198 = vmatpush1.msra.mxu0 0.0
    %199 = vmatprep.subr.mxu0 0.0
    %200 = vmatpush1.msra.mxu0 0.0
    %201 = vmatprep.subr.mxu0 0.0
    %202 = vmatpush1.msra.mxu0 0.0
    %203 = vmatprep.subr.mxu0 0.0
    %204 = vmatpush1.msra.mxu0 0.0
    %205 = vmatprep.subr.mxu0 0.0
    %206 = vmatpush1.msra.mxu0 0.0
    %207 = vmatprep.subr.mxu0 0.0
    %208 = vmatpush1.msra.mxu0 0.0
    %209 = vmatprep.subr.mxu0 0.0
    %210 = vmatpush1.msra.mxu0 0.0
    %211 = vmatprep.subr.mxu0 0.0
    %212 = vmatpush1.msra.mxu0 0.0
    %213 = vmatprep.subr.mxu0 0.0
    %214 = vmatpush1.msra.mxu0 0.0
    %215 = vmatprep.subr.mxu0 0.0
    %216 = vmatpush1.msra.mxu0 0.0
    %217 = vmatprep.subr.mxu0 0.0
    %218 = vmatpush1.msra.mxu0 0.0
    %219 = vmatprep.subr.mxu0 0.0
    %220 = vmatpush1.msra.mxu0 0.0
    %221 = vmatprep.subr.mxu0 0.0
    %222 = vmatpush1.msra.mxu0 0.0
    %223 = vmatprep.subr.mxu0 0.0
    %224 = vmatpush1.msra.mxu0 0.0
    %225 = vmatprep.subr.mxu0 0.0
    %226 = vmatpush1.msra.mxu0 0.0
    %227 = vmatprep.subr.mxu0 0.0
    %228 = vmatpush1.msra.mxu0 0.0
    %229 = vmatprep.subr.mxu0 0.0
    %230 = vmatpush1.msra.mxu0 0.0
    %231 = vmatprep.subr.mxu0 0.0
    %232 = vmatpush1.msra.mxu0 0.0
    %233 = vmatprep.subr.mxu0 0.0
    %234 = vmatpush1.msra.mxu0 0.0
    %235 = vmatprep.subr.mxu0 0.0
    %236 = vmatpush1.msra.mxu0 0.0
    %237 = vmatprep.subr.mxu0 0.0
    %238 = vmatpush1.msra.mxu0 0.0
    %239 = vmatprep.subr.mxu0 0.0
    %240 = vmatpush1.msra.mxu0 0.0
    %241 = vmatprep.subr.mxu0 0.0
    %242 = vmatpush1.msra.mxu0 0.0
    %243 = vmatprep.mubr.f32.mxu0 0.0
    %244 = vmatmul.mubr.f32.gmra.mrb[0].mxu0 %v171
    %v245 = vpop.f32.mrb[0].mxu0
    %v246 = vadd.f32 %v168, %v245
    %v247 = vpop.f32.mrb[0].mxu0
    %248 = vmatprep.mubr.f32.mxu0 0.0
    %249 = vmatmul.mubr.f32.gmra.mrb[0].mxu0 %v174
    %v250 = vpop.f32.mrb[0].mxu0
    %v251 = vadd.f32 %v168, %v250
    %v252 = vpop.f32.mrb[0].mxu0
    %253 = vmatprep.mubr.f32.mxu0 0.0
    %254 = vmatmul.mubr.f32.gmra.mrb[0].mxu0 %v177
    %v255 = vpop.f32.mrb[0].mxu0
    %v256 = vadd.f32 %v168, %v255
    %v257 = vpop.f32.mrb[0].mxu0
    %258 = vdwg.mxu0
    %262 = vrot.lane.b32.xlu0 %v246, 124
    %v263 = vpop.permute.xlu0 %262
    %264 = vrot.lane.b32.xlu0 %v251, 124
    %v265 = vpop.permute.xlu0 %264
    %266 = vrot.lane.b32.xlu0 %v256, 124
    %v267 = vpop.permute.xlu0 %266
    %268 = vrot.lane.b32.xlu0 %v246, 120
    %v269 = vpop.permute.xlu0 %268
    %270 = vrot.lane.b32.xlu0 %v251, 120
    %v271 = vpop.permute.xlu0 %270
    %272 = vrot.lane.b32.xlu0 %v256, 120
    %v273 = vpop.permute.xlu0 %272
    %274 = vrot.lane.b32.xlu0 %v246, 116
    %v275 = vpop.permute.xlu0 %274
    %276 = vrot.lane.b32.xlu0 %v251, 116
    %v277 = vpop.permute.xlu0 %276
    %278 = vrot.lane.b32.xlu0 %v256, 116
    %v279 = vpop.permute.xlu0 %278
    %280 = vrot.lane.b32.xlu0 %v246, 112
    %v281 = vpop.permute.xlu0 %280
    %282 = vrot.lane.b32.xlu0 %v251, 112
    %v283 = vpop.permute.xlu0 %282
    %284 = vrot.lane.b32.xlu0 %v256, 112
    %v285 = vpop.permute.xlu0 %284
    %286 = vrot.lane.b32.xlu0 %v246, 108
    %v287 = vpop.permute.xlu0 %286
    %288 = vrot.lane.b32.xlu0 %v251, 108
    %v289 = vpop.permute.xlu0 %288
    %290 = vrot.lane.b32.xlu0 %v256, 108
    %v291 = vpop.permute.xlu0 %290
    %292 = vrot.lane.b32.xlu0 %v246, 104
    %v293 = vpop.permute.xlu0 %292
    %294 = vrot.lane.b32.xlu0 %v251, 104
    %v295 = vpop.permute.xlu0 %294
    %296 = vrot.lane.b32.xlu0 %v256, 104
    %v297 = vpop.permute.xlu0 %296
    %298 = vrot.lane.b32.xlu0 %v246, 100
    %v299 = vpop.permute.xlu0 %298
    %300 = vrot.lane.b32.xlu0 %v251, 100
    %v301 = vpop.permute.xlu0 %300
    %302 = vrot.lane.b32.xlu0 %v256, 100
    %v303 = vpop.permute.xlu0 %302
    %304 = vrot.lane.b32.xlu0 %v246, 96
    %v305 = vpop.permute.xlu0 %304
    %306 = vrot.lane.b32.xlu0 %v251, 96
    %v307 = vpop.permute.xlu0 %306
    %308 = vrot.lane.b32.xlu0 %v256, 96
    %v309 = vpop.permute.xlu0 %308
    %vm310 = vcmask 31744
    %v311 = vsel %vm310, %v246, 0
    %v313 = vsel %vm310, %v251, 0
    %v315 = vsel %vm310, %v256, 0
    %v317 = vsel %vm310, %v305, 0
    %v319 = vsel %vm310, %v307, 0
    %v321 = vsel %vm310, %v309, 0
    %323 = vmatprep.subr.mxu0 0.0
    %324 = vmatpush1.xpose.msra.mxu0 %v317
    %325 = vmatprep.subr.mxu0 0.0
    %326 = vmatpush1.xpose.msra.mxu0 %v319
    %327 = vmatprep.subr.mxu0 0.0
    %328 = vmatpush1.xpose.msra.mxu0 %v321
    %329 = vmatprep.subr.mxu0 0.0
    %330 = vmatpush1.xpose.msra.mxu0 0.0
    %331 = vmatprep.subr.mxu0 0.0
    %332 = vmatpush1.xpose.msra.mxu0 0.0
    %333 = vmatprep.subr.mxu0 0.0
    %334 = vmatpush1.xpose.msra.mxu0 0.0
    %335 = vmatprep.subr.mxu0 0.0
    %336 = vmatpush1.xpose.msra.mxu0 0.0
    %337 = vmatprep.subr.mxu0 0.0
    %338 = vmatpush1.xpose.msra.mxu0 0.0
    %339 = vmatprep.subr.mxu0 0.0
    %340 = vmatpush1.xpose.msra.mxu0 0.0
    %341 = vmatprep.subr.mxu0 0.0
    %342 = vmatpush1.xpose.msra.mxu0 0.0
    %343 = vmatprep.subr.mxu0 0.0
    %344 = vmatpush1.xpose.msra.mxu0 0.0
    %345 = vmatprep.subr.mxu0 0.0
    %346 = vmatpush1.xpose.msra.mxu0 0.0
    %347 = vmatprep.subr.mxu0 0.0
    %348 = vmatpush1.xpose.msra.mxu0 0.0
    %349 = vmatprep.subr.mxu0 0.0
    %350 = vmatpush1.xpose.msra.mxu0 0.0
    %351 = vmatprep.subr.mxu0 0.0
    %352 = vmatpush1.xpose.msra.mxu0 0.0
    %353 = vmatprep.subr.mxu0 0.0
    %354 = vmatpush1.xpose.msra.mxu0 0.0
    %355 = vmatprep.subr.mxu0 0.0
    %356 = vmatpush1.xpose.msra.mxu0 0.0
    %357 = vmatprep.subr.mxu0 0.0
    %358 = vmatpush1.xpose.msra.mxu0 0.0
    %359 = vmatprep.subr.mxu0 0.0
    %360 = vmatpush1.xpose.msra.mxu0 0.0
    %361 = vmatprep.subr.mxu0 0.0
    %362 = vmatpush1.xpose.msra.mxu0 0.0
    %363 = vmatprep.subr.mxu0 0.0
    %364 = vmatpush1.xpose.msra.mxu0 0.0
    %365 = vmatprep.subr.mxu0 0.0
    %366 = vmatpush1.xpose.msra.mxu0 0.0
    %367 = vmatprep.subr.mxu0 0.0
    %368 = vmatpush1.xpose.msra.mxu0 0.0
    %369 = vmatprep.subr.mxu0 0.0
    %370 = vmatpush1.xpose.msra.mxu0 0.0
    %371 = vmatprep.subr.mxu0 0.0
    %372 = vmatpush1.xpose.msra.mxu0 0.0
    %373 = vmatprep.subr.mxu0 0.0
    %374 = vmatpush1.xpose.msra.mxu0 0.0
    %375 = vmatprep.subr.mxu0 0.0
    %376 = vmatpush1.xpose.msra.mxu0 0.0
    %377 = vmatprep.subr.mxu0 0.0
    %378 = vmatpush1.xpose.msra.mxu0 0.0
    %379 = vmatprep.subr.mxu0 0.0
    %380 = vmatpush1.xpose.msra.mxu0 0.0
    %381 = vmatprep.subr.mxu0 0.0
    %382 = vmatpush1.xpose.msra.mxu0 0.0
    %383 = vmatprep.subr.mxu0 0.0
    %384 = vmatpush1.xpose.msra.mxu0 0.0
    %385 = vmatprep.subr.mxu0 0.0
    %386 = vmatpush1.xpose.msra.mxu0 0.0
    %387 = vmatprep.mubr.f32.mxu0 0.0
    %388 = vmatmul.mubr.f32.gmra.mrb[0].mxu0 %v311
    %v389 = vpop.f32.mrb[0].mxu0
    %v390 = vadd.f32 %v94, %v389
    %v391 = vpop.f32.mrb[0].mxu0
    %392 = vmatprep.mubr.f32.mxu0 0.0
    %393 = vmatmul.mubr.f32.gmra.mrb[0].mxu0 %v313
    %v394 = vpop.f32.mrb[0].mxu0
    %v395 = vadd.f32 %v95, %v394
    %v396 = vpop.f32.mrb[0].mxu0
    %397 = vmatprep.mubr.f32.mxu0 0.0
    %398 = vmatmul.mubr.f32.gmra.mrb[0].mxu0 %v315
    %v399 = vpop.f32.mrb[0].mxu0
    %v400 = vadd.f32 %v96, %v399
    %v401 = vpop.f32.mrb[0].mxu0
    %402 = vdwg.mxu0
    %403 = vrot.lane.b32.xlu0 %v263, 96
    %v404 = vpop.permute.xlu0 %403
    %405 = vrot.lane.b32.xlu0 %v265, 96
    %v406 = vpop.permute.xlu0 %405
    %407 = vrot.lane.b32.xlu0 %v267, 96
    %v408 = vpop.permute.xlu0 %407
    %v409 = vsel %vm310, %v263, 0
    %v411 = vsel %vm310, %v265, 0
    %v413 = vsel %vm310, %v267, 0
    %v415 = vsel %vm310, %v404, 0
    %v417 = vsel %vm310, %v406, 0
    %v419 = vsel %vm310, %v408, 0
    %421 = vmatprep.subr.mxu0 0.0
    %422 = vmatpush1.xpose.msra.mxu0 %v415
    %423 = vmatprep.subr.mxu0 0.0
    %424 = vmatpush1.xpose.msra.mxu0 %v417
    %425 = vmatprep.subr.mxu0 0.0
    %426 = vmatpush1.xpose.msra.mxu0 %v419
    %427 = vmatprep.subr.mxu0 0.0
    %428 = vmatpush1.xpose.msra.mxu0 0.0
    %429 = vmatprep.subr.mxu0 0.0
    %430 = vmatpush1.xpose.msra.mxu0 0.0
    %431 = vmatprep.subr.mxu0 0.0
    %432 = vmatpush1.xpose.msra.mxu0 0.0
    %433 = vmatprep.subr.mxu0 0.0
    %434 = vmatpush1.xpose.msra.mxu0 0.0
    %435 = vmatprep.subr.mxu0 0.0
    %436 = vmatpush1.xpose.msra.mxu0 0.0
    %437 = vmatprep.subr.mxu0 0.0
    %438 = vmatpush1.xpose.msra.mxu0 0.0
    %439 = vmatprep.subr.mxu0 0.0
    %440 = vmatpush1.xpose.msra.mxu0 0.0
    %441 = vmatprep.subr.mxu0 0.0
    %442 = vmatpush1.xpose.msra.mxu0 0.0
    %443 = vmatprep.subr.mxu0 0.0
    %444 = vmatpush1.xpose.msra.mxu0 0.0
    %445 = vmatprep.subr.mxu0 0.0
    %446 = vmatpush1.xpose.msra.mxu0 0.0
    %447 = vmatprep.subr.mxu0 0.0
    %448 = vmatpush1.xpose.msra.mxu0 0.0
    %449 = vmatprep.subr.mxu0 0.0
    %450 = vmatpush1.xpose.msra.mxu0 0.0
    %451 = vmatprep.subr.mxu0 0.0
    %452 = vmatpush1.xpose.msra.mxu0 0.0
    %453 = vmatprep.subr.mxu0 0.0
    %454 = vmatpush1.xpose.msra.mxu0 0.0
    %455 = vmatprep.subr.mxu0 0.0
    %456 = vmatpush1.xpose.msra.mxu0 0.0
    %457 = vmatprep.subr.mxu0 0.0
    %458 = vmatpush1.xpose.msra.mxu0 0.0
    %459 = vmatprep.subr.mxu0 0.0
    %460 = vmatpush1.xpose.msra.mxu0 0.0
    %461 = vmatprep.subr.mxu0 0.0
    %462 = vmatpush1.xpose.msra.mxu0 0.0
    %463 = vmatprep.subr.mxu0 0.0
    %464 = vmatpush1.xpose.msra.mxu0 0.0
    %465 = vmatprep.subr.mxu0 0.0
    %466 = vmatpush1.xpose.msra.mxu0 0.0
    %467 = vmatprep.subr.mxu0 0.0
    %468 = vmatpush1.xpose.msra.mxu0 0.0
    %469 = vmatprep.subr.mxu0 0.0
    %470 = vmatpush1.xpose.msra.mxu0 0.0
    %471 = vmatprep.subr.mxu0 0.0
    %472 = vmatpush1.xpose.msra.mxu0 0.0
    %473 = vmatprep.subr.mxu0 0.0
    %474 = vmatpush1.xpose.msra.mxu0 0.0
    %475 = vmatprep.subr.mxu0 0.0
    %476 = vmatpush1.xpose.msra.mxu0 0.0
    %477 = vmatprep.subr.mxu0 0.0
    %478 = vmatpush1.xpose.msra.mxu0 0.0
    %479 = vmatprep.subr.mxu0 0.0
    %480 = vmatpush1.xpose.msra.mxu0 0.0
    %481 = vmatprep.subr.mxu0 0.0
    %482 = vmatpush1.xpose.msra.mxu0 0.0
    %483 = vmatprep.subr.mxu0 0.0
    %484 = vmatpush1.xpose.msra.mxu0 0.0
    %485 = vmatprep.mubr.f32.mxu0 0.0
    %486 = vmatmul.mubr.f32.gmra.mrb[0].mxu0 %v409
    %v487 = vpop.f32.mrb[0].mxu0
    %v488 = vadd.f32 %v94, %v487
    %v489 = vpop.f32.mrb[0].mxu0
    %490 = vmatprep.mubr.f32.mxu0 0.0
    %491 = vmatmul.mubr.f32.gmra.mrb[0].mxu0 %v411
    %v492 = vpop.f32.mrb[0].mxu0
    %v493 = vadd.f32 %v95, %v492
    %v494 = vpop.f32.mrb[0].mxu0
    %495 = vmatprep.mubr.f32.mxu0 0.0
    %496 = vmatmul.mubr.f32.gmra.mrb[0].mxu0 %v413
    %v497 = vpop.f32.mrb[0].mxu0
    %v498 = vadd.f32 %v96, %v497
    %v499 = vpop.f32.mrb[0].mxu0
    %500 = vdwg.mxu0
    %501 = vrot.lane.b32.xlu0 %v269, 96
    %v502 = vpop.permute.xlu0 %501
    %503 = vrot.lane.b32.xlu0 %v271, 96
    %v504 = vpop.permute.xlu0 %503
    %505 = vrot.lane.b32.xlu0 %v273, 96
    %v506 = vpop.permute.xlu0 %505
    %v507 = vsel %vm310, %v269, 0
    %v509 = vsel %vm310, %v271, 0
    %v511 = vsel %vm310, %v273, 0
    %v513 = vsel %vm310, %v502, 0
    %v515 = vsel %vm310, %v504, 0
    %v517 = vsel %vm310, %v506, 0
    %519 = vmatprep.subr.mxu0 0.0
    %520 = vmatpush1.xpose.msra.mxu0 %v513
    %521 = vmatprep.subr.mxu0 0.0
    %522 = vmatpush1.xpose.msra.mxu0 %v515
    %523 = vmatprep.subr.mxu0 0.0
    %524 = vmatpush1.xpose.msra.mxu0 %v517
    %525 = vmatprep.subr.mxu0 0.0
    %526 = vmatpush1.xpose.msra.mxu0 0.0
    %527 = vmatprep.subr.mxu0 0.0
    %528 = vmatpush1.xpose.msra.mxu0 0.0
    %529 = vmatprep.subr.mxu0 0.0
    %530 = vmatpush1.xpose.msra.mxu0 0.0
    %531 = vmatprep.subr.mxu0 0.0
    %532 = vmatpush1.xpose.msra.mxu0 0.0
    %533 = vmatprep.subr.mxu0 0.0
    %534 = vmatpush1.xpose.msra.mxu0 0.0
    %535 = vmatprep.subr.mxu0 0.0
    %536 = vmatpush1.xpose.msra.mxu0 0.0
    %537 = vmatprep.subr.mxu0 0.0
    %538 = vmatpush1.xpose.msra.mxu0 0.0
    %539 = vmatprep.subr.mxu0 0.0
    %540 = vmatpush1.xpose.msra.mxu0 0.0
    %541 = vmatprep.subr.mxu0 0.0
    %542 = vmatpush1.xpose.msra.mxu0 0.0
    %543 = vmatprep.subr.mxu0 0.0
    %544 = vmatpush1.xpose.msra.mxu0 0.0
    %545 = vmatprep.subr.mxu0 0.0
    %546 = vmatpush1.xpose.msra.mxu0 0.0
    %547 = vmatprep.subr.mxu0 0.0
    %548 = vmatpush1.xpose.msra.mxu0 0.0
    %549 = vmatprep.subr.mxu0 0.0
    %550 = vmatpush1.xpose.msra.mxu0 0.0
    %551 = vmatprep.subr.mxu0 0.0
    %552 = vmatpush1.xpose.msra.mxu0 0.0
    %553 = vmatprep.subr.mxu0 0.0
    %554 = vmatpush1.xpose.msra.mxu0 0.0
    %555 = vmatprep.subr.mxu0 0.0
    %556 = vmatpush1.xpose.msra.mxu0 0.0
    %557 = vmatprep.subr.mxu0 0.0
    %558 = vmatpush1.xpose.msra.mxu0 0.0
    %559 = vmatprep.subr.mxu0 0.0
    %560 = vmatpush1.xpose.msra.mxu0 0.0
    %561 = vmatprep.subr.mxu0 0.0
    %562 = vmatpush1.xpose.msra.mxu0 0.0
    %563 = vmatprep.subr.mxu0 0.0
    %564 = vmatpush1.xpose.msra.mxu0 0.0
    %565 = vmatprep.subr.mxu0 0.0
    %566 = vmatpush1.xpose.msra.mxu0 0.0
    %567 = vmatprep.subr.mxu0 0.0
    %568 = vmatpush1.xpose.msra.mxu0 0.0
    %569 = vmatprep.subr.mxu0 0.0
    %570 = vmatpush1.xpose.msra.mxu0 0.0
    %571 = vmatprep.subr.mxu0 0.0
    %572 = vmatpush1.xpose.msra.mxu0 0.0
    %573 = vmatprep.subr.mxu0 0.0
    %574 = vmatpush1.xpose.msra.mxu0 0.0
    %575 = vmatprep.subr.mxu0 0.0
    %576 = vmatpush1.xpose.msra.mxu0 0.0
    %577 = vmatprep.subr.mxu0 0.0
    %578 = vmatpush1.xpose.msra.mxu0 0.0
    %579 = vmatprep.subr.mxu0 0.0
    %580 = vmatpush1.xpose.msra.mxu0 0.0
    %581 = vmatprep.subr.mxu0 0.0
    %582 = vmatpush1.xpose.msra.mxu0 0.0
    %583 = vmatprep.mubr.f32.mxu0 0.0
    %584 = vmatmul.mubr.f32.gmra.mrb[0].mxu0 %v507
    %v585 = vpop.f32.mrb[0].mxu0
    %v586 = vadd.f32 %v94, %v585
    %v587 = vpop.f32.mrb[0].mxu0
    %588 = vmatprep.mubr.f32.mxu0 0.0
    %589 = vmatmul.mubr.f32.gmra.mrb[0].mxu0 %v509
    %v590 = vpop.f32.mrb[0].mxu0
    %v591 = vadd.f32 %v95, %v590
    %v592 = vpop.f32.mrb[0].mxu0
    %593 = vmatprep.mubr.f32.mxu0 0.0
    %594 = vmatmul.mubr.f32.gmra.mrb[0].mxu0 %v511
    %v595 = vpop.f32.mrb[0].mxu0
    %v596 = vadd.f32 %v96, %v595
    %v597 = vpop.f32.mrb[0].mxu0
    %598 = vdwg.mxu0
    %599 = vrot.lane.b32.xlu0 %v275, 96
    %v600 = vpop.permute.xlu0 %599
    %601 = vrot.lane.b32.xlu0 %v277, 96
    %v602 = vpop.permute.xlu0 %601
    %603 = vrot.lane.b32.xlu0 %v279, 96
    %v604 = vpop.permute.xlu0 %603
    %v605 = vsel %vm310, %v275, 0
    %v607 = vsel %vm310, %v277, 0
    %v609 = vsel %vm310, %v279, 0
    %v611 = vsel %vm310, %v600, 0
    %v613 = vsel %vm310, %v602, 0
    %v615 = vsel %vm310, %v604, 0
    %617 = vmatprep.subr.mxu0 0.0
    %618 = vmatpush1.xpose.msra.mxu0 %v611
    %619 = vmatprep.subr.mxu0 0.0
    %620 = vmatpush1.xpose.msra.mxu0 %v613
    %621 = vmatprep.subr.mxu0 0.0
    %622 = vmatpush1.xpose.msra.mxu0 %v615
    %623 = vmatprep.subr.mxu0 0.0
    %624 = vmatpush1.xpose.msra.mxu0 0.0
    %625 = vmatprep.subr.mxu0 0.0
    %626 = vmatpush1.xpose.msra.mxu0 0.0
    %627 = vmatprep.subr.mxu0 0.0
    %628 = vmatpush1.xpose.msra.mxu0 0.0
    %629 = vmatprep.subr.mxu0 0.0
    %630 = vmatpush1.xpose.msra.mxu0 0.0
    %631 = vmatprep.subr.mxu0 0.0
    %632 = vmatpush1.xpose.msra.mxu0 0.0
    %633 = vmatprep.subr.mxu0 0.0
    %634 = vmatpush1.xpose.msra.mxu0 0.0
    %635 = vmatprep.subr.mxu0 0.0
    %636 = vmatpush1.xpose.msra.mxu0 0.0
    %637 = vmatprep.subr.mxu0 0.0
    %638 = vmatpush1.xpose.msra.mxu0 0.0
    %639 = vmatprep.subr.mxu0 0.0
    %640 = vmatpush1.xpose.msra.mxu0 0.0
    %641 = vmatprep.subr.mxu0 0.0
    %642 = vmatpush1.xpose.msra.mxu0 0.0
    %643 = vmatprep.subr.mxu0 0.0
    %644 = vmatpush1.xpose.msra.mxu0 0.0
    %645 = vmatprep.subr.mxu0 0.0
    %646 = vmatpush1.xpose.msra.mxu0 0.0
    %647 = vmatprep.subr.mxu0 0.0
    %648 = vmatpush1.xpose.msra.mxu0 0.0
    %649 = vmatprep.subr.mxu0 0.0
    %650 = vmatpush1.xpose.msra.mxu0 0.0
    %651 = vmatprep.subr.mxu0 0.0
    %652 = vmatpush1.xpose.msra.mxu0 0.0
    %653 = vmatprep.subr.mxu0 0.0
    %654 = vmatpush1.xpose.msra.mxu0 0.0
    %655 = vmatprep.subr.mxu0 0.0
    %656 = vmatpush1.xpose.msra.mxu0 0.0
    %657 = vmatprep.subr.mxu0 0.0
    %658 = vmatpush1.xpose.msra.mxu0 0.0
    %659 = vmatprep.subr.mxu0 0.0
    %660 = vmatpush1.xpose.msra.mxu0 0.0
    %661 = vmatprep.subr.mxu0 0.0
    %662 = vmatpush1.xpose.msra.mxu0 0.0
    %663 = vmatprep.subr.mxu0 0.0
    %664 = vmatpush1.xpose.msra.mxu0 0.0
    %665 = vmatprep.subr.mxu0 0.0
    %666 = vmatpush1.xpose.msra.mxu0 0.0
    %667 = vmatprep.subr.mxu0 0.0
    %668 = vmatpush1.xpose.msra.mxu0 0.0
    %669 = vmatprep.subr.mxu0 0.0
    %670 = vmatpush1.xpose.msra.mxu0 0.0
    %671 = vmatprep.subr.mxu0 0.0
    %672 = vmatpush1.xpose.msra.mxu0 0.0
    %673 = vmatprep.subr.mxu0 0.0
    %674 = vmatpush1.xpose.msra.mxu0 0.0
    %675 = vmatprep.subr.mxu0 0.0
    %676 = vmatpush1.xpose.msra.mxu0 0.0
    %677 = vmatprep.subr.mxu0 0.0
    %678 = vmatpush1.xpose.msra.mxu0 0.0
    %679 = vmatprep.subr.mxu0 0.0
    %680 = vmatpush1.xpose.msra.mxu0 0.0
    %681 = vmatprep.mubr.f32.mxu0 0.0
    %682 = vmatmul.mubr.f32.gmra.mrb[0].mxu0 %v605
    %v683 = vpop.f32.mrb[0].mxu0
    %v684 = vadd.f32 %v94, %v683
    %v685 = vpop.f32.mrb[0].mxu0
    %686 = vmatprep.mubr.f32.mxu0 0.0
    %687 = vmatmul.mubr.f32.gmra.mrb[0].mxu0 %v607
    %v688 = vpop.f32.mrb[0].mxu0
    %v689 = vadd.f32 %v95, %v688
    %v690 = vpop.f32.mrb[0].mxu0
    %691 = vmatprep.mubr.f32.mxu0 0.0
    %692 = vmatmul.mubr.f32.gmra.mrb[0].mxu0 %v609
    %v693 = vpop.f32.mrb[0].mxu0
    %v694 = vadd.f32 %v96, %v693
    %v695 = vpop.f32.mrb[0].mxu0
    %696 = vdwg.mxu0
    %697 = vrot.lane.b32.xlu0 %v281, 96
    %v698 = vpop.permute.xlu0 %697
    %699 = vrot.lane.b32.xlu0 %v283, 96
    %v700 = vpop.permute.xlu0 %699
    %701 = vrot.lane.b32.xlu0 %v285, 96
    %v702 = vpop.permute.xlu0 %701
    %v703 = vsel %vm310, %v281, 0
    %v705 = vsel %vm310, %v283, 0
    %v707 = vsel %vm310, %v285, 0
    %v709 = vsel %vm310, %v698, 0
    %v711 = vsel %vm310, %v700, 0
    %v713 = vsel %vm310, %v702, 0
    %715 = vmatprep.subr.mxu0 0.0
    %716 = vmatpush1.xpose.msra.mxu0 %v709
    %717 = vmatprep.subr.mxu0 0.0
    %718 = vmatpush1.xpose.msra.mxu0 %v711
    %719 = vmatprep.subr.mxu0 0.0
    %720 = vmatpush1.xpose.msra.mxu0 %v713
    %721 = vmatprep.subr.mxu0 0.0
    %722 = vmatpush1.xpose.msra.mxu0 0.0
    %723 = vmatprep.subr.mxu0 0.0
    %724 = vmatpush1.xpose.msra.mxu0 0.0
    %725 = vmatprep.subr.mxu0 0.0
    %726 = vmatpush1.xpose.msra.mxu0 0.0
    %727 = vmatprep.subr.mxu0 0.0
    %728 = vmatpush1.xpose.msra.mxu0 0.0
    %729 = vmatprep.subr.mxu0 0.0
    %730 = vmatpush1.xpose.msra.mxu0 0.0
    %731 = vmatprep.subr.mxu0 0.0
    %732 = vmatpush1.xpose.msra.mxu0 0.0
    %733 = vmatprep.subr.mxu0 0.0
    %734 = vmatpush1.xpose.msra.mxu0 0.0
    %735 = vmatprep.subr.mxu0 0.0
    %736 = vmatpush1.xpose.msra.mxu0 0.0
    %737 = vmatprep.subr.mxu0 0.0
    %738 = vmatpush1.xpose.msra.mxu0 0.0
    %739 = vmatprep.subr.mxu0 0.0
    %740 = vmatpush1.xpose.msra.mxu0 0.0
    %741 = vmatprep.subr.mxu0 0.0
    %742 = vmatpush1.xpose.msra.mxu0 0.0
    %743 = vmatprep.subr.mxu0 0.0
    %744 = vmatpush1.xpose.msra.mxu0 0.0
    %745 = vmatprep.subr.mxu0 0.0
    %746 = vmatpush1.xpose.msra.mxu0 0.0
    %747 = vmatprep.subr.mxu0 0.0
    %748 = vmatpush1.xpose.msra.mxu0 0.0
    %749 = vmatprep.subr.mxu0 0.0
    %750 = vmatpush1.xpose.msra.mxu0 0.0
    %751 = vmatprep.subr.mxu0 0.0
    %752 = vmatpush1.xpose.msra.mxu0 0.0
    %753 = vmatprep.subr.mxu0 0.0
    %754 = vmatpush1.xpose.msra.mxu0 0.0
    %755 = vmatprep.subr.mxu0 0.0
    %756 = vmatpush1.xpose.msra.mxu0 0.0
    %757 = vmatprep.subr.mxu0 0.0
    %758 = vmatpush1.xpose.msra.mxu0 0.0
    %759 = vmatprep.subr.mxu0 0.0
    %760 = vmatpush1.xpose.msra.mxu0 0.0
    %761 = vmatprep.subr.mxu0 0.0
    %762 = vmatpush1.xpose.msra.mxu0 0.0
    %763 = vmatprep.subr.mxu0 0.0
    %764 = vmatpush1.xpose.msra.mxu0 0.0
    %765 = vmatprep.subr.mxu0 0.0
    %766 = vmatpush1.xpose.msra.mxu0 0.0
    %767 = vmatprep.subr.mxu0 0.0
    %768 = vmatpush1.xpose.msra.mxu0 0.0
    %769 = vmatprep.subr.mxu0 0.0
    %770 = vmatpush1.xpose.msra.mxu0 0.0
    %771 = vmatprep.subr.mxu0 0.0
    %772 = vmatpush1.xpose.msra.mxu0 0.0
    %773 = vmatprep.subr.mxu0 0.0
    %774 = vmatpush1.xpose.msra.mxu0 0.0
    %775 = vmatprep.subr.mxu0 0.0
    %776 = vmatpush1.xpose.msra.mxu0 0.0
    %777 = vmatprep.subr.mxu0 0.0
    %778 = vmatpush1.xpose.msra.mxu0 0.0
    %779 = vmatprep.mubr.f32.mxu0 0.0
    %780 = vmatmul.mubr.f32.gmra.mrb[0].mxu0 %v703
    %v781 = vpop.f32.mrb[0].mxu0
    %v782 = vadd.f32 %v94, %v781
    %v783 = vpop.f32.mrb[0].mxu0
    %784 = vmatprep.mubr.f32.mxu0 0.0
    %785 = vmatmul.mubr.f32.gmra.mrb[0].mxu0 %v705
    %v786 = vpop.f32.mrb[0].mxu0
    %v787 = vadd.f32 %v95, %v786
    %v788 = vpop.f32.mrb[0].mxu0
    %789 = vmatprep.mubr.f32.mxu0 0.0
    %790 = vmatmul.mubr.f32.gmra.mrb[0].mxu0 %v707
    %v791 = vpop.f32.mrb[0].mxu0
    %v792 = vadd.f32 %v96, %v791
    %v793 = vpop.f32.mrb[0].mxu0
    %794 = vdwg.mxu0
    %795 = vrot.lane.b32.xlu0 %v287, 96
    %v796 = vpop.permute.xlu0 %795
    %797 = vrot.lane.b32.xlu0 %v289, 96
    %v798 = vpop.permute.xlu0 %797
    %799 = vrot.lane.b32.xlu0 %v291, 96
    %v800 = vpop.permute.xlu0 %799
    %v801 = vsel %vm310, %v287, 0
    %v803 = vsel %vm310, %v289, 0
    %v805 = vsel %vm310, %v291, 0
    %v807 = vsel %vm310, %v796, 0
    %v809 = vsel %vm310, %v798, 0
    %v811 = vsel %vm310, %v800, 0
    %813 = vmatprep.subr.mxu0 0.0
    %814 = vmatpush1.xpose.msra.mxu0 %v807
    %815 = vmatprep.subr.mxu0 0.0
    %816 = vmatpush1.xpose.msra.mxu0 %v809
    %817 = vmatprep.subr.mxu0 0.0
    %818 = vmatpush1.xpose.msra.mxu0 %v811
    %819 = vmatprep.subr.mxu0 0.0
    %820 = vmatpush1.xpose.msra.mxu0 0.0
    %821 = vmatprep.subr.mxu0 0.0
    %822 = vmatpush1.xpose.msra.mxu0 0.0
    %823 = vmatprep.subr.mxu0 0.0
    %824 = vmatpush1.xpose.msra.mxu0 0.0
    %825 = vmatprep.subr.mxu0 0.0
    %826 = vmatpush1.xpose.msra.mxu0 0.0
    %827 = vmatprep.subr.mxu0 0.0
    %828 = vmatpush1.xpose.msra.mxu0 0.0
    %829 = vmatprep.subr.mxu0 0.0
    %830 = vmatpush1.xpose.msra.mxu0 0.0
    %831 = vmatprep.subr.mxu0 0.0
    %832 = vmatpush1.xpose.msra.mxu0 0.0
    %833 = vmatprep.subr.mxu0 0.0
    %834 = vmatpush1.xpose.msra.mxu0 0.0
    %835 = vmatprep.subr.mxu0 0.0
    %836 = vmatpush1.xpose.msra.mxu0 0.0
    %837 = vmatprep.subr.mxu0 0.0
    %838 = vmatpush1.xpose.msra.mxu0 0.0
    %839 = vmatprep.subr.mxu0 0.0
    %840 = vmatpush1.xpose.msra.mxu0 0.0
    %841 = vmatprep.subr.mxu0 0.0
    %842 = vmatpush1.xpose.msra.mxu0 0.0
    %843 = vmatprep.subr.mxu0 0.0
    %844 = vmatpush1.xpose.msra.mxu0 0.0
    %845 = vmatprep.subr.mxu0 0.0
    %846 = vmatpush1.xpose.msra.mxu0 0.0
    %847 = vmatprep.subr.mxu0 0.0
    %848 = vmatpush1.xpose.msra.mxu0 0.0
    %849 = vmatprep.subr.mxu0 0.0
    %850 = vmatpush1.xpose.msra.mxu0 0.0
    %851 = vmatprep.subr.mxu0 0.0
    %852 = vmatpush1.xpose.msra.mxu0 0.0
    %853 = vmatprep.subr.mxu0 0.0
    %854 = vmatpush1.xpose.msra.mxu0 0.0
    %855 = vmatprep.subr.mxu0 0.0
    %856 = vmatpush1.xpose.msra.mxu0 0.0
    %857 = vmatprep.subr.mxu0 0.0
    %858 = vmatpush1.xpose.msra.mxu0 0.0
    %859 = vmatprep.subr.mxu0 0.0
    %860 = vmatpush1.xpose.msra.mxu0 0.0
    %861 = vmatprep.subr.mxu0 0.0
    %862 = vmatpush1.xpose.msra.mxu0 0.0
    %863 = vmatprep.subr.mxu0 0.0
    %864 = vmatpush1.xpose.msra.mxu0 0.0
    %865 = vmatprep.subr.mxu0 0.0
    %866 = vmatpush1.xpose.msra.mxu0 0.0
    %867 = vmatprep.subr.mxu0 0.0
    %868 = vmatpush1.xpose.msra.mxu0 0.0
    %869 = vmatprep.subr.mxu0 0.0
    %870 = vmatpush1.xpose.msra.mxu0 0.0
    %871 = vmatprep.subr.mxu0 0.0
    %872 = vmatpush1.xpose.msra.mxu0 0.0
    %873 = vmatprep.subr.mxu0 0.0
    %874 = vmatpush1.xpose.msra.mxu0 0.0
    %875 = vmatprep.subr.mxu0 0.0
    %876 = vmatpush1.xpose.msra.mxu0 0.0
    %877 = vmatprep.mubr.f32.mxu0 0.0
    %878 = vmatmul.mubr.f32.gmra.mrb[0].mxu0 %v801
    %v879 = vpop.f32.mrb[0].mxu0
    %v880 = vadd.f32 %v94, %v879
    %v881 = vpop.f32.mrb[0].mxu0
    %882 = vmatprep.mubr.f32.mxu0 0.0
    %883 = vmatmul.mubr.f32.gmra.mrb[0].mxu0 %v803
    %v884 = vpop.f32.mrb[0].mxu0
    %v885 = vadd.f32 %v95, %v884
    %v886 = vpop.f32.mrb[0].mxu0
    %887 = vmatprep.mubr.f32.mxu0 0.0
    %888 = vmatmul.mubr.f32.gmra.mrb[0].mxu0 %v805
    %v889 = vpop.f32.mrb[0].mxu0
    %v890 = vadd.f32 %v96, %v889
    %v891 = vpop.f32.mrb[0].mxu0
    %892 = vdwg.mxu0
    %893 = vrot.lane.b32.xlu0 %v293, 96
    %v894 = vpop.permute.xlu0 %893
    %895 = vrot.lane.b32.xlu0 %v295, 96
    %v896 = vpop.permute.xlu0 %895
    %897 = vrot.lane.b32.xlu0 %v297, 96
    %v898 = vpop.permute.xlu0 %897
    %v899 = vsel %vm310, %v293, 0
    %v901 = vsel %vm310, %v295, 0
    %v903 = vsel %vm310, %v297, 0
    %v905 = vsel %vm310, %v894, 0
    %v907 = vsel %vm310, %v896, 0
    %v909 = vsel %vm310, %v898, 0
    %911 = vmatprep.subr.mxu0 0.0
    %912 = vmatpush1.xpose.msra.mxu0 %v905
    %913 = vmatprep.subr.mxu0 0.0
    %914 = vmatpush1.xpose.msra.mxu0 %v907
    %915 = vmatprep.subr.mxu0 0.0
    %916 = vmatpush1.xpose.msra.mxu0 %v909
    %917 = vmatprep.subr.mxu0 0.0
    %918 = vmatpush1.xpose.msra.mxu0 0.0
    %919 = vmatprep.subr.mxu0 0.0
    %920 = vmatpush1.xpose.msra.mxu0 0.0
    %921 = vmatprep.subr.mxu0 0.0
    %922 = vmatpush1.xpose.msra.mxu0 0.0
    %923 = vmatprep.subr.mxu0 0.0
    %924 = vmatpush1.xpose.msra.mxu0 0.0
    %925 = vmatprep.subr.mxu0 0.0
    %926 = vmatpush1.xpose.msra.mxu0 0.0
    %927 = vmatprep.subr.mxu0 0.0
    %928 = vmatpush1.xpose.msra.mxu0 0.0
    %929 = vmatprep.subr.mxu0 0.0
    %930 = vmatpush1.xpose.msra.mxu0 0.0
    %931 = vmatprep.subr.mxu0 0.0
    %932 = vmatpush1.xpose.msra.mxu0 0.0
    %933 = vmatprep.subr.mxu0 0.0
    %934 = vmatpush1.xpose.msra.mxu0 0.0
    %935 = vmatprep.subr.mxu0 0.0
    %936 = vmatpush1.xpose.msra.mxu0 0.0
    %937 = vmatprep.subr.mxu0 0.0
    %938 = vmatpush1.xpose.msra.mxu0 0.0
    %939 = vmatprep.subr.mxu0 0.0
    %940 = vmatpush1.xpose.msra.mxu0 0.0
    %941 = vmatprep.subr.mxu0 0.0
    %942 = vmatpush1.xpose.msra.mxu0 0.0
    %943 = vmatprep.subr.mxu0 0.0
    %944 = vmatpush1.xpose.msra.mxu0 0.0
    %945 = vmatprep.subr.mxu0 0.0
    %946 = vmatpush1.xpose.msra.mxu0 0.0
    %947 = vmatprep.subr.mxu0 0.0
    %948 = vmatpush1.xpose.msra.mxu0 0.0
    %949 = vmatprep.subr.mxu0 0.0
    %950 = vmatpush1.xpose.msra.mxu0 0.0
    %951 = vmatprep.subr.mxu0 0.0
    %952 = vmatpush1.xpose.msra.mxu0 0.0
    %953 = vmatprep.subr.mxu0 0.0
    %954 = vmatpush1.xpose.msra.mxu0 0.0
    %955 = vmatprep.subr.mxu0 0.0
    %956 = vmatpush1.xpose.msra.mxu0 0.0
    %957 = vmatprep.subr.mxu0 0.0
    %958 = vmatpush1.xpose.msra.mxu0 0.0
    %959 = vmatprep.subr.mxu0 0.0
    %960 = vmatpush1.xpose.msra.mxu0 0.0
    %961 = vmatprep.subr.mxu0 0.0
    %962 = vmatpush1.xpose.msra.mxu0 0.0
    %963 = vmatprep.subr.mxu0 0.0
    %964 = vmatpush1.xpose.msra.mxu0 0.0
    %965 = vmatprep.subr.mxu0 0.0
    %966 = vmatpush1.xpose.msra.mxu0 0.0
    %967 = vmatprep.subr.mxu0 0.0
    %968 = vmatpush1.xpose.msra.mxu0 0.0
    %969 = vmatprep.subr.mxu0 0.0
    %970 = vmatpush1.xpose.msra.mxu0 0.0
    %971 = vmatprep.subr.mxu0 0.0
    %972 = vmatpush1.xpose.msra.mxu0 0.0
    %973 = vmatprep.subr.mxu0 0.0
    %974 = vmatpush1.xpose.msra.mxu0 0.0
    %975 = vmatprep.mubr.f32.mxu0 0.0
    %976 = vmatmul.mubr.f32.gmra.mrb[0].mxu0 %v899
    %v977 = vpop.f32.mrb[0].mxu0
    %v978 = vadd.f32 %v94, %v977
    %v979 = vpop.f32.mrb[0].mxu0
    %980 = vmatprep.mubr.f32.mxu0 0.0
    %981 = vmatmul.mubr.f32.gmra.mrb[0].mxu0 %v901
    %v982 = vpop.f32.mrb[0].mxu0
    %v983 = vadd.f32 %v95, %v982
    %v984 = vpop.f32.mrb[0].mxu0
    %985 = vmatprep.mubr.f32.mxu0 0.0
    %986 = vmatmul.mubr.f32.gmra.mrb[0].mxu0 %v903
    %v987 = vpop.f32.mrb[0].mxu0
    %v988 = vadd.f32 %v96, %v987
    %v989 = vpop.f32.mrb[0].mxu0
    %990 = vdwg.mxu0
    %991 = vrot.lane.b32.xlu0 %v299, 96
    %v992 = vpop.permute.xlu0 %991
    %993 = vrot.lane.b32.xlu0 %v301, 96
    %v994 = vpop.permute.xlu0 %993
    %995 = vrot.lane.b32.xlu0 %v303, 96
    %v996 = vpop.permute.xlu0 %995
    %v997 = vsel %vm310, %v299, 0
    %v999 = vsel %vm310, %v301, 0
    %v1001 = vsel %vm310, %v303, 0
    %v1003 = vsel %vm310, %v992, 0
    %v1005 = vsel %vm310, %v994, 0
    %v1007 = vsel %vm310, %v996, 0
    %1009 = vmatprep.subr.mxu0 0.0
    %1010 = vmatpush1.xpose.msra.mxu0 %v1003
    %1011 = vmatprep.subr.mxu0 0.0
    %1012 = vmatpush1.xpose.msra.mxu0 %v1005
    %1013 = vmatprep.subr.mxu0 0.0
    %1014 = vmatpush1.xpose.msra.mxu0 %v1007
    %1015 = vmatprep.subr.mxu0 0.0
    %1016 = vmatpush1.xpose.msra.mxu0 0.0
    %1017 = vmatprep.subr.mxu0 0.0
    %1018 = vmatpush1.xpose.msra.mxu0 0.0
    %1019 = vmatprep.subr.mxu0 0.0
    %1020 = vmatpush1.xpose.msra.mxu0 0.0
    %1021 = vmatprep.subr.mxu0 0.0
    %1022 = vmatpush1.xpose.msra.mxu0 0.0
    %1023 = vmatprep.subr.mxu0 0.0
    %1024 = vmatpush1.xpose.msra.mxu0 0.0
    %1025 = vmatprep.subr.mxu0 0.0
    %1026 = vmatpush1.xpose.msra.mxu0 0.0
    %1027 = vmatprep.subr.mxu0 0.0
    %1028 = vmatpush1.xpose.msra.mxu0 0.0
    %1029 = vmatprep.subr.mxu0 0.0
    %1030 = vmatpush1.xpose.msra.mxu0 0.0
    %1031 = vmatprep.subr.mxu0 0.0
    %1032 = vmatpush1.xpose.msra.mxu0 0.0
    %1033 = vmatprep.subr.mxu0 0.0
    %1034 = vmatpush1.xpose.msra.mxu0 0.0
    %1035 = vmatprep.subr.mxu0 0.0
    %1036 = vmatpush1.xpose.msra.mxu0 0.0
    %1037 = vmatprep.subr.mxu0 0.0
    %1038 = vmatpush1.xpose.msra.mxu0 0.0
    %1039 = vmatprep.subr.mxu0 0.0
    %1040 = vmatpush1.xpose.msra.mxu0 0.0
    %1041 = vmatprep.subr.mxu0 0.0
    %1042 = vmatpush1.xpose.msra.mxu0 0.0
    %1043 = vmatprep.subr.mxu0 0.0
    %1044 = vmatpush1.xpose.msra.mxu0 0.0
    %1045 = vmatprep.subr.mxu0 0.0
    %1046 = vmatpush1.xpose.msra.mxu0 0.0
    %1047 = vmatprep.subr.mxu0 0.0
    %1048 = vmatpush1.xpose.msra.mxu0 0.0
    %1049 = vmatprep.subr.mxu0 0.0
    %1050 = vmatpush1.xpose.msra.mxu0 0.0
    %1051 = vmatprep.subr.mxu0 0.0
    %1052 = vmatpush1.xpose.msra.mxu0 0.0
    %1053 = vmatprep.subr.mxu0 0.0
    %1054 = vmatpush1.xpose.msra.mxu0 0.0
    %1055 = vmatprep.subr.mxu0 0.0
    %1056 = vmatpush1.xpose.msra.mxu0 0.0
    %1057 = vmatprep.subr.mxu0 0.0
    %1058 = vmatpush1.xpose.msra.mxu0 0.0
    %1059 = vmatprep.subr.mxu0 0.0
    %1060 = vmatpush1.xpose.msra.mxu0 0.0
    %1061 = vmatprep.subr.mxu0 0.0
    %1062 = vmatpush1.xpose.msra.mxu0 0.0
    %1063 = vmatprep.subr.mxu0 0.0
    %1064 = vmatpush1.xpose.msra.mxu0 0.0
    %1065 = vmatprep.subr.mxu0 0.0
    %1066 = vmatpush1.xpose.msra.mxu0 0.0
    %1067 = vmatprep.subr.mxu0 0.0
    %1068 = vmatpush1.xpose.msra.mxu0 0.0
    %1069 = vmatprep.subr.mxu0 0.0
    %1070 = vmatpush1.xpose.msra.mxu0 0.0
    %1071 = vmatprep.subr.mxu0 0.0
    %1072 = vmatpush1.xpose.msra.mxu0 0.0
    %1073 = vmatprep.mubr.f32.mxu0 0.0
    %1074 = vmatmul.mubr.f32.gmra.mrb[0].mxu0 %v997
    %v1075 = vpop.f32.mrb[0].mxu0
    %v1076 = vadd.f32 %v94, %v1075
    %v1077 = vpop.f32.mrb[0].mxu0
    %1078 = vmatprep.mubr.f32.mxu0 0.0
    %1079 = vmatmul.mubr.f32.gmra.mrb[0].mxu0 %v999
    %v1080 = vpop.f32.mrb[0].mxu0
    %v1081 = vadd.f32 %v95, %v1080
    %v1082 = vpop.f32.mrb[0].mxu0
    %1083 = vmatprep.mubr.f32.mxu0 0.0
    %1084 = vmatmul.mubr.f32.gmra.mrb[0].mxu0 %v1001
    %v1085 = vpop.f32.mrb[0].mxu0
    %v1086 = vadd.f32 %v96, %v1085
    %v1087 = vpop.f32.mrb[0].mxu0
    %1088 = vdwg.mxu0
    %vm1089 = vcmask 162816
    %v1090 = vsel %vm1089, %v390, -inf
    %1091 = vmax.xlane.f32.xlu0 %v1090
    %v1092 = vpop.xlane.xlu0 %1091
    %v1093 = vsel %vm1089, %v395, -inf
    %1094 = vmax.xlane.f32.xlu0 %v1093
    %v1095 = vpop.xlane.xlu0 %1094
    %vm1096 = vcmask 158720
    %v1097 = vsel %vm1096, %v400, -inf
    %1098 = vmax.xlane.f32.xlu0 %v1097
    %v1099 = vpop.xlane.xlu0 %1098
    %v1100 = vsel %vm1089, %v488, -inf
    %1101 = vmax.xlane.f32.xlu0 %v1100
    %v1102 = vpop.xlane.xlu0 %1101
    %v1103 = vsel %vm1089, %v493, -inf
    %1104 = vmax.xlane.f32.xlu0 %v1103
    %v1105 = vpop.xlane.xlu0 %1104
    %v1106 = vsel %vm1096, %v498, -inf
    %1107 = vmax.xlane.f32.xlu0 %v1106
    %v1108 = vpop.xlane.xlu0 %1107
    %v1109 = vsel %vm1089, %v586, -inf
    %1110 = vmax.xlane.f32.xlu0 %v1109
    %v1111 = vpop.xlane.xlu0 %1110
    %v1112 = vsel %vm1089, %v591, -inf
    %1113 = vmax.xlane.f32.xlu0 %v1112
    %v1114 = vpop.xlane.xlu0 %1113
    %v1115 = vsel %vm1096, %v596, -inf
    %1116 = vmax.xlane.f32.xlu0 %v1115
    %v1117 = vpop.xlane.xlu0 %1116
    %v1118 = vsel %vm1089, %v684, -inf
    %1119 = vmax.xlane.f32.xlu0 %v1118
    %v1120 = vpop.xlane.xlu0 %1119
    %v1121 = vsel %vm1089, %v689, -inf
    %1122 = vmax.xlane.f32.xlu0 %v1121
    %v1123 = vpop.xlane.xlu0 %1122
    %v1124 = vsel %vm1096, %v694, -inf
    %1125 = vmax.xlane.f32.xlu0 %v1124
    %v1126 = vpop.xlane.xlu0 %1125
    %v1127 = vsel %vm1089, %v782, -inf
    %1128 = vmax.xlane.f32.xlu0 %v1127
    %v1129 = vpop.xlane.xlu0 %1128
    %v1130 = vsel %vm1089, %v787, -inf
    %1131 = vmax.xlane.f32.xlu0 %v1130
    %v1132 = vpop.xlane.xlu0 %1131
    %v1133 = vsel %vm1096, %v792, -inf
    %1134 = vmax.xlane.f32.xlu0 %v1133
    %v1135 = vpop.xlane.xlu0 %1134
    %v1136 = vsel %vm1089, %v880, -inf
    %1137 = vmax.xlane.f32.xlu0 %v1136
    %v1138 = vpop.xlane.xlu0 %1137
    %v1139 = vsel %vm1089, %v885, -inf
    %1140 = vmax.xlane.f32.xlu0 %v1139
    %v1141 = vpop.xlane.xlu0 %1140
    %v1142 = vsel %vm1096, %v890, -inf
    %1143 = vmax.xlane.f32.xlu0 %v1142
    %v1144 = vpop.xlane.xlu0 %1143
    %v1145 = vsel %vm1089, %v978, -inf
    %1146 = vmax.xlane.f32.xlu0 %v1145
    %v1147 = vpop.xlane.xlu0 %1146
    %v1148 = vsel %vm1089, %v983, -inf
    %1149 = vmax.xlane.f32.xlu0 %v1148
    %v1150 = vpop.xlane.xlu0 %1149
    %v1151 = vsel %vm1096, %v988, -inf
    %1152 = vmax.xlane.f32.xlu0 %v1151
    %v1153 = vpop.xlane.xlu0 %1152
    %v1154 = vsel %vm1089, %v1076, -inf
    %1155 = vmax.xlane.f32.xlu0 %v1154
    %v1156 = vpop.xlane.xlu0 %1155
    %v1157 = vsel %vm1089, %v1081, -inf
    %1158 = vmax.xlane.f32.xlu0 %v1157
    %v1159 = vpop.xlane.xlu0 %1158
    %v1160 = vsel %vm1096, %v1086, -inf
    %1161 = vmax.xlane.f32.xlu0 %v1160
    %v1162 = vpop.xlane.xlu0 %1161
    %v1163 = vsub.f32 %v390, %v1092
    %v1164 = vsub.f32 %v395, %v1095
    %v1165 = vsub.f32 %v400, %v1099
    %v1166 = vsub.f32 %v488, %v1102
    %v1167 = vsub.f32 %v493, %v1105
    %v1168 = vsub.f32 %v498, %v1108
    %v1169 = vsub.f32 %v586, %v1111
    %v1170 = vsub.f32 %v591, %v1114
    %v1171 = vsub.f32 %v596, %v1117
    %v1172 = vsub.f32 %v684, %v1120
    %v1173 = vsub.f32 %v689, %v1123
    %v1174 = vsub.f32 %v694, %v1126
    %v1175 = vsub.f32 %v782, %v1129
    %v1176 = vsub.f32 %v787, %v1132
    %v1177 = vsub.f32 %v792, %v1135
    %v1178 = vsub.f32 %v880, %v1138
    %v1179 = vsub.f32 %v885, %v1141
    %v1180 = vsub.f32 %v890, %v1144
    %v1181 = vsub.f32 %v978, %v1147
    %v1182 = vsub.f32 %v983, %v1150
    %v1183 = vsub.f32 %v988, %v1153
    %v1184 = vsub.f32 %v1076, %v1156
    %v1185 = vsub.f32 %v1081, %v1159
    %v1186 = vsub.f32 %v1086, %v1162
    %v1187 = vmul.f32 %v1163, 1.442695
    %v1188 = vpow.pop %v1187
    %v1189 = vmul.f32 %v1164, 1.442695
    %v1190 = vpow.pop %v1189
    %v1191 = vmul.f32 %v1165, 1.442695
    %v1192 = vpow.pop %v1191
    %v1193 = vmul.f32 %v1166, 1.442695
    %v1194 = vpow.pop %v1193
    %v1195 = vmul.f32 %v1167, 1.442695
    %v1196 = vpow.pop %v1195
    %v1197 = vmul.f32 %v1168, 1.442695
    %v1198 = vpow.pop %v1197
    %v1199 = vmul.f32 %v1169, 1.442695
    %v1200 = vpow.pop %v1199
    %v1201 = vmul.f32 %v1170, 1.442695
    %v1202 = vpow.pop %v1201
    %v1203 = vmul.f32 %v1171, 1.442695
    %v1204 = vpow.pop %v1203
    %v1205 = vmul.f32 %v1172, 1.442695
    %v1206 = vpow.pop %v1205
    %v1207 = vmul.f32 %v1173, 1.442695
    %v1208 = vpow.pop %v1207
    %v1209 = vmul.f32 %v1174, 1.442695
    %v1210 = vpow.pop %v1209
    %v1211 = vmul.f32 %v1175, 1.442695
    %v1212 = vpow.pop %v1211
    %v1213 = vmul.f32 %v1176, 1.442695
    %v1214 = vpow.pop %v1213
    %v1215 = vmul.f32 %v1177, 1.442695
    %v1216 = vpow.pop %v1215
    %v1217 = vmul.f32 %v1178, 1.442695
    %v1218 = vpow.pop %v1217
    %v1219 = vmul.f32 %v1179, 1.442695
    %v1220 = vpow.pop %v1219
    %v1221 = vmul.f32 %v1180, 1.442695
    %v1222 = vpow.pop %v1221
    %v1223 = vmul.f32 %v1181, 1.442695
    %v1224 = vpow.pop %v1223
    %v1225 = vmul.f32 %v1182, 1.442695
    %v1226 = vpow.pop %v1225
    %v1227 = vmul.f32 %v1183, 1.442695
    %v1228 = vpow.pop %v1227
    %v1229 = vmul.f32 %v1184, 1.442695
    %v1230 = vpow.pop %v1229
    %v1231 = vmul.f32 %v1185, 1.442695
    %v1232 = vpow.pop %v1231
    %v1233 = vmul.f32 %v1186, 1.442695
    %v1234 = vpow.pop %v1233
    %v1235 = vsel %vm1089, %v1188, 0.0
    %1236 = vadd.xlane.f32.xlu0 %v1235
    %v1237 = vpop.xlane.xlu0 %1236
    %v1238 = vsel %vm1089, %v1190, 0.0
    %1239 = vadd.xlane.f32.xlu0 %v1238
    %v1240 = vpop.xlane.xlu0 %1239
    %v1241 = vsel %vm1096, %v1192, 0.0
    %1242 = vadd.xlane.f32.xlu0 %v1241
    %v1243 = vpop.xlane.xlu0 %1242
    %v1244 = vsel %vm1089, %v1194, 0.0
    %1245 = vadd.xlane.f32.xlu0 %v1244
    %v1246 = vpop.xlane.xlu0 %1245
    %v1247 = vsel %vm1089, %v1196, 0.0
    %1248 = vadd.xlane.f32.xlu0 %v1247
    %v1249 = vpop.xlane.xlu0 %1248
    %v1250 = vsel %vm1096, %v1198, 0.0
    %1251 = vadd.xlane.f32.xlu0 %v1250
    %v1252 = vpop.xlane.xlu0 %1251
    %v1253 = vsel %vm1089, %v1200, 0.0
    %1254 = vadd.xlane.f32.xlu0 %v1253
    %v1255 = vpop.xlane.xlu0 %1254
    %v1256 = vsel %vm1089, %v1202, 0.0
    %1257 = vadd.xlane.f32.xlu0 %v1256
    %v1258 = vpop.xlane.xlu0 %1257
    %v1259 = vsel %vm1096, %v1204, 0.0
    %1260 = vadd.xlane.f32.xlu0 %v1259
    %v1261 = vpop.xlane.xlu0 %1260
    %v1262 = vsel %vm1089, %v1206, 0.0
    %1263 = vadd.xlane.f32.xlu0 %v1262
    %v1264 = vpop.xlane.xlu0 %1263
    %v1265 = vsel %vm1089, %v1208, 0.0
    %1266 = vadd.xlane.f32.xlu0 %v1265
    %v1267 = vpop.xlane.xlu0 %1266
    %v1268 = vsel %vm1096, %v1210, 0.0
    %1269 = vadd.xlane.f32.xlu0 %v1268
    %v1270 = vpop.xlane.xlu0 %1269
    %v1271 = vsel %vm1089, %v1212, 0.0
    %1272 = vadd.xlane.f32.xlu0 %v1271
    %v1273 = vpop.xlane.xlu0 %1272
    %v1274 = vsel %vm1089, %v1214, 0.0
    %1275 = vadd.xlane.f32.xlu0 %v1274
    %v1276 = vpop.xlane.xlu0 %1275
    %v1277 = vsel %vm1096, %v1216, 0.0
    %1278 = vadd.xlane.f32.xlu0 %v1277
    %v1279 = vpop.xlane.xlu0 %1278
    %v1280 = vsel %vm1089, %v1218, 0.0
    %1281 = vadd.xlane.f32.xlu0 %v1280
    %v1282 = vpop.xlane.xlu0 %1281
    %v1283 = vsel %vm1089, %v1220, 0.0
    %1284 = vadd.xlane.f32.xlu0 %v1283
    %v1285 = vpop.xlane.xlu0 %1284
    %v1286 = vsel %vm1096, %v1222, 0.0
    %1287 = vadd.xlane.f32.xlu0 %v1286
    %v1288 = vpop.xlane.xlu0 %1287
    %v1289 = vsel %vm1089, %v1224, 0.0
    %1290 = vadd.xlane.f32.xlu0 %v1289
    %v1291 = vpop.xlane.xlu0 %1290
    %v1292 = vsel %vm1089, %v1226, 0.0
    %1293 = vadd.xlane.f32.xlu0 %v1292
    %v1294 = vpop.xlane.xlu0 %1293
    %v1295 = vsel %vm1096, %v1228, 0.0
    %1296 = vadd.xlane.f32.xlu0 %v1295
    %v1297 = vpop.xlane.xlu0 %1296
    %v1298 = vsel %vm1089, %v1230, 0.0
    %1299 = vadd.xlane.f32.xlu0 %v1298
    %v1300 = vpop.xlane.xlu0 %1299
    %v1301 = vsel %vm1089, %v1232, 0.0
    %1302 = vadd.xlane.f32.xlu0 %v1301
    %v1303 = vpop.xlane.xlu0 %1302
    %v1304 = vsel %vm1096, %v1234, 0.0
    %1305 = vadd.xlane.f32.xlu0 %v1304
    %v1306 = vpop.xlane.xlu0 %1305
    %v1307 = vrcp.pop %v1237
    %v1308 = vmul.f32 %v1188, %v1307
    %v1309 = vrcp.pop %v1240
    %v1310 = vmul.f32 %v1190, %v1309
    %v1311 = vrcp.pop %v1243
    %v1312 = vmul.f32 %v1192, %v1311
    %v1313 = vrcp.pop %v1246
    %v1314 = vmul.f32 %v1194, %v1313
    %v1315 = vrcp.pop %v1249
    %v1316 = vmul.f32 %v1196, %v1315
    %v1317 = vrcp.pop %v1252
    %v1318 = vmul.f32 %v1198, %v1317
    %v1319 = vrcp.pop %v1255
    %v1320 = vmul.f32 %v1200, %v1319
    %v1321 = vrcp.pop %v1258
    %v1322 = vmul.f32 %v1202, %v1321
    %v1323 = vrcp.pop %v1261
    %v1324 = vmul.f32 %v1204, %v1323
    %v1325 = vrcp.pop %v1264
    %v1326 = vmul.f32 %v1206, %v1325
    %v1327 = vrcp.pop %v1267
    %v1328 = vmul.f32 %v1208, %v1327
    %v1329 = vrcp.pop %v1270
    %v1330 = vmul.f32 %v1210, %v1329
    %v1331 = vrcp.pop %v1273
    %v1332 = vmul.f32 %v1212, %v1331
    %v1333 = vrcp.pop %v1276
    %v1334 = vmul.f32 %v1214, %v1333
    %v1335 = vrcp.pop %v1279
    %v1336 = vmul.f32 %v1216, %v1335
    %v1337 = vrcp.pop %v1282
    %v1338 = vmul.f32 %v1218, %v1337
    %v1339 = vrcp.pop %v1285
    %v1340 = vmul.f32 %v1220, %v1339
    %v1341 = vrcp.pop %v1288
    %v1342 = vmul.f32 %v1222, %v1341
    %v1343 = vrcp.pop %v1291
    %v1344 = vmul.f32 %v1224, %v1343
    %v1345 = vrcp.pop %v1294
    %v1346 = vmul.f32 %v1226, %v1345
    %v1347 = vrcp.pop %v1297
    %v1348 = vmul.f32 %v1228, %v1347
    %v1349 = vrcp.pop %v1300
    %v1350 = vmul.f32 %v1230, %v1349
    %v1351 = vrcp.pop %v1303
    %v1352 = vmul.f32 %v1232, %v1351
    %v1353 = vrcp.pop %v1306
    %v1354 = vmul.f32 %v1234, %v1353
    %1355 = vrot.lane.b32.xlu0 %v246, 64
    %v1356 = vpop.permute.xlu0 %1355
    %1357 = vrot.lane.b32.xlu0 %v251, 64
    %v1358 = vpop.permute.xlu0 %1357
    %1359 = vrot.lane.b32.xlu0 %v256, 64
    %v1360 = vpop.permute.xlu0 %1359
    %v1364 = vsel %vm1089, %v1308, 0
    %v1367 = vsel %vm1089, %v1310, 0
    %v1370 = vsel %vm1089, %v1312, 0
    %v1372 = vsel %vm73, %v1360, 0
    %1374 = vmatprep.subr.mxu0 0.0
    %1375 = vmatpush1.msra.mxu0 %v1356
    %1376 = vmatprep.subr.mxu0 0.0
    %1377 = vmatpush1.msra.mxu0 %v1358
    %1378 = vmatprep.subr.mxu0 0.0
    %1379 = vmatpush1.msra.mxu0 %v1372
    %1380 = vmatprep.subr.mxu0 0.0
    %1381 = vmatpush1.msra.mxu0 0.0
    %1382 = vmatprep.subr.mxu0 0.0
    %1383 = vmatpush1.msra.mxu0 0.0
    %1384 = vmatprep.subr.mxu0 0.0
    %1385 = vmatpush1.msra.mxu0 0.0
    %1386 = vmatprep.subr.mxu0 0.0
    %1387 = vmatpush1.msra.mxu0 0.0
    %1388 = vmatprep.subr.mxu0 0.0
    %1389 = vmatpush1.msra.mxu0 0.0
    %1390 = vmatprep.subr.mxu0 0.0
    %1391 = vmatpush1.msra.mxu0 0.0
    %1392 = vmatprep.subr.mxu0 0.0
    %1393 = vmatpush1.msra.mxu0 0.0
    %1394 = vmatprep.subr.mxu0 0.0
    %1395 = vmatpush1.msra.mxu0 0.0
    %1396 = vmatprep.subr.mxu0 0.0
    %1397 = vmatpush1.msra.mxu0 0.0
    %1398 = vmatprep.subr.mxu0 0.0
    %1399 = vmatpush1.msra.mxu0 0.0
    %1400 = vmatprep.subr.mxu0 0.0
    %1401 = vmatpush1.msra.mxu0 0.0
    %1402 = vmatprep.subr.mxu0 0.0
    %1403 = vmatpush1.msra.mxu0 0.0
    %1404 = vmatprep.subr.mxu0 0.0
    %1405 = vmatpush1.msra.mxu0 0.0
    %1406 = vmatprep.subr.mxu0 0.0
    %1407 = vmatpush1.msra.mxu0 0.0
    %1408 = vmatprep.subr.mxu0 0.0
    %1409 = vmatpush1.msra.mxu0 0.0
    %1410 = vmatprep.subr.mxu0 0.0
    %1411 = vmatpush1.msra.mxu0 0.0
    %1412 = vmatprep.subr.mxu0 0.0
    %1413 = vmatpush1.msra.mxu0 0.0
    %1414 = vmatprep.subr.mxu0 0.0
    %1415 = vmatpush1.msra.mxu0 0.0
    %1416 = vmatprep.subr.mxu0 0.0
    %1417 = vmatpush1.msra.mxu0 0.0
    %1418 = vmatprep.subr.mxu0 0.0
    %1419 = vmatpush1.msra.mxu0 0.0
    %1420 = vmatprep.subr.mxu0 0.0
    %1421 = vmatpush1.msra.mxu0 0.0
    %1422 = vmatprep.subr.mxu0 0.0
    %1423 = vmatpush1.msra.mxu0 0.0
    %1424 = vmatprep.subr.mxu0 0.0
    %1425 = vmatpush1.msra.mxu0 0.0
    %1426 = vmatprep.subr.mxu0 0.0
    %1427 = vmatpush1.msra.mxu0 0.0
    %1428 = vmatprep.subr.mxu0 0.0
    %1429 = vmatpush1.msra.mxu0 0.0
    %1430 = vmatprep.subr.mxu0 0.0
    %1431 = vmatpush1.msra.mxu0 0.0
    %1432 = vmatprep.subr.mxu0 0.0
    %1433 = vmatpush1.msra.mxu0 0.0
    %1434 = vmatprep.subr.mxu0 0.0
    %1435 = vmatpush1.msra.mxu0 0.0
    %1436 = vmatprep.subr.mxu0 0.0
    %1437 = vmatpush1.msra.mxu0 0.0
    %1438 = vmatprep.mubr.f32.mxu0 0.0
    %1439 = vmatmul.mubr.f32.gmra.mrb[0].mxu0 %v1364
    %v1440 = vpop.f32.mrb[0].mxu0
    %v1441 = vadd.f32 0.0, %v1440
    %v1442 = vpop.f32.mrb[0].mxu0
    %1443 = vmatprep.mubr.f32.mxu0 0.0
    %1444 = vmatmul.mubr.f32.gmra.mrb[0].mxu0 %v1367
    %v1445 = vpop.f32.mrb[0].mxu0
    %v1446 = vadd.f32 0.0, %v1445
    %v1447 = vpop.f32.mrb[0].mxu0
    %1448 = vmatprep.mubr.f32.mxu0 0.0
    %1449 = vmatmul.mubr.f32.gmra.mrb[0].mxu0 %v1370
    %v1450 = vpop.f32.mrb[0].mxu0
    %v1451 = vadd.f32 0.0, %v1450
    %v1452 = vpop.f32.mrb[0].mxu0
    %1453 = vdwg.mxu0
    %1454 = vrot.lane.b32.xlu0 %v263, 64
    %v1455 = vpop.permute.xlu0 %1454
    %1456 = vrot.lane.b32.xlu0 %v265, 64
    %v1457 = vpop.permute.xlu0 %1456
    %1458 = vrot.lane.b32.xlu0 %v267, 64
    %v1459 = vpop.permute.xlu0 %1458
    %v1463 = vsel %vm1089, %v1314, 0
    %v1466 = vsel %vm1089, %v1316, 0
    %v1469 = vsel %vm1089, %v1318, 0
    %v1471 = vsel %vm73, %v1459, 0
    %1473 = vmatprep.subr.mxu0 0.0
    %1474 = vmatpush1.msra.mxu0 %v1455
    %1475 = vmatprep.subr.mxu0 0.0
    %1476 = vmatpush1.msra.mxu0 %v1457
    %1477 = vmatprep.subr.mxu0 0.0
    %1478 = vmatpush1.msra.mxu0 %v1471
    %1479 = vmatprep.subr.mxu0 0.0
    %1480 = vmatpush1.msra.mxu0 0.0
    %1481 = vmatprep.subr.mxu0 0.0
    %1482 = vmatpush1.msra.mxu0 0.0
    %1483 = vmatprep.subr.mxu0 0.0
    %1484 = vmatpush1.msra.mxu0 0.0
    %1485 = vmatprep.subr.mxu0 0.0
    %1486 = vmatpush1.msra.mxu0 0.0
    %1487 = vmatprep.subr.mxu0 0.0
    %1488 = vmatpush1.msra.mxu0 0.0
    %1489 = vmatprep.subr.mxu0 0.0
    %1490 = vmatpush1.msra.mxu0 0.0
    %1491 = vmatprep.subr.mxu0 0.0
    %1492 = vmatpush1.msra.mxu0 0.0
    %1493 = vmatprep.subr.mxu0 0.0
    %1494 = vmatpush1.msra.mxu0 0.0
    %1495 = vmatprep.subr.mxu0 0.0
    %1496 = vmatpush1.msra.mxu0 0.0
    %1497 = vmatprep.subr.mxu0 0.0
    %1498 = vmatpush1.msra.mxu0 0.0
    %1499 = vmatprep.subr.mxu0 0.0
    %1500 = vmatpush1.msra.mxu0 0.0
    %1501 = vmatprep.subr.mxu0 0.0
    %1502 = vmatpush1.msra.mxu0 0.0
    %1503 = vmatprep.subr.mxu0 0.0
    %1504 = vmatpush1.msra.mxu0 0.0
    %1505 = vmatprep.subr.mxu0 0.0
    %1506 = vmatpush1.msra.mxu0 0.0
    %1507 = vmatprep.subr.mxu0 0.0
    %1508 = vmatpush1.msra.mxu0 0.0
    %1509 = vmatprep.subr.mxu0 0.0
    %1510 = vmatpush1.msra.mxu0 0.0
    %1511 = vmatprep.subr.mxu0 0.0
    %1512 = vmatpush1.msra.mxu0 0.0
    %1513 = vmatprep.subr.mxu0 0.0
    %1514 = vmatpush1.msra.mxu0 0.0
    %1515 = vmatprep.subr.mxu0 0.0
    %1516 = vmatpush1.msra.mxu0 0.0
    %1517 = vmatprep.subr.mxu0 0.0
    %1518 = vmatpush1.msra.mxu0 0.0
    %1519 = vmatprep.subr.mxu0 0.0
    %1520 = vmatpush1.msra.mxu0 0.0
    %1521 = vmatprep.subr.mxu0 0.0
    %1522 = vmatpush1.msra.mxu0 0.0
    %1523 = vmatprep.subr.mxu0 0.0
    %1524 = vmatpush1.msra.mxu0 0.0
    %1525 = vmatprep.subr.mxu0 0.0
    %1526 = vmatpush1.msra.mxu0 0.0
    %1527 = vmatprep.subr.mxu0 0.0
    %1528 = vmatpush1.msra.mxu0 0.0
    %1529 = vmatprep.subr.mxu0 0.0
    %1530 = vmatpush1.msra.mxu0 0.0
    %1531 = vmatprep.subr.mxu0 0.0
    %1532 = vmatpush1.msra.mxu0 0.0
    %1533 = vmatprep.subr.mxu0 0.0
    %1534 = vmatpush1.msra.mxu0 0.0
    %1535 = vmatprep.subr.mxu0 0.0
    %1536 = vmatpush1.msra.mxu0 0.0
    %1537 = vmatprep.mubr.f32.mxu0 0.0
    %1538 = vmatmul.mubr.f32.gmra.mrb[0].mxu0 %v1463
    %v1539 = vpop.f32.mrb[0].mxu0
    %v1540 = vadd.f32 0.0, %v1539
    %v1541 = vpop.f32.mrb[0].mxu0
    %1542 = vmatprep.mubr.f32.mxu0 0.0
    %1543 = vmatmul.mubr.f32.gmra.mrb[0].mxu0 %v1466
    %v1544 = vpop.f32.mrb[0].mxu0
    %v1545 = vadd.f32 0.0, %v1544
    %v1546 = vpop.f32.mrb[0].mxu0
    %1547 = vmatprep.mubr.f32.mxu0 0.0
    %1548 = vmatmul.mubr.f32.gmra.mrb[0].mxu0 %v1469
    %v1549 = vpop.f32.mrb[0].mxu0
    %v1550 = vadd.f32 0.0, %v1549
    %v1551 = vpop.f32.mrb[0].mxu0
    %1552 = vdwg.mxu0
    %1553 = vrot.lane.b32.xlu0 %v269, 64
    %v1554 = vpop.permute.xlu0 %1553
    %1555 = vrot.lane.b32.xlu0 %v271, 64
    %v1556 = vpop.permute.xlu0 %1555
    %1557 = vrot.lane.b32.xlu0 %v273, 64
    %v1558 = vpop.permute.xlu0 %1557
    %v1562 = vsel %vm1089, %v1320, 0
    %v1565 = vsel %vm1089, %v1322, 0
    %v1568 = vsel %vm1089, %v1324, 0
    %v1570 = vsel %vm73, %v1558, 0
    %1572 = vmatprep.subr.mxu0 0.0
    %1573 = vmatpush1.msra.mxu0 %v1554
    %1574 = vmatprep.subr.mxu0 0.0
    %1575 = vmatpush1.msra.mxu0 %v1556
    %1576 = vmatprep.subr.mxu0 0.0
    %1577 = vmatpush1.msra.mxu0 %v1570
    %1578 = vmatprep.subr.mxu0 0.0
    %1579 = vmatpush1.msra.mxu0 0.0
    %1580 = vmatprep.subr.mxu0 0.0
    %1581 = vmatpush1.msra.mxu0 0.0
    %1582 = vmatprep.subr.mxu0 0.0
    %1583 = vmatpush1.msra.mxu0 0.0
    %1584 = vmatprep.subr.mxu0 0.0
    %1585 = vmatpush1.msra.mxu0 0.0
    %1586 = vmatprep.subr.mxu0 0.0
    %1587 = vmatpush1.msra.mxu0 0.0
    %1588 = vmatprep.subr.mxu0 0.0
    %1589 = vmatpush1.msra.mxu0 0.0
    %1590 = vmatprep.subr.mxu0 0.0
    %1591 = vmatpush1.msra.mxu0 0.0
    %1592 = vmatprep.subr.mxu0 0.0
    %1593 = vmatpush1.msra.mxu0 0.0
    %1594 = vmatprep.subr.mxu0 0.0
    %1595 = vmatpush1.msra.mxu0 0.0
    %1596 = vmatprep.subr.mxu0 0.0
    %1597 = vmatpush1.msra.mxu0 0.0
    %1598 = vmatprep.subr.mxu0 0.0
    %1599 = vmatpush1.msra.mxu0 0.0
    %1600 = vmatprep.subr.mxu0 0.0
    %1601 = vmatpush1.msra.mxu0 0.0
    %1602 = vmatprep.subr.mxu0 0.0
    %1603 = vmatpush1.msra.mxu0 0.0
    %1604 = vmatprep.subr.mxu0 0.0
    %1605 = vmatpush1.msra.mxu0 0.0
    %1606 = vmatprep.subr.mxu0 0.0
    %1607 = vmatpush1.msra.mxu0 0.0
    %1608 = vmatprep.subr.mxu0 0.0
    %1609 = vmatpush1.msra.mxu0 0.0
    %1610 = vmatprep.subr.mxu0 0.0
    %1611 = vmatpush1.msra.mxu0 0.0
    %1612 = vmatprep.subr.mxu0 0.0
    %1613 = vmatpush1.msra.mxu0 0.0
    %1614 = vmatprep.subr.mxu0 0.0
    %1615 = vmatpush1.msra.mxu0 0.0
    %1616 = vmatprep.subr.mxu0 0.0
    %1617 = vmatpush1.msra.mxu0 0.0
    %1618 = vmatprep.subr.mxu0 0.0
    %1619 = vmatpush1.msra.mxu0 0.0
    %1620 = vmatprep.subr.mxu0 0.0
    %1621 = vmatpush1.msra.mxu0 0.0
    %1622 = vmatprep.subr.mxu0 0.0
    %1623 = vmatpush1.msra.mxu0 0.0
    %1624 = vmatprep.subr.mxu0 0.0
    %1625 = vmatpush1.msra.mxu0 0.0
    %1626 = vmatprep.subr.mxu0 0.0
    %1627 = vmatpush1.msra.mxu0 0.0
    %1628 = vmatprep.subr.mxu0 0.0
    %1629 = vmatpush1.msra.mxu0 0.0
    %1630 = vmatprep.subr.mxu0 0.0
    %1631 = vmatpush1.msra.mxu0 0.0
    %1632 = vmatprep.subr.mxu0 0.0
    %1633 = vmatpush1.msra.mxu0 0.0
    %1634 = vmatprep.subr.mxu0 0.0
    %1635 = vmatpush1.msra.mxu0 0.0
    %1636 = vmatprep.mubr.f32.mxu0 0.0
    %1637 = vmatmul.mubr.f32.gmra.mrb[0].mxu0 %v1562
    %v1638 = vpop.f32.mrb[0].mxu0
    %v1639 = vadd.f32 0.0, %v1638
    %v1640 = vpop.f32.mrb[0].mxu0
    %1641 = vmatprep.mubr.f32.mxu0 0.0
    %1642 = vmatmul.mubr.f32.gmra.mrb[0].mxu0 %v1565
    %v1643 = vpop.f32.mrb[0].mxu0
    %v1644 = vadd.f32 0.0, %v1643
    %v1645 = vpop.f32.mrb[0].mxu0
    %1646 = vmatprep.mubr.f32.mxu0 0.0
    %1647 = vmatmul.mubr.f32.gmra.mrb[0].mxu0 %v1568
    %v1648 = vpop.f32.mrb[0].mxu0
    %v1649 = vadd.f32 0.0, %v1648
    %v1650 = vpop.f32.mrb[0].mxu0
    %1651 = vdwg.mxu0
    %1652 = vrot.lane.b32.xlu0 %v275, 64
    %v1653 = vpop.permute.xlu0 %1652
    %1654 = vrot.lane.b32.xlu0 %v277, 64
    %v1655 = vpop.permute.xlu0 %1654
    %1656 = vrot.lane.b32.xlu0 %v279, 64
    %v1657 = vpop.permute.xlu0 %1656
    %v1661 = vsel %vm1089, %v1326, 0
    %v1664 = vsel %vm1089, %v1328, 0
    %v1667 = vsel %vm1089, %v1330, 0
    %v1669 = vsel %vm73, %v1657, 0
    %1671 = vmatprep.subr.mxu0 0.0
    %1672 = vmatpush1.msra.mxu0 %v1653
    %1673 = vmatprep.subr.mxu0 0.0
    %1674 = vmatpush1.msra.mxu0 %v1655
    %1675 = vmatprep.subr.mxu0 0.0
    %1676 = vmatpush1.msra.mxu0 %v1669
    %1677 = vmatprep.subr.mxu0 0.0
    %1678 = vmatpush1.msra.mxu0 0.0
    %1679 = vmatprep.subr.mxu0 0.0
    %1680 = vmatpush1.msra.mxu0 0.0
    %1681 = vmatprep.subr.mxu0 0.0
    %1682 = vmatpush1.msra.mxu0 0.0
    %1683 = vmatprep.subr.mxu0 0.0
    %1684 = vmatpush1.msra.mxu0 0.0
    %1685 = vmatprep.subr.mxu0 0.0
    %1686 = vmatpush1.msra.mxu0 0.0
    %1687 = vmatprep.subr.mxu0 0.0
    %1688 = vmatpush1.msra.mxu0 0.0
    %1689 = vmatprep.subr.mxu0 0.0
    %1690 = vmatpush1.msra.mxu0 0.0
    %1691 = vmatprep.subr.mxu0 0.0
    %1692 = vmatpush1.msra.mxu0 0.0
    %1693 = vmatprep.subr.mxu0 0.0
    %1694 = vmatpush1.msra.mxu0 0.0
    %1695 = vmatprep.subr.mxu0 0.0
    %1696 = vmatpush1.msra.mxu0 0.0
    %1697 = vmatprep.subr.mxu0 0.0
    %1698 = vmatpush1.msra.mxu0 0.0
    %1699 = vmatprep.subr.mxu0 0.0
    %1700 = vmatpush1.msra.mxu0 0.0
    %1701 = vmatprep.subr.mxu0 0.0
    %1702 = vmatpush1.msra.mxu0 0.0
    %1703 = vmatprep.subr.mxu0 0.0
    %1704 = vmatpush1.msra.mxu0 0.0
    %1705 = vmatprep.subr.mxu0 0.0
    %1706 = vmatpush1.msra.mxu0 0.0
    %1707 = vmatprep.subr.mxu0 0.0
    %1708 = vmatpush1.msra.mxu0 0.0
    %1709 = vmatprep.subr.mxu0 0.0
    %1710 = vmatpush1.msra.mxu0 0.0
    %1711 = vmatprep.subr.mxu0 0.0
    %1712 = vmatpush1.msra.mxu0 0.0
    %1713 = vmatprep.subr.mxu0 0.0
    %1714 = vmatpush1.msra.mxu0 0.0
    %1715 = vmatprep.subr.mxu0 0.0
    %1716 = vmatpush1.msra.mxu0 0.0
    %1717 = vmatprep.subr.mxu0 0.0
    %1718 = vmatpush1.msra.mxu0 0.0
    %1719 = vmatprep.subr.mxu0 0.0
    %1720 = vmatpush1.msra.mxu0 0.0
    %1721 = vmatprep.subr.mxu0 0.0
    %1722 = vmatpush1.msra.mxu0 0.0
    %1723 = vmatprep.subr.mxu0 0.0
    %1724 = vmatpush1.msra.mxu0 0.0
    %1725 = vmatprep.subr.mxu0 0.0
    %1726 = vmatpush1.msra.mxu0 0.0
    %1727 = vmatprep.subr.mxu0 0.0
    %1728 = vmatpush1.msra.mxu0 0.0
    %1729 = vmatprep.subr.mxu0 0.0
    %1730 = vmatpush1.msra.mxu0 0.0
    %1731 = vmatprep.subr.mxu0 0.0
    %1732 = vmatpush1.msra.mxu0 0.0
    %1733 = vmatprep.subr.mxu0 0.0
    %1734 = vmatpush1.msra.mxu0 0.0
    %1735 = vmatprep.mubr.f32.mxu0 0.0
    %1736 = vmatmul.mubr.f32.gmra.mrb[0].mxu0 %v1661
    %v1737 = vpop.f32.mrb[0].mxu0
    %v1738 = vadd.f32 0.0, %v1737
    %v1739 = vpop.f32.mrb[0].mxu0
    %1740 = vmatprep.mubr.f32.mxu0 0.0
    %1741 = vmatmul.mubr.f32.gmra.mrb[0].mxu0 %v1664
    %v1742 = vpop.f32.mrb[0].mxu0
    %v1743 = vadd.f32 0.0, %v1742
    %v1744 = vpop.f32.mrb[0].mxu0
    %1745 = vmatprep.mubr.f32.mxu0 0.0
    %1746 = vmatmul.mubr.f32.gmra.mrb[0].mxu0 %v1667
    %v1747 = vpop.f32.mrb[0].mxu0
    %v1748 = vadd.f32 0.0, %v1747
    %v1749 = vpop.f32.mrb[0].mxu0
    %1750 = vdwg.mxu0
    %1751 = vrot.lane.b32.xlu0 %v281, 64
    %v1752 = vpop.permute.xlu0 %1751
    %1753 = vrot.lane.b32.xlu0 %v283, 64
    %v1754 = vpop.permute.xlu0 %1753
    %1755 = vrot.lane.b32.xlu0 %v285, 64
    %v1756 = vpop.permute.xlu0 %1755
    %v1760 = vsel %vm1089, %v1332, 0
    %v1763 = vsel %vm1089, %v1334, 0
    %v1766 = vsel %vm1089, %v1336, 0
    %v1768 = vsel %vm73, %v1756, 0
    %1770 = vmatprep.subr.mxu0 0.0
    %1771 = vmatpush1.msra.mxu0 %v1752
    %1772 = vmatprep.subr.mxu0 0.0
    %1773 = vmatpush1.msra.mxu0 %v1754
    %1774 = vmatprep.subr.mxu0 0.0
    %1775 = vmatpush1.msra.mxu0 %v1768
    %1776 = vmatprep.subr.mxu0 0.0
    %1777 = vmatpush1.msra.mxu0 0.0
    %1778 = vmatprep.subr.mxu0 0.0
    %1779 = vmatpush1.msra.mxu0 0.0
    %1780 = vmatprep.subr.mxu0 0.0
    %1781 = vmatpush1.msra.mxu0 0.0
    %1782 = vmatprep.subr.mxu0 0.0
    %1783 = vmatpush1.msra.mxu0 0.0
    %1784 = vmatprep.subr.mxu0 0.0
    %1785 = vmatpush1.msra.mxu0 0.0
    %1786 = vmatprep.subr.mxu0 0.0
    %1787 = vmatpush1.msra.mxu0 0.0
    %1788 = vmatprep.subr.mxu0 0.0
    %1789 = vmatpush1.msra.mxu0 0.0
    %1790 = vmatprep.subr.mxu0 0.0
    %1791 = vmatpush1.msra.mxu0 0.0
    %1792 = vmatprep.subr.mxu0 0.0
    %1793 = vmatpush1.msra.mxu0 0.0
    %1794 = vmatprep.subr.mxu0 0.0
    %1795 = vmatpush1.msra.mxu0 0.0
    %1796 = vmatprep.subr.mxu0 0.0
    %1797 = vmatpush1.msra.mxu0 0.0
    %1798 = vmatprep.subr.mxu0 0.0
    %1799 = vmatpush1.msra.mxu0 0.0
    %1800 = vmatprep.subr.mxu0 0.0
    %1801 = vmatpush1.msra.mxu0 0.0
    %1802 = vmatprep.subr.mxu0 0.0
    %1803 = vmatpush1.msra.mxu0 0.0
    %1804 = vmatprep.subr.mxu0 0.0
    %1805 = vmatpush1.msra.mxu0 0.0
    %1806 = vmatprep.subr.mxu0 0.0
    %1807 = vmatpush1.msra.mxu0 0.0
    %1808 = vmatprep.subr.mxu0 0.0
    %1809 = vmatpush1.msra.mxu0 0.0
    %1810 = vmatprep.subr.mxu0 0.0
    %1811 = vmatpush1.msra.mxu0 0.0
    %1812 = vmatprep.subr.mxu0 0.0
    %1813 = vmatpush1.msra.mxu0 0.0
    %1814 = vmatprep.subr.mxu0 0.0
    %1815 = vmatpush1.msra.mxu0 0.0
    %1816 = vmatprep.subr.mxu0 0.0
    %1817 = vmatpush1.msra.mxu0 0.0
    %1818 = vmatprep.subr.mxu0 0.0
    %1819 = vmatpush1.msra.mxu0 0.0
    %1820 = vmatprep.subr.mxu0 0.0
    %1821 = vmatpush1.msra.mxu0 0.0
    %1822 = vmatprep.subr.mxu0 0.0
    %1823 = vmatpush1.msra.mxu0 0.0
    %1824 = vmatprep.subr.mxu0 0.0
    %1825 = vmatpush1.msra.mxu0 0.0
    %1826 = vmatprep.subr.mxu0 0.0
    %1827 = vmatpush1.msra.mxu0 0.0
    %1828 = vmatprep.subr.mxu0 0.0
    %1829 = vmatpush1.msra.mxu0 0.0
    %1830 = vmatprep.subr.mxu0 0.0
    %1831 = vmatpush1.msra.mxu0 0.0
    %1832 = vmatprep.subr.mxu0 0.0
    %1833 = vmatpush1.msra.mxu0 0.0
    %1834 = vmatprep.mubr.f32.mxu0 0.0
    %1835 = vmatmul.mubr.f32.gmra.mrb[0].mxu0 %v1760
    %v1836 = vpop.f32.mrb[0].mxu0
    %v1837 = vadd.f32 0.0, %v1836
    %v1838 = vpop.f32.mrb[0].mxu0
    %1839 = vmatprep.mubr.f32.mxu0 0.0
    %1840 = vmatmul.mubr.f32.gmra.mrb[0].mxu0 %v1763
    %v1841 = vpop.f32.mrb[0].mxu0
    %v1842 = vadd.f32 0.0, %v1841
    %v1843 = vpop.f32.mrb[0].mxu0
    %1844 = vmatprep.mubr.f32.mxu0 0.0
    %1845 = vmatmul.mubr.f32.gmra.mrb[0].mxu0 %v1766
    %v1846 = vpop.f32.mrb[0].mxu0
    %v1847 = vadd.f32 0.0, %v1846
    %v1848 = vpop.f32.mrb[0].mxu0
    %1849 = vdwg.mxu0
    %1850 = vrot.lane.b32.xlu0 %v287, 64
    %v1851 = vpop.permute.xlu0 %1850
    %1852 = vrot.lane.b32.xlu0 %v289, 64
    %v1853 = vpop.permute.xlu0 %1852
    %1854 = vrot.lane.b32.xlu0 %v291, 64
    %v1855 = vpop.permute.xlu0 %1854
    %v1859 = vsel %vm1089, %v1338, 0
    %v1862 = vsel %vm1089, %v1340, 0
    %v1865 = vsel %vm1089, %v1342, 0
    %v1867 = vsel %vm73, %v1855, 0
    %1869 = vmatprep.subr.mxu0 0.0
    %1870 = vmatpush1.msra.mxu0 %v1851
    %1871 = vmatprep.subr.mxu0 0.0
    %1872 = vmatpush1.msra.mxu0 %v1853
    %1873 = vmatprep.subr.mxu0 0.0
    %1874 = vmatpush1.msra.mxu0 %v1867
    %1875 = vmatprep.subr.mxu0 0.0
    %1876 = vmatpush1.msra.mxu0 0.0
    %1877 = vmatprep.subr.mxu0 0.0
    %1878 = vmatpush1.msra.mxu0 0.0
    %1879 = vmatprep.subr.mxu0 0.0
    %1880 = vmatpush1.msra.mxu0 0.0
    %1881 = vmatprep.subr.mxu0 0.0
    %1882 = vmatpush1.msra.mxu0 0.0
    %1883 = vmatprep.subr.mxu0 0.0
    %1884 = vmatpush1.msra.mxu0 0.0
    %1885 = vmatprep.subr.mxu0 0.0
    %1886 = vmatpush1.msra.mxu0 0.0
    %1887 = vmatprep.subr.mxu0 0.0
    %1888 = vmatpush1.msra.mxu0 0.0
    %1889 = vmatprep.subr.mxu0 0.0
    %1890 = vmatpush1.msra.mxu0 0.0
    %1891 = vmatprep.subr.mxu0 0.0
    %1892 = vmatpush1.msra.mxu0 0.0
    %1893 = vmatprep.subr.mxu0 0.0
    %1894 = vmatpush1.msra.mxu0 0.0
    %1895 = vmatprep.subr.mxu0 0.0
    %1896 = vmatpush1.msra.mxu0 0.0
    %1897 = vmatprep.subr.mxu0 0.0
    %1898 = vmatpush1.msra.mxu0 0.0
    %1899 = vmatprep.subr.mxu0 0.0
    %1900 = vmatpush1.msra.mxu0 0.0
    %1901 = vmatprep.subr.mxu0 0.0
    %1902 = vmatpush1.msra.mxu0 0.0
    %1903 = vmatprep.subr.mxu0 0.0
    %1904 = vmatpush1.msra.mxu0 0.0
    %1905 = vmatprep.subr.mxu0 0.0
    %1906 = vmatpush1.msra.mxu0 0.0
    %1907 = vmatprep.subr.mxu0 0.0
    %1908 = vmatpush1.msra.mxu0 0.0
    %1909 = vmatprep.subr.mxu0 0.0
    %1910 = vmatpush1.msra.mxu0 0.0
    %1911 = vmatprep.subr.mxu0 0.0
    %1912 = vmatpush1.msra.mxu0 0.0
    %1913 = vmatprep.subr.mxu0 0.0
    %1914 = vmatpush1.msra.mxu0 0.0
    %1915 = vmatprep.subr.mxu0 0.0
    %1916 = vmatpush1.msra.mxu0 0.0
    %1917 = vmatprep.subr.mxu0 0.0
    %1918 = vmatpush1.msra.mxu0 0.0
    %1919 = vmatprep.subr.mxu0 0.0
    %1920 = vmatpush1.msra.mxu0 0.0
    %1921 = vmatprep.subr.mxu0 0.0
    %1922 = vmatpush1.msra.mxu0 0.0
    %1923 = vmatprep.subr.mxu0 0.0
    %1924 = vmatpush1.msra.mxu0 0.0
    %1925 = vmatprep.subr.mxu0 0.0
    %1926 = vmatpush1.msra.mxu0 0.0
    %1927 = vmatprep.subr.mxu0 0.0
    %1928 = vmatpush1.msra.mxu0 0.0
    %1929 = vmatprep.subr.mxu0 0.0
    %1930 = vmatpush1.msra.mxu0 0.0
    %1931 = vmatprep.subr.mxu0 0.0
    %1932 = vmatpush1.msra.mxu0 0.0
    %1933 = vmatprep.mubr.f32.mxu0 0.0
    %1934 = vmatmul.mubr.f32.gmra.mrb[0].mxu0 %v1859
    %v1935 = vpop.f32.mrb[0].mxu0
    %v1936 = vadd.f32 0.0, %v1935
    %v1937 = vpop.f32.mrb[0].mxu0
    %1938 = vmatprep.mubr.f32.mxu0 0.0
    %1939 = vmatmul.mubr.f32.gmra.mrb[0].mxu0 %v1862
    %v1940 = vpop.f32.mrb[0].mxu0
    %v1941 = vadd.f32 0.0, %v1940
    %v1942 = vpop.f32.mrb[0].mxu0
    %1943 = vmatprep.mubr.f32.mxu0 0.0
    %1944 = vmatmul.mubr.f32.gmra.mrb[0].mxu0 %v1865
    %v1945 = vpop.f32.mrb[0].mxu0
    %v1946 = vadd.f32 0.0, %v1945
    %v1947 = vpop.f32.mrb[0].mxu0
    %1948 = vdwg.mxu0
    %1949 = vrot.lane.b32.xlu0 %v293, 64
    %v1950 = vpop.permute.xlu0 %1949
    %1951 = vrot.lane.b32.xlu0 %v295, 64
    %v1952 = vpop.permute.xlu0 %1951
    %1953 = vrot.lane.b32.xlu0 %v297, 64
    %v1954 = vpop.permute.xlu0 %1953
    %v1958 = vsel %vm1089, %v1344, 0
    %v1961 = vsel %vm1089, %v1346, 0
    %v1964 = vsel %vm1089, %v1348, 0
    %v1966 = vsel %vm73, %v1954, 0
    %1968 = vmatprep.subr.mxu0 0.0
    %1969 = vmatpush1.msra.mxu0 %v1950
    %1970 = vmatprep.subr.mxu0 0.0
    %1971 = vmatpush1.msra.mxu0 %v1952
    %1972 = vmatprep.subr.mxu0 0.0
    %1973 = vmatpush1.msra.mxu0 %v1966
    %1974 = vmatprep.subr.mxu0 0.0
    %1975 = vmatpush1.msra.mxu0 0.0
    %1976 = vmatprep.subr.mxu0 0.0
    %1977 = vmatpush1.msra.mxu0 0.0
    %1978 = vmatprep.subr.mxu0 0.0
    %1979 = vmatpush1.msra.mxu0 0.0
    %1980 = vmatprep.subr.mxu0 0.0
    %1981 = vmatpush1.msra.mxu0 0.0
    %1982 = vmatprep.subr.mxu0 0.0
    %1983 = vmatpush1.msra.mxu0 0.0
    %1984 = vmatprep.subr.mxu0 0.0
    %1985 = vmatpush1.msra.mxu0 0.0
    %1986 = vmatprep.subr.mxu0 0.0
    %1987 = vmatpush1.msra.mxu0 0.0
    %1988 = vmatprep.subr.mxu0 0.0
    %1989 = vmatpush1.msra.mxu0 0.0
    %1990 = vmatprep.subr.mxu0 0.0
    %1991 = vmatpush1.msra.mxu0 0.0
    %1992 = vmatprep.subr.mxu0 0.0
    %1993 = vmatpush1.msra.mxu0 0.0
    %1994 = vmatprep.subr.mxu0 0.0
    %1995 = vmatpush1.msra.mxu0 0.0
    %1996 = vmatprep.subr.mxu0 0.0
    %1997 = vmatpush1.msra.mxu0 0.0
    %1998 = vmatprep.subr.mxu0 0.0
    %1999 = vmatpush1.msra.mxu0 0.0
    %2000 = vmatprep.subr.mxu0 0.0
    %2001 = vmatpush1.msra.mxu0 0.0
    %2002 = vmatprep.subr.mxu0 0.0
    %2003 = vmatpush1.msra.mxu0 0.0
    %2004 = vmatprep.subr.mxu0 0.0
    %2005 = vmatpush1.msra.mxu0 0.0
    %2006 = vmatprep.subr.mxu0 0.0
    %2007 = vmatpush1.msra.mxu0 0.0
    %2008 = vmatprep.subr.mxu0 0.0
    %2009 = vmatpush1.msra.mxu0 0.0
    %2010 = vmatprep.subr.mxu0 0.0
    %2011 = vmatpush1.msra.mxu0 0.0
    %2012 = vmatprep.subr.mxu0 0.0
    %2013 = vmatpush1.msra.mxu0 0.0
    %2014 = vmatprep.subr.mxu0 0.0
    %2015 = vmatpush1.msra.mxu0 0.0
    %2016 = vmatprep.subr.mxu0 0.0
    %2017 = vmatpush1.msra.mxu0 0.0
    %2018 = vmatprep.subr.mxu0 0.0
    %2019 = vmatpush1.msra.mxu0 0.0
    %2020 = vmatprep.subr.mxu0 0.0
    %2021 = vmatpush1.msra.mxu0 0.0
    %2022 = vmatprep.subr.mxu0 0.0
    %2023 = vmatpush1.msra.mxu0 0.0
    %2024 = vmatprep.subr.mxu0 0.0
    %2025 = vmatpush1.msra.mxu0 0.0
    %2026 = vmatprep.subr.mxu0 0.0
    %2027 = vmatpush1.msra.mxu0 0.0
    %2028 = vmatprep.subr.mxu0 0.0
    %2029 = vmatpush1.msra.mxu0 0.0
    %2030 = vmatprep.subr.mxu0 0.0
    %2031 = vmatpush1.msra.mxu0 0.0
    %2032 = vmatprep.mubr.f32.mxu0 0.0
    %2033 = vmatmul.mubr.f32.gmra.mrb[0].mxu0 %v1958
    %v2034 = vpop.f32.mrb[0].mxu0
    %v2035 = vadd.f32 0.0, %v2034
    %v2036 = vpop.f32.mrb[0].mxu0
    %2037 = vmatprep.mubr.f32.mxu0 0.0
    %2038 = vmatmul.mubr.f32.gmra.mrb[0].mxu0 %v1961
    %v2039 = vpop.f32.mrb[0].mxu0
    %v2040 = vadd.f32 0.0, %v2039
    %v2041 = vpop.f32.mrb[0].mxu0
    %2042 = vmatprep.mubr.f32.mxu0 0.0
    %2043 = vmatmul.mubr.f32.gmra.mrb[0].mxu0 %v1964
    %v2044 = vpop.f32.mrb[0].mxu0
    %v2045 = vadd.f32 0.0, %v2044
    %v2046 = vpop.f32.mrb[0].mxu0
    %2047 = vdwg.mxu0
    %2048 = vrot.lane.b32.xlu0 %v299, 64
    %v2049 = vpop.permute.xlu0 %2048
    %2050 = vrot.lane.b32.xlu0 %v301, 64
    %v2051 = vpop.permute.xlu0 %2050
    %2052 = vrot.lane.b32.xlu0 %v303, 64
    %v2053 = vpop.permute.xlu0 %2052
    %v2057 = vsel %vm1089, %v1350, 0
    %v2060 = vsel %vm1089, %v1352, 0
    %v2063 = vsel %vm1089, %v1354, 0
    %v2065 = vsel %vm73, %v2053, 0
    %2067 = vmatprep.subr.mxu0 0.0
    %2068 = vmatpush1.msra.mxu0 %v2049
    %2069 = vmatprep.subr.mxu0 0.0
    %2070 = vmatpush1.msra.mxu0 %v2051
    %2071 = vmatprep.subr.mxu0 0.0
    %2072 = vmatpush1.msra.mxu0 %v2065
    %2073 = vmatprep.subr.mxu0 0.0
    %2074 = vmatpush1.msra.mxu0 0.0
    %2075 = vmatprep.subr.mxu0 0.0
    %2076 = vmatpush1.msra.mxu0 0.0
    %2077 = vmatprep.subr.mxu0 0.0
    %2078 = vmatpush1.msra.mxu0 0.0
    %2079 = vmatprep.subr.mxu0 0.0
    %2080 = vmatpush1.msra.mxu0 0.0
    %2081 = vmatprep.subr.mxu0 0.0
    %2082 = vmatpush1.msra.mxu0 0.0
    %2083 = vmatprep.subr.mxu0 0.0
    %2084 = vmatpush1.msra.mxu0 0.0
    %2085 = vmatprep.subr.mxu0 0.0
    %2086 = vmatpush1.msra.mxu0 0.0
    %2087 = vmatprep.subr.mxu0 0.0
    %2088 = vmatpush1.msra.mxu0 0.0
    %2089 = vmatprep.subr.mxu0 0.0
    %2090 = vmatpush1.msra.mxu0 0.0
    %2091 = vmatprep.subr.mxu0 0.0
    %2092 = vmatpush1.msra.mxu0 0.0
    %2093 = vmatprep.subr.mxu0 0.0
    %2094 = vmatpush1.msra.mxu0 0.0
    %2095 = vmatprep.subr.mxu0 0.0
    %2096 = vmatpush1.msra.mxu0 0.0
    %2097 = vmatprep.subr.mxu0 0.0
    %2098 = vmatpush1.msra.mxu0 0.0
    %2099 = vmatprep.subr.mxu0 0.0
    %2100 = vmatpush1.msra.mxu0 0.0
    %2101 = vmatprep.subr.mxu0 0.0
    %2102 = vmatpush1.msra.mxu0 0.0
    %2103 = vmatprep.subr.mxu0 0.0
    %2104 = vmatpush1.msra.mxu0 0.0
    %2105 = vmatprep.subr.mxu0 0.0
    %2106 = vmatpush1.msra.mxu0 0.0
    %2107 = vmatprep.subr.mxu0 0.0
    %2108 = vmatpush1.msra.mxu0 0.0
    %2109 = vmatprep.subr.mxu0 0.0
    %2110 = vmatpush1.msra.mxu0 0.0
    %2111 = vmatprep.subr.mxu0 0.0
    %2112 = vmatpush1.msra.mxu0 0.0
    %2113 = vmatprep.subr.mxu0 0.0
    %2114 = vmatpush1.msra.mxu0 0.0
    %2115 = vmatprep.subr.mxu0 0.0
    %2116 = vmatpush1.msra.mxu0 0.0
    %2117 = vmatprep.subr.mxu0 0.0
    %2118 = vmatpush1.msra.mxu0 0.0
    %2119 = vmatprep.subr.mxu0 0.0
    %2120 = vmatpush1.msra.mxu0 0.0
    %2121 = vmatprep.subr.mxu0 0.0
    %2122 = vmatpush1.msra.mxu0 0.0
    %2123 = vmatprep.subr.mxu0 0.0
    %2124 = vmatpush1.msra.mxu0 0.0
    %2125 = vmatprep.subr.mxu0 0.0
    %2126 = vmatpush1.msra.mxu0 0.0
    %2127 = vmatprep.subr.mxu0 0.0
    %2128 = vmatpush1.msra.mxu0 0.0
    %2129 = vmatprep.subr.mxu0 0.0
    %2130 = vmatpush1.msra.mxu0 0.0
    %2131 = vmatprep.mubr.f32.mxu0 0.0
    %2132 = vmatmul.mubr.f32.gmra.mrb[0].mxu0 %v2057
    %v2133 = vpop.f32.mrb[0].mxu0
    %v2134 = vadd.f32 0.0, %v2133
    %v2135 = vpop.f32.mrb[0].mxu0
    %2136 = vmatprep.mubr.f32.mxu0 0.0
    %2137 = vmatmul.mubr.f32.gmra.mrb[0].mxu0 %v2060
    %v2138 = vpop.f32.mrb[0].mxu0
    %v2139 = vadd.f32 0.0, %v2138
    %v2140 = vpop.f32.mrb[0].mxu0
    %2141 = vmatprep.mubr.f32.mxu0 0.0
    %2142 = vmatmul.mubr.f32.gmra.mrb[0].mxu0 %v2063
    %v2143 = vpop.f32.mrb[0].mxu0
    %v2144 = vadd.f32 0.0, %v2143
    %v2145 = vpop.f32.mrb[0].mxu0
    %2146 = vdwg.mxu0
    %2150 = vrot.lane.b32.xlu0 %v1540, 4
    %v2151 = vpop.permute.xlu0 %2150
    %2152 = vrot.lane.b32.xlu0 %v1545, 4
    %v2153 = vpop.permute.xlu0 %2152
    %2154 = vrot.lane.b32.xlu0 %v1550, 4
    %v2155 = vpop.permute.xlu0 %2154
    %2162 = vrot.lane.b32.xlu0 %v1639, 8
    %v2163 = vpop.permute.xlu0 %2162
    %2164 = vrot.lane.b32.xlu0 %v1644, 8
    %v2165 = vpop.permute.xlu0 %2164
    %2166 = vrot.lane.b32.xlu0 %v1649, 8
    %v2167 = vpop.permute.xlu0 %2166
    %2174 = vrot.lane.b32.xlu0 %v1738, 12
    %v2175 = vpop.permute.xlu0 %2174
    %2176 = vrot.lane.b32.xlu0 %v1743, 12
    %v2177 = vpop.permute.xlu0 %2176
    %2178 = vrot.lane.b32.xlu0 %v1748, 12
    %v2179 = vpop.permute.xlu0 %2178
    %2186 = vrot.lane.b32.xlu0 %v1837, 16
    %v2187 = vpop.permute.xlu0 %2186
    %2188 = vrot.lane.b32.xlu0 %v1842, 16
    %v2189 = vpop.permute.xlu0 %2188
    %2190 = vrot.lane.b32.xlu0 %v1847, 16
    %v2191 = vpop.permute.xlu0 %2190
    %2198 = vrot.lane.b32.xlu0 %v1936, 20
    %v2199 = vpop.permute.xlu0 %2198
    %2200 = vrot.lane.b32.xlu0 %v1941, 20
    %v2201 = vpop.permute.xlu0 %2200
    %2202 = vrot.lane.b32.xlu0 %v1946, 20
    %v2203 = vpop.permute.xlu0 %2202
    %2210 = vrot.lane.b32.xlu0 %v2035, 24
    %v2211 = vpop.permute.xlu0 %2210
    %2212 = vrot.lane.b32.xlu0 %v2040, 24
    %v2213 = vpop.permute.xlu0 %2212
    %2214 = vrot.lane.b32.xlu0 %v2045, 24
    %v2215 = vpop.permute.xlu0 %2214
    %2222 = vrot.lane.b32.xlu0 %v2134, 28
    %v2223 = vpop.permute.xlu0 %2222
    %2224 = vrot.lane.b32.xlu0 %v2139, 28
    %v2225 = vpop.permute.xlu0 %2224
    %2226 = vrot.lane.b32.xlu0 %v2144, 28
    %v2227 = vpop.permute.xlu0 %2226
    %v2231 = vsel %vm310, %v1441, %v2151
    %v2232 = vsel %vm310, %v1446, %v2153
    %v2233 = vsel %vm310, %v1451, %v2155
    %vm2234 = vcmask 64512
    %v2235 = vsel %vm2234, %v2231, %v2163
    %v2236 = vsel %vm2234, %v2232, %v2165
    %v2237 = vsel %vm2234, %v2233, %v2167
    %vm2238 = vcmask 97280
    %v2239 = vsel %vm2238, %v2235, %v2175
    %v2240 = vsel %vm2238, %v2236, %v2177
    %v2241 = vsel %vm2238, %v2237, %v2179
    %vm2242 = vcmask 130048
    %v2243 = vsel %vm2242, %v2239, %v2187
    %v2244 = vsel %vm2242, %v2240, %v2189
    %v2245 = vsel %vm2242, %v2241, %v2191
    %v2246 = vsel %vm1089, %v2243, %v2199
    %v2247 = vsel %vm1089, %v2244, %v2201
    %v2248 = vsel %vm1089, %v2245, %v2203
    %vm2249 = vcmask 195584
    %v2250 = vsel %vm2249, %v2246, %v2211
    %v2251 = vsel %vm2249, %v2247, %v2213
    %v2252 = vsel %vm2249, %v2248, %v2215
    %vm2253 = vcmask 228352
    %v2254 = vsel %vm2253, %v2250, %v2223
    %v2255 = vsel %vm2253, %v2251, %v2225
    %v2256 = vsel %vm2253, %v2252, %v2227
    %v2257 = vld [vmem:[%s8] sm:$0xff]
    %v2258 = vld [vmem:[%s8 + $0x8] sm:$0xff]
    %v2259 = vld [vmem:[%s8 + $0x10] sm:$0xff]
    %v2260 = vld [vmem:[%s8 + $0x18] sm:$0xff]
    %v2262 = vsel %vm99, %v2254, 0
    %v2265 = vsel %vm99, %v2255, 0
    %v2268 = vsel %vm99, %v2256, 0
    %2270 = vmatprep.subr.mxu0 0.0
    %2271 = vmatpush1.msra.mxu0 %v2257
    %2272 = vmatprep.subr.mxu0 0.0
    %2273 = vmatpush1.msra.mxu0 %v2258
    %2274 = vmatprep.subr.mxu0 0.0
    %2275 = vmatpush1.msra.mxu0 %v2259
    %2276 = vmatprep.subr.mxu0 0.0
    %2277 = vmatpush1.msra.mxu0 %v2260
    %2278 = vmatprep.subr.mxu0 0.0
    %2279 = vmatpush1.msra.mxu0 0.0
    %2280 = vmatprep.subr.mxu0 0.0
    %2281 = vmatpush1.msra.mxu0 0.0
    %2282 = vmatprep.subr.mxu0 0.0
    %2283 = vmatpush1.msra.mxu0 0.0
    %2284 = vmatprep.subr.mxu0 0.0
    %2285 = vmatpush1.msra.mxu0 0.0
    %2286 = vmatprep.subr.mxu0 0.0
    %2287 = vmatpush1.msra.mxu0 0.0
    %2288 = vmatprep.subr.mxu0 0.0
    %2289 = vmatpush1.msra.mxu0 0.0
    %2290 = vmatprep.subr.mxu0 0.0
    %2291 = vmatpush1.msra.mxu0 0.0
    %2292 = vmatprep.subr.mxu0 0.0
    %2293 = vmatpush1.msra.mxu0 0.0
    %2294 = vmatprep.subr.mxu0 0.0
    %2295 = vmatpush1.msra.mxu0 0.0
    %2296 = vmatprep.subr.mxu0 0.0
    %2297 = vmatpush1.msra.mxu0 0.0
    %2298 = vmatprep.subr.mxu0 0.0
    %2299 = vmatpush1.msra.mxu0 0.0
    %2300 = vmatprep.subr.mxu0 0.0
    %2301 = vmatpush1.msra.mxu0 0.0
    %2302 = vmatprep.subr.mxu0 0.0
    %2303 = vmatpush1.msra.mxu0 0.0
    %2304 = vmatprep.subr.mxu0 0.0
    %2305 = vmatpush1.msra.mxu0 0.0
    %2306 = vmatprep.subr.mxu0 0.0
    %2307 = vmatpush1.msra.mxu0 0.0
    %2308 = vmatprep.subr.mxu0 0.0
    %2309 = vmatpush1.msra.mxu0 0.0
    %2310 = vmatprep.subr.mxu0 0.0
    %2311 = vmatpush1.msra.mxu0 0.0
    %2312 = vmatprep.subr.mxu0 0.0
    %2313 = vmatpush1.msra.mxu0 0.0
    %2314 = vmatprep.subr.mxu0 0.0
    %2315 = vmatpush1.msra.mxu0 0.0
    %2316 = vmatprep.subr.mxu0 0.0
    %2317 = vmatpush1.msra.mxu0 0.0
    %2318 = vmatprep.subr.mxu0 0.0
    %2319 = vmatpush1.msra.mxu0 0.0
    %2320 = vmatprep.subr.mxu0 0.0
    %2321 = vmatpush1.msra.mxu0 0.0
    %2322 = vmatprep.subr.mxu0 0.0
    %2323 = vmatpush1.msra.mxu0 0.0
    %2324 = vmatprep.subr.mxu0 0.0
    %2325 = vmatpush1.msra.mxu0 0.0
    %2326 = vmatprep.subr.mxu0 0.0
    %2327 = vmatpush1.msra.mxu0 0.0
    %2328 = vmatprep.subr.mxu0 0.0
    %2329 = vmatpush1.msra.mxu0 0.0
    %2330 = vmatprep.subr.mxu0 0.0
    %2331 = vmatpush1.msra.mxu0 0.0
    %2332 = vmatprep.subr.mxu0 0.0
    %2333 = vmatpush1.msra.mxu0 0.0
    %2334 = vmatprep.mubr.f32.mxu0 0.0
    %2335 = vmatmul.mubr.f32.gmra.mrb[0].mxu0 %v2262
    %v2336 = vpop.f32.mrb[0].mxu0
    %v2337 = vadd.f32 0.0, %v2336
    %v2338 = vpop.f32.mrb[0].mxu0
    %2339 = vmatprep.mubr.f32.mxu0 0.0
    %2340 = vmatmul.mubr.f32.gmra.mrb[0].mxu0 %v2265
    %v2341 = vpop.f32.mrb[0].mxu0
    %v2342 = vadd.f32 0.0, %v2341
    %v2343 = vpop.f32.mrb[0].mxu0
    %2344 = vmatprep.mubr.f32.mxu0 0.0
    %2345 = vmatmul.mubr.f32.gmra.mrb[0].mxu0 %v2268
    %v2346 = vpop.f32.mrb[0].mxu0
    %v2347 = vadd.f32 0.0, %v2346
    %v2348 = vpop.f32.mrb[0].mxu0
    %2349 = vdwg.mxu0
    %v2350 = vadd.f32 %v80, %v2337
    %v2351 = vadd.f32 %v76, %v2342
    %v2352 = vadd.f32 %v75, %v2347
    %v2353 = vld [vmem:[%s9] sm:$0x1]
    %v2355 = vlaneseq
    %v2356 = vshrl.u32 %v2355, 7
    %v2357 = vsub.s32 0, %v2356
    %v2358 = vrot.slane %v2353, %v2357
    %v2360 = vadd.f32 %v2350, %v2358
    %v2361 = vadd.f32 %v2351, %v2358
    %v2362 = vadd.f32 %v2352, %v2358
    %v2363 = vld [vmem:[%s10] sm:$0x1]
    %v2364 = vld [vmem:[%s11] sm:$0x1]
    %v2365 = vsel %vm99, %v2360, 0.0
    %2366 = vadd.xlane.f32.xlu0 %v2365
    %v2367 = vpop.xlane.xlu0 %2366
    %v2368 = vsel %vm99, %v2361, 0.0
    %2369 = vadd.xlane.f32.xlu0 %v2368
    %v2370 = vpop.xlane.xlu0 %2369
    %v2371 = vsel %vm106, %v2362, 0.0
    %2372 = vadd.xlane.f32.xlu0 %v2371
    %v2373 = vpop.xlane.xlu0 %2372
    %v2374 = vmul.f32 %v2367, %v110
    %v2375 = vmul.f32 %v2370, %v110
    %v2376 = vmul.f32 %v2373, %v110
    %v2377 = vsub.f32 %v2360, %v2374
    %v2378 = vsub.f32 %v2361, %v2375
    %v2379 = vsub.f32 %v2362, %v2376
    %v2380 = vmul.f32 %v2377, %v2377
    %v2381 = vmul.f32 %v2378, %v2378
    %v2382 = vmul.f32 %v2379, %v2379
    %v2383 = vsel %vm99, %v2380, 0.0
    %2384 = vadd.xlane.f32.xlu0 %v2383
    %v2385 = vpop.xlane.xlu0 %2384
    %v2386 = vsel %vm99, %v2381, 0.0
    %2387 = vadd.xlane.f32.xlu0 %v2386
    %v2388 = vpop.xlane.xlu0 %2387
    %v2389 = vsel %vm106, %v2382, 0.0
    %2390 = vadd.xlane.f32.xlu0 %v2389
    %v2391 = vpop.xlane.xlu0 %2390
    %v2392 = vmul.f32 %v2385, %v110
    %v2393 = vmul.f32 %v2388, %v110
    %v2394 = vmul.f32 %v2391, %v110
    %v2395 = vadd.f32 %v2392, 1e-06
    %v2396 = vadd.f32 %v2393, 1e-06
    %v2397 = vadd.f32 %v2394, 1e-06
    %v2398 = vrsqrt.pop %v2395
    %v2399 = vrsqrt.pop %v2396
    %v2400 = vrsqrt.pop %v2397
    %v2401 = vmul.f32 %v2377, %v2398
    %v2402 = vmul.f32 %v2378, %v2399
    %v2403 = vmul.f32 %v2379, %v2400
    %v2405 = vlaneseq
    %v2406 = vshrl.u32 %v2405, 7
    %v2407 = vsub.s32 0, %v2406
    %v2408 = vrot.slane %v2363, %v2407
    %v2410 = vmul.f32 %v2401, %v2408
    %v2411 = vmul.f32 %v2402, %v2408
    %v2412 = vmul.f32 %v2403, %v2408
    %v2414 = vlaneseq
    %v2415 = vshrl.u32 %v2414, 7
    %v2416 = vsub.s32 0, %v2415
    %v2417 = vrot.slane %v2364, %v2416
    %v2419 = vadd.f32 %v2410, %v2417
    %v2420 = vadd.f32 %v2411, %v2417
    %v2421 = vadd.f32 %v2412, %v2417
    %v2422 = vld [vmem:[%s12] sm:$0xff]
    %v2423 = vld [vmem:[%s12 + $0x8] sm:$0xff]
    %v2424 = vld [vmem:[%s12 + $0x10] sm:$0xff]
    %v2425 = vld [vmem:[%s12 + $0x18] sm:$0xff]
    %v2426 = vld [vmem:[%s13] sm:$0x1]
    %v2428 = vlaneseq
    %v2429 = vshrl.u32 %v2428, 7
    %v2430 = vsub.s32 0, %v2429
    %v2431 = vrot.slane %v2426, %v2430
    %v2434 = vsel %vm99, %v2419, 0
    %v2437 = vsel %vm99, %v2420, 0
    %v2440 = vsel %vm99, %v2421, 0
    %2442 = vmatprep.subr.mxu0 0.0
    %2443 = vmatpush1.msra.mxu0 %v2422
    %2444 = vmatprep.subr.mxu0 0.0
    %2445 = vmatpush1.msra.mxu0 %v2423
    %2446 = vmatprep.subr.mxu0 0.0
    %2447 = vmatpush1.msra.mxu0 %v2424
    %2448 = vmatprep.subr.mxu0 0.0
    %2449 = vmatpush1.msra.mxu0 %v2425
    %2450 = vmatprep.subr.mxu0 0.0
    %2451 = vmatpush1.msra.mxu0 0.0
    %2452 = vmatprep.subr.mxu0 0.0
    %2453 = vmatpush1.msra.mxu0 0.0
    %2454 = vmatprep.subr.mxu0 0.0
    %2455 = vmatpush1.msra.mxu0 0.0
    %2456 = vmatprep.subr.mxu0 0.0
    %2457 = vmatpush1.msra.mxu0 0.0
    %2458 = vmatprep.subr.mxu0 0.0
    %2459 = vmatpush1.msra.mxu0 0.0
    %2460 = vmatprep.subr.mxu0 0.0
    %2461 = vmatpush1.msra.mxu0 0.0
    %2462 = vmatprep.subr.mxu0 0.0
    %2463 = vmatpush1.msra.mxu0 0.0
    %2464 = vmatprep.subr.mxu0 0.0
    %2465 = vmatpush1.msra.mxu0 0.0
    %2466 = vmatprep.subr.mxu0 0.0
    %2467 = vmatpush1.msra.mxu0 0.0
    %2468 = vmatprep.subr.mxu0 0.0
    %2469 = vmatpush1.msra.mxu0 0.0
    %2470 = vmatprep.subr.mxu0 0.0
    %2471 = vmatpush1.msra.mxu0 0.0
    %2472 = vmatprep.subr.mxu0 0.0
    %2473 = vmatpush1.msra.mxu0 0.0
    %2474 = vmatprep.subr.mxu0 0.0
    %2475 = vmatpush1.msra.mxu0 0.0
    %2476 = vmatprep.subr.mxu0 0.0
    %2477 = vmatpush1.msra.mxu0 0.0
    %2478 = vmatprep.subr.mxu0 0.0
    %2479 = vmatpush1.msra.mxu0 0.0
    %2480 = vmatprep.subr.mxu0 0.0
    %2481 = vmatpush1.msra.mxu0 0.0
    %2482 = vmatprep.subr.mxu0 0.0
    %2483 = vmatpush1.msra.mxu0 0.0
    %2484 = vmatprep.subr.mxu0 0.0
    %2485 = vmatpush1.msra.mxu0 0.0
    %2486 = vmatprep.subr.mxu0 0.0
    %2487 = vmatpush1.msra.mxu0 0.0
    %2488 = vmatprep.subr.mxu0 0.0
    %2489 = vmatpush1.msra.mxu0 0.0
    %2490 = vmatprep.subr.mxu0 0.0
    %2491 = vmatpush1.msra.mxu0 0.0
    %2492 = vmatprep.subr.mxu0 0.0
    %2493 = vmatpush1.msra.mxu0 0.0
    %2494 = vmatprep.subr.mxu0 0.0
    %2495 = vmatpush1.msra.mxu0 0.0
    %2496 = vmatprep.subr.mxu0 0.0
    %2497 = vmatpush1.msra.mxu0 0.0
    %2498 = vmatprep.subr.mxu0 0.0
    %2499 = vmatpush1.msra.mxu0 0.0
    %2500 = vmatprep.subr.mxu0 0.0
    %2501 = vmatpush1.msra.mxu0 0.0
    %2502 = vmatprep.subr.mxu0 0.0
    %2503 = vmatpush1.msra.mxu0 0.0
    %2504 = vmatprep.subr.mxu0 0.0
    %2505 = vmatpush1.msra.mxu0 0.0
    %2506 = vmatprep.mubr.f32.mxu0 0.0
    %2507 = vmatmul.mubr.f32.gmra.mrb[0].mxu0 %v2434
    %v2508 = vpop.f32.mrb[0].mxu0
    %v2509 = vadd.f32 %v2431, %v2508
    %v2510 = vpop.f32.mrb[0].mxu0
    %2511 = vmatprep.mubr.f32.mxu0 0.0
    %2512 = vmatmul.mubr.f32.gmra.mrb[0].mxu0 %v2437
    %v2513 = vpop.f32.mrb[0].mxu0
    %v2514 = vadd.f32 %v2431, %v2513
    %v2515 = vpop.f32.mrb[0].mxu0
    %2516 = vmatprep.mubr.f32.mxu0 0.0
    %2517 = vmatmul.mubr.f32.gmra.mrb[0].mxu0 %v2440
    %v2518 = vpop.f32.mrb[0].mxu0
    %v2519 = vadd.f32 %v2431, %v2518
    %v2520 = vpop.f32.mrb[0].mxu0
    %2521 = vdwg.mxu0
    %v2522 = vmul.f32 %v2509, 0.5
    %v2523 = vmul.f32 %v2514, 0.5
    %v2524 = vmul.f32 %v2519, 0.5
    %v2525 = vmul.f32 %v2509, 0.70710677
    %v2526 = vmul.f32 %v2514, 0.70710677
    %v2527 = vmul.f32 %v2519, 0.70710677
    %v2528 = verf.f32.pop %v2525
    %v2529 = verf.f32.pop %v2526
    %v2530 = verf.f32.pop %v2527
    %v2531 = vadd.f32 %v2528, 1.0
    %v2532 = vadd.f32 %v2529, 1.0
    %v2533 = vadd.f32 %v2530, 1.0
    %v2534 = vmul.f32 %v2522, %v2531
    %v2535 = vmul.f32 %v2523, %v2532
    %v2536 = vmul.f32 %v2524, %v2533
    %v2537 = vld [vmem:[%s14] sm:$0xff]
    %v2538 = vld [vmem:[%s14 + $0x8] sm:$0xff]
    %v2539 = vld [vmem:[%s14 + $0x10] sm:$0xff]
    %v2540 = vld [vmem:[%s14 + $0x18] sm:$0xff]
    %v2541 = vld [vmem:[%s14 + $0x20] sm:$0xff]
    %v2542 = vld [vmem:[%s14 + $0x28] sm:$0xff]
    %v2543 = vld [vmem:[%s14 + $0x30] sm:$0xff]
    %v2544 = vld [vmem:[%s14 + $0x38] sm:$0xff]
    %v2545 = vld [vmem:[%s14 + $0x40] sm:$0xff]
    %v2546 = vld [vmem:[%s14 + $0x48] sm:$0xff]
    %v2547 = vld [vmem:[%s14 + $0x50] sm:$0xff]
    %v2548 = vld [vmem:[%s14 + $0x58] sm:$0xff]
    %v2549 = vld [vmem:[%s14 + $0x60] sm:$0xff]
    %v2550 = vld [vmem:[%s14 + $0x68] sm:$0xff]
    %v2551 = vld [vmem:[%s14 + $0x70] sm:$0xff]
    %v2552 = vld [vmem:[%s14 + $0x78] sm:$0xff]
    %2553 = vmatprep.subr.mxu0 0.0
    %2554 = vmatpush1.msra.mxu0 %v2537
    %2555 = vmatprep.subr.mxu0 0.0
    %2556 = vmatpush1.msra.mxu0 %v2538
    %2557 = vmatprep.subr.mxu0 0.0
    %2558 = vmatpush1.msra.mxu0 %v2539
    %2559 = vmatprep.subr.mxu0 0.0
    %2560 = vmatpush1.msra.mxu0 %v2540
    %2561 = vmatprep.subr.mxu0 0.0
    %2562 = vmatpush1.msra.mxu0 %v2541
    %2563 = vmatprep.subr.mxu0 0.0
    %2564 = vmatpush1.msra.mxu0 %v2542
    %2565 = vmatprep.subr.mxu0 0.0
    %2566 = vmatpush1.msra.mxu0 %v2543
    %2567 = vmatprep.subr.mxu0 0.0
    %2568 = vmatpush1.msra.mxu0 %v2544
    %2569 = vmatprep.subr.mxu0 0.0
    %2570 = vmatpush1.msra.mxu0 %v2545
    %2571 = vmatprep.subr.mxu0 0.0
    %2572 = vmatpush1.msra.mxu0 %v2546
    %2573 = vmatprep.subr.mxu0 0.0
    %2574 = vmatpush1.msra.mxu0 %v2547
    %2575 = vmatprep.subr.mxu0 0.0
    %2576 = vmatpush1.msra.mxu0 %v2548
    %2577 = vmatprep.subr.mxu0 0.0
    %2578 = vmatpush1.msra.mxu0 %v2549
    %2579 = vmatprep.subr.mxu0 0.0
    %2580 = vmatpush1.msra.mxu0 %v2550
    %2581 = vmatprep.subr.mxu0 0.0
    %2582 = vmatpush1.msra.mxu0 %v2551
    %2583 = vmatprep.subr.mxu0 0.0
    %2584 = vmatpush1.msra.mxu0 %v2552
    %2585 = vmatprep.subr.mxu0 0.0
    %2586 = vmatpush1.msra.mxu0 0.0
    %2587 = vmatprep.subr.mxu0 0.0
    %2588 = vmatpush1.msra.mxu0 0.0
    %2589 = vmatprep.subr.mxu0 0.0
    %2590 = vmatpush1.msra.mxu0 0.0
    %2591 = vmatprep.subr.mxu0 0.0
    %2592 = vmatpush1.msra.mxu0 0.0
    %2593 = vmatprep.subr.mxu0 0.0
    %2594 = vmatpush1.msra.mxu0 0.0
    %2595 = vmatprep.subr.mxu0 0.0
    %2596 = vmatpush1.msra.mxu0 0.0
    %2597 = vmatprep.subr.mxu0 0.0
    %2598 = vmatpush1.msra.mxu0 0.0
    %2599 = vmatprep.subr.mxu0 0.0
    %2600 = vmatpush1.msra.mxu0 0.0
    %2601 = vmatprep.subr.mxu0 0.0
    %2602 = vmatpush1.msra.mxu0 0.0
    %2603 = vmatprep.subr.mxu0 0.0
    %2604 = vmatpush1.msra.mxu0 0.0
    %2605 = vmatprep.subr.mxu0 0.0
    %2606 = vmatpush1.msra.mxu0 0.0
    %2607 = vmatprep.subr.mxu0 0.0
    %2608 = vmatpush1.msra.mxu0 0.0
    %2609 = vmatprep.subr.mxu0 0.0
    %2610 = vmatpush1.msra.mxu0 0.0
    %2611 = vmatprep.subr.mxu0 0.0
    %2612 = vmatpush1.msra.mxu0 0.0
    %2613 = vmatprep.subr.mxu0 0.0
    %2614 = vmatpush1.msra.mxu0 0.0
    %2615 = vmatprep.subr.mxu0 0.0
    %2616 = vmatpush1.msra.mxu0 0.0
    %2617 = vmatprep.mubr.f32.mxu0 0.0
    %2618 = vmatmul.mubr.f32.gmra.mrb[0].mxu0 %v2534
    %v2619 = vpop.f32.mrb[0].mxu0
    %v2620 = vadd.f32 0.0, %v2619
    %v2621 = vpop.f32.mrb[0].mxu0
    %2622 = vmatprep.mubr.f32.mxu0 0.0
    %2623 = vmatmul.mubr.f32.gmra.mrb[0].mxu0 %v2535
    %v2624 = vpop.f32.mrb[0].mxu0
    %v2625 = vadd.f32 0.0, %v2624
    %v2626 = vpop.f32.mrb[0].mxu0
    %2627 = vmatprep.mubr.f32.mxu0 0.0
    %2628 = vmatmul.mubr.f32.gmra.mrb[0].mxu0 %v2536
    %v2629 = vpop.f32.mrb[0].mxu0
    %v2630 = vadd.f32 0.0, %v2629
    %v2631 = vpop.f32.mrb[0].mxu0
    %2632 = vdwg.mxu0
    %v2633 = vadd.f32 %v2360, %v2620
    %v2634 = vadd.f32 %v2361, %v2625
    %v2635 = vadd.f32 %v2362, %v2630
    %v2636 = vld [vmem:[%s15] sm:$0x1]
    %v2638 = vlaneseq
    %v2639 = vshrl.u32 %v2638, 7
    %v2640 = vsub.s32 0, %v2639
    %v2641 = vrot.slane %v2636, %v2640
    %v2643 = vadd.f32 %v2633, %v2641
    %v2644 = vadd.f32 %v2634, %v2641
    %v2645 = vadd.f32 %v2635, %v2641
    %s2646 = scalar_lea.vmem %s4, 1
    %v2647 = vld [vmem:[%s2646] sm:$0x1]
    %s2648 = scalar_lea.vmem %s5, 1
    %v2649 = vld [vmem:[%s2648] sm:$0x1]
    %v2650 = vsel %vm99, %v2643, 0.0
    %2651 = vadd.xlane.f32.xlu0 %v2650
    %v2652 = vpop.xlane.xlu0 %2651
    %v2653 = vsel %vm99, %v2644, 0.0
    %2654 = vadd.xlane.f32.xlu0 %v2653
    %v2655 = vpop.xlane.xlu0 %2654
    %v2656 = vsel %vm106, %v2645, 0.0
    %2657 = vadd.xlane.f32.xlu0 %v2656
    %v2658 = vpop.xlane.xlu0 %2657
    %v2659 = vmul.f32 %v2652, %v110
    %v2660 = vmul.f32 %v2655, %v110
    %v2661 = vmul.f32 %v2658, %v110
    %v2662 = vsub.f32 %v2643, %v2659
    %v2663 = vsub.f32 %v2644, %v2660
    %v2664 = vsub.f32 %v2645, %v2661
    %v2665 = vmul.f32 %v2662, %v2662
    %v2666 = vmul.f32 %v2663, %v2663
    %v2667 = vmul.f32 %v2664, %v2664
    %v2668 = vsel %vm99, %v2665, 0.0
    %2669 = vadd.xlane.f32.xlu0 %v2668
    %v2670 = vpop.xlane.xlu0 %2669
    %v2671 = vsel %vm99, %v2666, 0.0
    %2672 = vadd.xlane.f32.xlu0 %v2671
    %v2673 = vpop.xlane.xlu0 %2672
    %v2674 = vsel %vm106, %v2667, 0.0
    %2675 = vadd.xlane.f32.xlu0 %v2674
    %v2676 = vpop.xlane.xlu0 %2675
    %v2677 = vmul.f32 %v2670, %v110
    %v2678 = vmul.f32 %v2673, %v110
    %v2679 = vmul.f32 %v2676, %v110
    %v2680 = vadd.f32 %v2677, 1e-06
    %v2681 = vadd.f32 %v2678, 1e-06
    %v2682 = vadd.f32 %v2679, 1e-06
    %v2683 = vrsqrt.pop %v2680
    %v2684 = vrsqrt.pop %v2681
    %v2685 = vrsqrt.pop %v2682
    %v2686 = vmul.f32 %v2662, %v2683
    %v2687 = vmul.f32 %v2663, %v2684
    %v2688 = vmul.f32 %v2664, %v2685
    %v2690 = vlaneseq
    %v2691 = vshrl.u32 %v2690, 7
    %v2692 = vsub.s32 0, %v2691
    %v2693 = vrot.slane %v2647, %v2692
    %v2695 = vmul.f32 %v2686, %v2693
    %v2696 = vmul.f32 %v2687, %v2693
    %v2697 = vmul.f32 %v2688, %v2693
    %v2699 = vlaneseq
    %v2700 = vshrl.u32 %v2699, 7
    %v2701 = vsub.s32 0, %v2700
    %v2702 = vrot.slane %v2649, %v2701
    %v2704 = vadd.f32 %v2695, %v2702
    %v2705 = vadd.f32 %v2696, %v2702
    %v2706 = vadd.f32 %v2697, %v2702
    %s2707 = scalar_lea.vmem %s6, 32
    %v2708 = vld [vmem:[%s2707] sm:$0xff]
    %v2709 = vld [vmem:[%s2707 + $0x8] sm:$0xff]
    %v2710 = vld [vmem:[%s2707 + $0x10] sm:$0xff]
    %v2711 = vld [vmem:[%s2707 + $0x18] sm:$0xff]
    %s2712 = scalar_lea.vmem %s7, 1
    %v2713 = vld [vmem:[%s2712] sm:$0x1]
    %v2715 = vlaneseq
    %v2716 = vshrl.u32 %v2715, 7
    %v2717 = vsub.s32 0, %v2716
    %v2718 = vrot.slane %v2713, %v2717
    %v2721 = vsel %vm99, %v2704, 0
    %v2724 = vsel %vm99, %v2705, 0
    %v2727 = vsel %vm99, %v2706, 0
    %2729 = vmatprep.subr.mxu0 0.0
    %2730 = vmatpush1.msra.mxu0 %v2708
    %2731 = vmatprep.subr.mxu0 0.0
    %2732 = vmatpush1.msra.mxu0 %v2709
    %2733 = vmatprep.subr.mxu0 0.0
    %2734 = vmatpush1.msra.mxu0 %v2710
    %2735 = vmatprep.subr.mxu0 0.0
    %2736 = vmatpush1.msra.mxu0 %v2711
    %2737 = vmatprep.subr.mxu0 0.0
    %2738 = vmatpush1.msra.mxu0 0.0
    %2739 = vmatprep.subr.mxu0 0.0
    %2740 = vmatpush1.msra.mxu0 0.0
    %2741 = vmatprep.subr.mxu0 0.0
    %2742 = vmatpush1.msra.mxu0 0.0
    %2743 = vmatprep.subr.mxu0 0.0
    %2744 = vmatpush1.msra.mxu0 0.0
    %2745 = vmatprep.subr.mxu0 0.0
    %2746 = vmatpush1.msra.mxu0 0.0
    %2747 = vmatprep.subr.mxu0 0.0
    %2748 = vmatpush1.msra.mxu0 0.0
    %2749 = vmatprep.subr.mxu0 0.0
    %2750 = vmatpush1.msra.mxu0 0.0
    %2751 = vmatprep.subr.mxu0 0.0
    %2752 = vmatpush1.msra.mxu0 0.0
    %2753 = vmatprep.subr.mxu0 0.0
    %2754 = vmatpush1.msra.mxu0 0.0
    %2755 = vmatprep.subr.mxu0 0.0
    %2756 = vmatpush1.msra.mxu0 0.0
    %2757 = vmatprep.subr.mxu0 0.0
    %2758 = vmatpush1.msra.mxu0 0.0
    %2759 = vmatprep.subr.mxu0 0.0
    %2760 = vmatpush1.msra.mxu0 0.0
    %2761 = vmatprep.subr.mxu0 0.0
    %2762 = vmatpush1.msra.mxu0 0.0
    %2763 = vmatprep.subr.mxu0 0.0
    %2764 = vmatpush1.msra.mxu0 0.0
    %2765 = vmatprep.subr.mxu0 0.0
    %2766 = vmatpush1.msra.mxu0 0.0
    %2767 = vmatprep.subr.mxu0 0.0
    %2768 = vmatpush1.msra.mxu0 0.0
    %2769 = vmatprep.subr.mxu0 0.0
    %2770 = vmatpush1.msra.mxu0 0.0
    %2771 = vmatprep.subr.mxu0 0.0
    %2772 = vmatpush1.msra.mxu0 0.0
    %2773 = vmatprep.subr.mxu0 0.0
    %2774 = vmatpush1.msra.mxu0 0.0
    %2775 = vmatprep.subr.mxu0 0.0
    %2776 = vmatpush1.msra.mxu0 0.0
    %2777 = vmatprep.subr.mxu0 0.0
    %2778 = vmatpush1.msra.mxu0 0.0
    %2779 = vmatprep.subr.mxu0 0.0
    %2780 = vmatpush1.msra.mxu0 0.0
    %2781 = vmatprep.subr.mxu0 0.0
    %2782 = vmatpush1.msra.mxu0 0.0
    %2783 = vmatprep.subr.mxu0 0.0
    %2784 = vmatpush1.msra.mxu0 0.0
    %2785 = vmatprep.subr.mxu0 0.0
    %2786 = vmatpush1.msra.mxu0 0.0
    %2787 = vmatprep.subr.mxu0 0.0
    %2788 = vmatpush1.msra.mxu0 0.0
    %2789 = vmatprep.subr.mxu0 0.0
    %2790 = vmatpush1.msra.mxu0 0.0
    %2791 = vmatprep.subr.mxu0 0.0
    %2792 = vmatpush1.msra.mxu0 0.0
    %2793 = vmatprep.mubr.f32.mxu0 0.0
    %2794 = vmatmul.mubr.f32.gmra.mrb[0].mxu0 %v2721
    %v2795 = vpop.f32.mrb[0].mxu0
    %v2796 = vadd.f32 %v2718, %v2795
    %v2797 = vpop.f32.mrb[0].mxu0
    %2798 = vmatprep.mubr.f32.mxu0 0.0
    %2799 = vmatmul.mubr.f32.gmra.mrb[0].mxu0 %v2724
    %v2800 = vpop.f32.mrb[0].mxu0
    %v2801 = vadd.f32 %v2718, %v2800
    %v2802 = vpop.f32.mrb[0].mxu0
    %2803 = vmatprep.mubr.f32.mxu0 0.0
    %2804 = vmatmul.mubr.f32.gmra.mrb[0].mxu0 %v2727
    %v2805 = vpop.f32.mrb[0].mxu0
    %v2806 = vadd.f32 %v2718, %v2805
    %v2807 = vpop.f32.mrb[0].mxu0
    %2808 = vdwg.mxu0
    %2812 = vrot.lane.b32.xlu0 %v2796, 124
    %v2813 = vpop.permute.xlu0 %2812
    %2814 = vrot.lane.b32.xlu0 %v2801, 124
    %v2815 = vpop.permute.xlu0 %2814
    %2816 = vrot.lane.b32.xlu0 %v2806, 124
    %v2817 = vpop.permute.xlu0 %2816
    %2818 = vrot.lane.b32.xlu0 %v2796, 120
    %v2819 = vpop.permute.xlu0 %2818
    %2820 = vrot.lane.b32.xlu0 %v2801, 120
    %v2821 = vpop.permute.xlu0 %2820
    %2822 = vrot.lane.b32.xlu0 %v2806, 120
    %v2823 = vpop.permute.xlu0 %2822
    %2824 = vrot.lane.b32.xlu0 %v2796, 116
    %v2825 = vpop.permute.xlu0 %2824
    %2826 = vrot.lane.b32.xlu0 %v2801, 116
    %v2827 = vpop.permute.xlu0 %2826
    %2828 = vrot.lane.b32.xlu0 %v2806, 116
    %v2829 = vpop.permute.xlu0 %2828
    %2830 = vrot.lane.b32.xlu0 %v2796, 112
    %v2831 = vpop.permute.xlu0 %2830
    %2832 = vrot.lane.b32.xlu0 %v2801, 112
    %v2833 = vpop.permute.xlu0 %2832
    %2834 = vrot.lane.b32.xlu0 %v2806, 112
    %v2835 = vpop.permute.xlu0 %2834
    %2836 = vrot.lane.b32.xlu0 %v2796, 108
    %v2837 = vpop.permute.xlu0 %2836
    %2838 = vrot.lane.b32.xlu0 %v2801, 108
    %v2839 = vpop.permute.xlu0 %2838
    %2840 = vrot.lane.b32.xlu0 %v2806, 108
    %v2841 = vpop.permute.xlu0 %2840
    %2842 = vrot.lane.b32.xlu0 %v2796, 104
    %v2843 = vpop.permute.xlu0 %2842
    %2844 = vrot.lane.b32.xlu0 %v2801, 104
    %v2845 = vpop.permute.xlu0 %2844
    %2846 = vrot.lane.b32.xlu0 %v2806, 104
    %v2847 = vpop.permute.xlu0 %2846
    %2848 = vrot.lane.b32.xlu0 %v2796, 100
    %v2849 = vpop.permute.xlu0 %2848
    %2850 = vrot.lane.b32.xlu0 %v2801, 100
    %v2851 = vpop.permute.xlu0 %2850
    %2852 = vrot.lane.b32.xlu0 %v2806, 100
    %v2853 = vpop.permute.xlu0 %2852
    %2854 = vrot.lane.b32.xlu0 %v2796, 96
    %v2855 = vpop.permute.xlu0 %2854
    %2856 = vrot.lane.b32.xlu0 %v2801, 96
    %v2857 = vpop.permute.xlu0 %2856
    %2858 = vrot.lane.b32.xlu0 %v2806, 96
    %v2859 = vpop.permute.xlu0 %2858
    %v2860 = vsel %vm310, %v2796, 0
    %v2862 = vsel %vm310, %v2801, 0
    %v2864 = vsel %vm310, %v2806, 0
    %v2866 = vsel %vm310, %v2855, 0
    %v2868 = vsel %vm310, %v2857, 0
    %v2870 = vsel %vm310, %v2859, 0
    %2872 = vmatprep.subr.mxu0 0.0
    %2873 = vmatpush1.xpose.msra.mxu0 %v2866
    %2874 = vmatprep.subr.mxu0 0.0
    %2875 = vmatpush1.xpose.msra.mxu0 %v2868
    %2876 = vmatprep.subr.mxu0 0.0
    %2877 = vmatpush1.xpose.msra.mxu0 %v2870
    %2878 = vmatprep.subr.mxu0 0.0
    %2879 = vmatpush1.xpose.msra.mxu0 0.0
    %2880 = vmatprep.subr.mxu0 0.0
    %2881 = vmatpush1.xpose.msra.mxu0 0.0
    %2882 = vmatprep.subr.mxu0 0.0
    %2883 = vmatpush1.xpose.msra.mxu0 0.0
    %2884 = vmatprep.subr.mxu0 0.0
    %2885 = vmatpush1.xpose.msra.mxu0 0.0
    %2886 = vmatprep.subr.mxu0 0.0
    %2887 = vmatpush1.xpose.msra.mxu0 0.0
    %2888 = vmatprep.subr.mxu0 0.0
    %2889 = vmatpush1.xpose.msra.mxu0 0.0
    %2890 = vmatprep.subr.mxu0 0.0
    %2891 = vmatpush1.xpose.msra.mxu0 0.0
    %2892 = vmatprep.subr.mxu0 0.0
    %2893 = vmatpush1.xpose.msra.mxu0 0.0
    %2894 = vmatprep.subr.mxu0 0.0
    %2895 = vmatpush1.xpose.msra.mxu0 0.0
    %2896 = vmatprep.subr.mxu0 0.0
    %2897 = vmatpush1.xpose.msra.mxu0 0.0
    %2898 = vmatprep.subr.mxu0 0.0
    %2899 = vmatpush1.xpose.msra.mxu0 0.0
    %2900 = vmatprep.subr.mxu0 0.0
    %2901 = vmatpush1.xpose.msra.mxu0 0.0
    %2902 = vmatprep.subr.mxu0 0.0
    %2903 = vmatpush1.xpose.msra.mxu0 0.0
    %2904 = vmatprep.subr.mxu0 0.0
    %2905 = vmatpush1.xpose.msra.mxu0 0.0
    %2906 = vmatprep.subr.mxu0 0.0
    %2907 = vmatpush1.xpose.msra.mxu0 0.0
    %2908 = vmatprep.subr.mxu0 0.0
    %2909 = vmatpush1.xpose.msra.mxu0 0.0
    %2910 = vmatprep.subr.mxu0 0.0
    %2911 = vmatpush1.xpose.msra.mxu0 0.0
    %2912 = vmatprep.subr.mxu0 0.0
    %2913 = vmatpush1.xpose.msra.mxu0 0.0
    %2914 = vmatprep.subr.mxu0 0.0
    %2915 = vmatpush1.xpose.msra.mxu0 0.0
    %2916 = vmatprep.subr.mxu0 0.0
    %2917 = vmatpush1.xpose.msra.mxu0 0.0
    %2918 = vmatprep.subr.mxu0 0.0
    %2919 = vmatpush1.xpose.msra.mxu0 0.0
    %2920 = vmatprep.subr.mxu0 0.0
    %2921 = vmatpush1.xpose.msra.mxu0 0.0
    %2922 = vmatprep.subr.mxu0 0.0
    %2923 = vmatpush1.xpose.msra.mxu0 0.0
    %2924 = vmatprep.subr.mxu0 0.0
    %2925 = vmatpush1.xpose.msra.mxu0 0.0
    %2926 = vmatprep.subr.mxu0 0.0
    %2927 = vmatpush1.xpose.msra.mxu0 0.0
    %2928 = vmatprep.subr.mxu0 0.0
    %2929 = vmatpush1.xpose.msra.mxu0 0.0
    %2930 = vmatprep.subr.mxu0 0.0
    %2931 = vmatpush1.xpose.msra.mxu0 0.0
    %2932 = vmatprep.subr.mxu0 0.0
    %2933 = vmatpush1.xpose.msra.mxu0 0.0
    %2934 = vmatprep.subr.mxu0 0.0
    %2935 = vmatpush1.xpose.msra.mxu0 0.0
    %2936 = vmatprep.mubr.f32.mxu0 0.0
    %2937 = vmatmul.mubr.f32.gmra.mrb[0].mxu0 %v2860
    %v2938 = vpop.f32.mrb[0].mxu0
    %v2939 = vadd.f32 %v94, %v2938
    %v2940 = vpop.f32.mrb[0].mxu0
    %2941 = vmatprep.mubr.f32.mxu0 0.0
    %2942 = vmatmul.mubr.f32.gmra.mrb[0].mxu0 %v2862
    %v2943 = vpop.f32.mrb[0].mxu0
    %v2944 = vadd.f32 %v95, %v2943
    %v2945 = vpop.f32.mrb[0].mxu0
    %2946 = vmatprep.mubr.f32.mxu0 0.0
    %2947 = vmatmul.mubr.f32.gmra.mrb[0].mxu0 %v2864
    %v2948 = vpop.f32.mrb[0].mxu0
    %v2949 = vadd.f32 %v96, %v2948
    %v2950 = vpop.f32.mrb[0].mxu0
    %2951 = vdwg.mxu0
    %2952 = vrot.lane.b32.xlu0 %v2813, 96
    %v2953 = vpop.permute.xlu0 %2952
    %2954 = vrot.lane.b32.xlu0 %v2815, 96
    %v2955 = vpop.permute.xlu0 %2954
    %2956 = vrot.lane.b32.xlu0 %v2817, 96
    %v2957 = vpop.permute.xlu0 %2956
    %v2958 = vsel %vm310, %v2813, 0
    %v2960 = vsel %vm310, %v2815, 0
    %v2962 = vsel %vm310, %v2817, 0
    %v2964 = vsel %vm310, %v2953, 0
    %v2966 = vsel %vm310, %v2955, 0
    %v2968 = vsel %vm310, %v2957, 0
    %2970 = vmatprep.subr.mxu0 0.0
    %2971 = vmatpush1.xpose.msra.mxu0 %v2964
    %2972 = vmatprep.subr.mxu0 0.0
    %2973 = vmatpush1.xpose.msra.mxu0 %v2966
    %2974 = vmatprep.subr.mxu0 0.0
    %2975 = vmatpush1.xpose.msra.mxu0 %v2968
    %2976 = vmatprep.subr.mxu0 0.0
    %2977 = vmatpush1.xpose.msra.mxu0 0.0
    %2978 = vmatprep.subr.mxu0 0.0
    %2979 = vmatpush1.xpose.msra.mxu0 0.0
    %2980 = vmatprep.subr.mxu0 0.0
    %2981 = vmatpush1.xpose.msra.mxu0 0.0
    %2982 = vmatprep.subr.mxu0 0.0
    %2983 = vmatpush1.xpose.msra.mxu0 0.0
    %2984 = vmatprep.subr.mxu0 0.0
    %2985 = vmatpush1.xpose.msra.mxu0 0.0
    %2986 = vmatprep.subr.mxu0 0.0
    %2987 = vmatpush1.xpose.msra.mxu0 0.0
    %2988 = vmatprep.subr.mxu0 0.0
    %2989 = vmatpush1.xpose.msra.mxu0 0.0
    %2990 = vmatprep.subr.mxu0 0.0
    %2991 = vmatpush1.xpose.msra.mxu0 0.0
    %2992 = vmatprep.subr.mxu0 0.0
    %2993 = vmatpush1.xpose.msra.mxu0 0.0
    %2994 = vmatprep.subr.mxu0 0.0
    %2995 = vmatpush1.xpose.msra.mxu0 0.0
    %2996 = vmatprep.subr.mxu0 0.0
    %2997 = vmatpush1.xpose.msra.mxu0 0.0
    %2998 = vmatprep.subr.mxu0 0.0
    %2999 = vmatpush1.xpose.msra.mxu0 0.0
    %3000 = vmatprep.subr.mxu0 0.0
    %3001 = vmatpush1.xpose.msra.mxu0 0.0
    %3002 = vmatprep.subr.mxu0 0.0
    %3003 = vmatpush1.xpose.msra.mxu0 0.0
    %3004 = vmatprep.subr.mxu0 0.0
    %3005 = vmatpush1.xpose.msra.mxu0 0.0
    %3006 = vmatprep.subr.mxu0 0.0
    %3007 = vmatpush1.xpose.msra.mxu0 0.0
    %3008 = vmatprep.subr.mxu0 0.0
    %3009 = vmatpush1.xpose.msra.mxu0 0.0
    %3010 = vmatprep.subr.mxu0 0.0
    %3011 = vmatpush1.xpose.msra.mxu0 0.0
    %3012 = vmatprep.subr.mxu0 0.0
    %3013 = vmatpush1.xpose.msra.mxu0 0.0
    %3014 = vmatprep.subr.mxu0 0.0
    %3015 = vmatpush1.xpose.msra.mxu0 0.0
    %3016 = vmatprep.subr.mxu0 0.0
    %3017 = vmatpush1.xpose.msra.mxu0 0.0
    %3018 = vmatprep.subr.mxu0 0.0
    %3019 = vmatpush1.xpose.msra.mxu0 0.0
    %3020 = vmatprep.subr.mxu0 0.0
    %3021 = vmatpush1.xpose.msra.mxu0 0.0
    %3022 = vmatprep.subr.mxu0 0.0
    %3023 = vmatpush1.xpose.msra.mxu0 0.0
    %3024 = vmatprep.subr.mxu0 0.0
    %3025 = vmatpush1.xpose.msra.mxu0 0.0
    %3026 = vmatprep.subr.mxu0 0.0
    %3027 = vmatpush1.xpose.msra.mxu0 0.0
    %3028 = vmatprep.subr.mxu0 0.0
    %3029 = vmatpush1.xpose.msra.mxu0 0.0
    %3030 = vmatprep.subr.mxu0 0.0
    %3031 = vmatpush1.xpose.msra.mxu0 0.0
    %3032 = vmatprep.subr.mxu0 0.0
    %3033 = vmatpush1.xpose.msra.mxu0 0.0
    %3034 = vmatprep.mubr.f32.mxu0 0.0
    %3035 = vmatmul.mubr.f32.gmra.mrb[0].mxu0 %v2958
    %v3036 = vpop.f32.mrb[0].mxu0
    %v3037 = vadd.f32 %v94, %v3036
    %v3038 = vpop.f32.mrb[0].mxu0
    %3039 = vmatprep.mubr.f32.mxu0 0.0
    %3040 = vmatmul.mubr.f32.gmra.mrb[0].mxu0 %v2960
    %v3041 = vpop.f32.mrb[0].mxu0
    %v3042 = vadd.f32 %v95, %v3041
    %v3043 = vpop.f32.mrb[0].mxu0
    %3044 = vmatprep.mubr.f32.mxu0 0.0
    %3045 = vmatmul.mubr.f32.gmra.mrb[0].mxu0 %v2962
    %v3046 = vpop.f32.mrb[0].mxu0
    %v3047 = vadd.f32 %v96, %v3046
    %v3048 = vpop.f32.mrb[0].mxu0
    %3049 = vdwg.mxu0
    %3050 = vrot.lane.b32.xlu0 %v2819, 96
    %v3051 = vpop.permute.xlu0 %3050
    %3052 = vrot.lane.b32.xlu0 %v2821, 96
    %v3053 = vpop.permute.xlu0 %3052
    %3054 = vrot.lane.b32.xlu0 %v2823, 96
    %v3055 = vpop.permute.xlu0 %3054
    %v3056 = vsel %vm310, %v2819, 0
    %v3058 = vsel %vm310, %v2821, 0
    %v3060 = vsel %vm310, %v2823, 0
    %v3062 = vsel %vm310, %v3051, 0
    %v3064 = vsel %vm310, %v3053, 0
    %v3066 = vsel %vm310, %v3055, 0
    %3068 = vmatprep.subr.mxu0 0.0
    %3069 = vmatpush1.xpose.msra.mxu0 %v3062
    %3070 = vmatprep.subr.mxu0 0.0
    %3071 = vmatpush1.xpose.msra.mxu0 %v3064
    %3072 = vmatprep.subr.mxu0 0.0
    %3073 = vmatpush1.xpose.msra.mxu0 %v3066
    %3074 = vmatprep.subr.mxu0 0.0
    %3075 = vmatpush1.xpose.msra.mxu0 0.0
    %3076 = vmatprep.subr.mxu0 0.0
    %3077 = vmatpush1.xpose.msra.mxu0 0.0
    %3078 = vmatprep.subr.mxu0 0.0
    %3079 = vmatpush1.xpose.msra.mxu0 0.0
    %3080 = vmatprep.subr.mxu0 0.0
    %3081 = vmatpush1.xpose.msra.mxu0 0.0
    %3082 = vmatprep.subr.mxu0 0.0
    %3083 = vmatpush1.xpose.msra.mxu0 0.0
    %3084 = vmatprep.subr.mxu0 0.0
    %3085 = vmatpush1.xpose.msra.mxu0 0.0
    %3086 = vmatprep.subr.mxu0 0.0
    %3087 = vmatpush1.xpose.msra.mxu0 0.0
    %3088 = vmatprep.subr.mxu0 0.0
    %3089 = vmatpush1.xpose.msra.mxu0 0.0
    %3090 = vmatprep.subr.mxu0 0.0
    %3091 = vmatpush1.xpose.msra.mxu0 0.0
    %3092 = vmatprep.subr.mxu0 0.0
    %3093 = vmatpush1.xpose.msra.mxu0 0.0
    %3094 = vmatprep.subr.mxu0 0.0
    %3095 = vmatpush1.xpose.msra.mxu0 0.0
    %3096 = vmatprep.subr.mxu0 0.0
    %3097 = vmatpush1.xpose.msra.mxu0 0.0
    %3098 = vmatprep.subr.mxu0 0.0
    %3099 = vmatpush1.xpose.msra.mxu0 0.0
    %3100 = vmatprep.subr.mxu0 0.0
    %3101 = vmatpush1.xpose.msra.mxu0 0.0
    %3102 = vmatprep.subr.mxu0 0.0
    %3103 = vmatpush1.xpose.msra.mxu0 0.0
    %3104 = vmatprep.subr.mxu0 0.0
    %3105 = vmatpush1.xpose.msra.mxu0 0.0
    %3106 = vmatprep.subr.mxu0 0.0
    %3107 = vmatpush1.xpose.msra.mxu0 0.0
    %3108 = vmatprep.subr.mxu0 0.0
    %3109 = vmatpush1.xpose.msra.mxu0 0.0
    %3110 = vmatprep.subr.mxu0 0.0
    %3111 = vmatpush1.xpose.msra.mxu0 0.0
    %3112 = vmatprep.subr.mxu0 0.0
    %3113 = vmatpush1.xpose.msra.mxu0 0.0
    %3114 = vmatprep.subr.mxu0 0.0
    %3115 = vmatpush1.xpose.msra.mxu0 0.0
    %3116 = vmatprep.subr.mxu0 0.0
    %3117 = vmatpush1.xpose.msra.mxu0 0.0
    %3118 = vmatprep.subr.mxu0 0.0
    %3119 = vmatpush1.xpose.msra.mxu0 0.0
    %3120 = vmatprep.subr.mxu0 0.0
    %3121 = vmatpush1.xpose.msra.mxu0 0.0
    %3122 = vmatprep.subr.mxu0 0.0
    %3123 = vmatpush1.xpose.msra.mxu0 0.0
    %3124 = vmatprep.subr.mxu0 0.0
    %3125 = vmatpush1.xpose.msra.mxu0 0.0
    %3126 = vmatprep.subr.mxu0 0.0
    %3127 = vmatpush1.xpose.msra.mxu0 0.0
    %3128 = vmatprep.subr.mxu0 0.0
    %3129 = vmatpush1.xpose.msra.mxu0 0.0
    %3130 = vmatprep.subr.mxu0 0.0
    %3131 = vmatpush1.xpose.msra.mxu0 0.0
    %3132 = vmatprep.mubr.f32.mxu0 0.0
    %3133 = vmatmul.mubr.f32.gmra.mrb[0].mxu0 %v3056
    %v3134 = vpop.f32.mrb[0].mxu0
    %v3135 = vadd.f32 %v94, %v3134
    %v3136 = vpop.f32.mrb[0].mxu0
    %3137 = vmatprep.mubr.f32.mxu0 0.0
    %3138 = vmatmul.mubr.f32.gmra.mrb[0].mxu0 %v3058
    %v3139 = vpop.f32.mrb[0].mxu0
    %v3140 = vadd.f32 %v95, %v3139
    %v3141 = vpop.f32.mrb[0].mxu0
    %3142 = vmatprep.mubr.f32.mxu0 0.0
    %3143 = vmatmul.mubr.f32.gmra.mrb[0].mxu0 %v3060
    %v3144 = vpop.f32.mrb[0].mxu0
    %v3145 = vadd.f32 %v96, %v3144
    %v3146 = vpop.f32.mrb[0].mxu0
    %3147 = vdwg.mxu0
    %3148 = vrot.lane.b32.xlu0 %v2825, 96
    %v3149 = vpop.permute.xlu0 %3148
    %3150 = vrot.lane.b32.xlu0 %v2827, 96
    %v3151 = vpop.permute.xlu0 %3150
    %3152 = vrot.lane.b32.xlu0 %v2829, 96
    %v3153 = vpop.permute.xlu0 %3152
    %v3154 = vsel %vm310, %v2825, 0
    %v3156 = vsel %vm310, %v2827, 0
    %v3158 = vsel %vm310, %v2829, 0
    %v3160 = vsel %vm310, %v3149, 0
    %v3162 = vsel %vm310, %v3151, 0
    %v3164 = vsel %vm310, %v3153, 0
    %3166 = vmatprep.subr.mxu0 0.0
    %3167 = vmatpush1.xpose.msra.mxu0 %v3160
    %3168 = vmatprep.subr.mxu0 0.0
    %3169 = vmatpush1.xpose.msra.mxu0 %v3162
    %3170 = vmatprep.subr.mxu0 0.0
    %3171 = vmatpush1.xpose.msra.mxu0 %v3164
    %3172 = vmatprep.subr.mxu0 0.0
    %3173 = vmatpush1.xpose.msra.mxu0 0.0
    %3174 = vmatprep.subr.mxu0 0.0
    %3175 = vmatpush1.xpose.msra.mxu0 0.0
    %3176 = vmatprep.subr.mxu0 0.0
    %3177 = vmatpush1.xpose.msra.mxu0 0.0
    %3178 = vmatprep.subr.mxu0 0.0
    %3179 = vmatpush1.xpose.msra.mxu0 0.0
    %3180 = vmatprep.subr.mxu0 0.0
    %3181 = vmatpush1.xpose.msra.mxu0 0.0
    %3182 = vmatprep.subr.mxu0 0.0
    %3183 = vmatpush1.xpose.msra.mxu0 0.0
    %3184 = vmatprep.subr.mxu0 0.0
    %3185 = vmatpush1.xpose.msra.mxu0 0.0
    %3186 = vmatprep.subr.mxu0 0.0
    %3187 = vmatpush1.xpose.msra.mxu0 0.0
    %3188 = vmatprep.subr.mxu0 0.0
    %3189 = vmatpush1.xpose.msra.mxu0 0.0
    %3190 = vmatprep.subr.mxu0 0.0
    %3191 = vmatpush1.xpose.msra.mxu0 0.0
    %3192 = vmatprep.subr.mxu0 0.0
    %3193 = vmatpush1.xpose.msra.mxu0 0.0
    %3194 = vmatprep.subr.mxu0 0.0
    %3195 = vmatpush1.xpose.msra.mxu0 0.0
    %3196 = vmatprep.subr.mxu0 0.0
    %3197 = vmatpush1.xpose.msra.mxu0 0.0
    %3198 = vmatprep.subr.mxu0 0.0
    %3199 = vmatpush1.xpose.msra.mxu0 0.0
    %3200 = vmatprep.subr.mxu0 0.0
    %3201 = vmatpush1.xpose.msra.mxu0 0.0
    %3202 = vmatprep.subr.mxu0 0.0
    %3203 = vmatpush1.xpose.msra.mxu0 0.0
    %3204 = vmatprep.subr.mxu0 0.0
    %3205 = vmatpush1.xpose.msra.mxu0 0.0
    %3206 = vmatprep.subr.mxu0 0.0
    %3207 = vmatpush1.xpose.msra.mxu0 0.0
    %3208 = vmatprep.subr.mxu0 0.0
    %3209 = vmatpush1.xpose.msra.mxu0 0.0
    %3210 = vmatprep.subr.mxu0 0.0
    %3211 = vmatpush1.xpose.msra.mxu0 0.0
    %3212 = vmatprep.subr.mxu0 0.0
    %3213 = vmatpush1.xpose.msra.mxu0 0.0
    %3214 = vmatprep.subr.mxu0 0.0
    %3215 = vmatpush1.xpose.msra.mxu0 0.0
    %3216 = vmatprep.subr.mxu0 0.0
    %3217 = vmatpush1.xpose.msra.mxu0 0.0
    %3218 = vmatprep.subr.mxu0 0.0
    %3219 = vmatpush1.xpose.msra.mxu0 0.0
    %3220 = vmatprep.subr.mxu0 0.0
    %3221 = vmatpush1.xpose.msra.mxu0 0.0
    %3222 = vmatprep.subr.mxu0 0.0
    %3223 = vmatpush1.xpose.msra.mxu0 0.0
    %3224 = vmatprep.subr.mxu0 0.0
    %3225 = vmatpush1.xpose.msra.mxu0 0.0
    %3226 = vmatprep.subr.mxu0 0.0
    %3227 = vmatpush1.xpose.msra.mxu0 0.0
    %3228 = vmatprep.subr.mxu0 0.0
    %3229 = vmatpush1.xpose.msra.mxu0 0.0
    %3230 = vmatprep.mubr.f32.mxu0 0.0
    %3231 = vmatmul.mubr.f32.gmra.mrb[0].mxu0 %v3154
    %v3232 = vpop.f32.mrb[0].mxu0
    %v3233 = vadd.f32 %v94, %v3232
    %v3234 = vpop.f32.mrb[0].mxu0
    %3235 = vmatprep.mubr.f32.mxu0 0.0
    %3236 = vmatmul.mubr.f32.gmra.mrb[0].mxu0 %v3156
    %v3237 = vpop.f32.mrb[0].mxu0
    %v3238 = vadd.f32 %v95, %v3237
    %v3239 = vpop.f32.mrb[0].mxu0
    %3240 = vmatprep.mubr.f32.mxu0 0.0
    %3241 = vmatmul.mubr.f32.gmra.mrb[0].mxu0 %v3158
    %v3242 = vpop.f32.mrb[0].mxu0
    %v3243 = vadd.f32 %v96, %v3242
    %v3244 = vpop.f32.mrb[0].mxu0
    %3245 = vdwg.mxu0
    %3246 = vrot.lane.b32.xlu0 %v2831, 96
    %v3247 = vpop.permute.xlu0 %3246
    %3248 = vrot.lane.b32.xlu0 %v2833, 96
    %v3249 = vpop.permute.xlu0 %3248
    %3250 = vrot.lane.b32.xlu0 %v2835, 96
    %v3251 = vpop.permute.xlu0 %3250
    %v3252 = vsel %vm310, %v2831, 0
    %v3254 = vsel %vm310, %v2833, 0
    %v3256 = vsel %vm310, %v2835, 0
    %v3258 = vsel %vm310, %v3247, 0
    %v3260 = vsel %vm310, %v3249, 0
    %v3262 = vsel %vm310, %v3251, 0
    %3264 = vmatprep.subr.mxu0 0.0
    %3265 = vmatpush1.xpose.msra.mxu0 %v3258
    %3266 = vmatprep.subr.mxu0 0.0
    %3267 = vmatpush1.xpose.msra.mxu0 %v3260
    %3268 = vmatprep.subr.mxu0 0.0
    %3269 = vmatpush1.xpose.msra.mxu0 %v3262
    %3270 = vmatprep.subr.mxu0 0.0
    %3271 = vmatpush1.xpose.msra.mxu0 0.0
    %3272 = vmatprep.subr.mxu0 0.0
    %3273 = vmatpush1.xpose.msra.mxu0 0.0
    %3274 = vmatprep.subr.mxu0 0.0
    %3275 = vmatpush1.xpose.msra.mxu0 0.0
    %3276 = vmatprep.subr.mxu0 0.0
    %3277 = vmatpush1.xpose.msra.mxu0 0.0
    %3278 = vmatprep.subr.mxu0 0.0
    %3279 = vmatpush1.xpose.msra.mxu0 0.0
    %3280 = vmatprep.subr.mxu0 0.0
    %3281 = vmatpush1.xpose.msra.mxu0 0.0
    %3282 = vmatprep.subr.mxu0 0.0
    %3283 = vmatpush1.xpose.msra.mxu0 0.0
    %3284 = vmatprep.subr.mxu0 0.0
    %3285 = vmatpush1.xpose.msra.mxu0 0.0
    %3286 = vmatprep.subr.mxu0 0.0
    %3287 = vmatpush1.xpose.msra.mxu0 0.0
    %3288 = vmatprep.subr.mxu0 0.0
    %3289 = vmatpush1.xpose.msra.mxu0 0.0
    %3290 = vmatprep.subr.mxu0 0.0
    %3291 = vmatpush1.xpose.msra.mxu0 0.0
    %3292 = vmatprep.subr.mxu0 0.0
    %3293 = vmatpush1.xpose.msra.mxu0 0.0
    %3294 = vmatprep.subr.mxu0 0.0
    %3295 = vmatpush1.xpose.msra.mxu0 0.0
    %3296 = vmatprep.subr.mxu0 0.0
    %3297 = vmatpush1.xpose.msra.mxu0 0.0
    %3298 = vmatprep.subr.mxu0 0.0
    %3299 = vmatpush1.xpose.msra.mxu0 0.0
    %3300 = vmatprep.subr.mxu0 0.0
    %3301 = vmatpush1.xpose.msra.mxu0 0.0
    %3302 = vmatprep.subr.mxu0 0.0
    %3303 = vmatpush1.xpose.msra.mxu0 0.0
    %3304 = vmatprep.subr.mxu0 0.0
    %3305 = vmatpush1.xpose.msra.mxu0 0.0
    %3306 = vmatprep.subr.mxu0 0.0
    %3307 = vmatpush1.xpose.msra.mxu0 0.0
    %3308 = vmatprep.subr.mxu0 0.0
    %3309 = vmatpush1.xpose.msra.mxu0 0.0
    %3310 = vmatprep.subr.mxu0 0.0
    %3311 = vmatpush1.xpose.msra.mxu0 0.0
    %3312 = vmatprep.subr.mxu0 0.0
    %3313 = vmatpush1.xpose.msra.mxu0 0.0
    %3314 = vmatprep.subr.mxu0 0.0
    %3315 = vmatpush1.xpose.msra.mxu0 0.0
    %3316 = vmatprep.subr.mxu0 0.0
    %3317 = vmatpush1.xpose.msra.mxu0 0.0
    %3318 = vmatprep.subr.mxu0 0.0
    %3319 = vmatpush1.xpose.msra.mxu0 0.0
    %3320 = vmatprep.subr.mxu0 0.0
    %3321 = vmatpush1.xpose.msra.mxu0 0.0
    %3322 = vmatprep.subr.mxu0 0.0
    %3323 = vmatpush1.xpose.msra.mxu0 0.0
    %3324 = vmatprep.subr.mxu0 0.0
    %3325 = vmatpush1.xpose.msra.mxu0 0.0
    %3326 = vmatprep.subr.mxu0 0.0
    %3327 = vmatpush1.xpose.msra.mxu0 0.0
    %3328 = vmatprep.mubr.f32.mxu0 0.0
    %3329 = vmatmul.mubr.f32.gmra.mrb[0].mxu0 %v3252
    %v3330 = vpop.f32.mrb[0].mxu0
    %v3331 = vadd.f32 %v94, %v3330
    %v3332 = vpop.f32.mrb[0].mxu0
    %3333 = vmatprep.mubr.f32.mxu0 0.0
    %3334 = vmatmul.mubr.f32.gmra.mrb[0].mxu0 %v3254
    %v3335 = vpop.f32.mrb[0].mxu0
    %v3336 = vadd.f32 %v95, %v3335
    %v3337 = vpop.f32.mrb[0].mxu0
    %3338 = vmatprep.mubr.f32.mxu0 0.0
    %3339 = vmatmul.mubr.f32.gmra.mrb[0].mxu0 %v3256
    %v3340 = vpop.f32.mrb[0].mxu0
    %v3341 = vadd.f32 %v96, %v3340
    %v3342 = vpop.f32.mrb[0].mxu0
    %3343 = vdwg.mxu0
    %3344 = vrot.lane.b32.xlu0 %v2837, 96
    %v3345 = vpop.permute.xlu0 %3344
    %3346 = vrot.lane.b32.xlu0 %v2839, 96
    %v3347 = vpop.permute.xlu0 %3346
    %3348 = vrot.lane.b32.xlu0 %v2841, 96
    %v3349 = vpop.permute.xlu0 %3348
    %v3350 = vsel %vm310, %v2837, 0
    %v3352 = vsel %vm310, %v2839, 0
    %v3354 = vsel %vm310, %v2841, 0
    %v3356 = vsel %vm310, %v3345, 0
    %v3358 = vsel %vm310, %v3347, 0
    %v3360 = vsel %vm310, %v3349, 0
    %3362 = vmatprep.subr.mxu0 0.0
    %3363 = vmatpush1.xpose.msra.mxu0 %v3356
    %3364 = vmatprep.subr.mxu0 0.0
    %3365 = vmatpush1.xpose.msra.mxu0 %v3358
    %3366 = vmatprep.subr.mxu0 0.0
    %3367 = vmatpush1.xpose.msra.mxu0 %v3360
    %3368 = vmatprep.subr.mxu0 0.0
    %3369 = vmatpush1.xpose.msra.mxu0 0.0
    %3370 = vmatprep.subr.mxu0 0.0
    %3371 = vmatpush1.xpose.msra.mxu0 0.0
    %3372 = vmatprep.subr.mxu0 0.0
    %3373 = vmatpush1.xpose.msra.mxu0 0.0
    %3374 = vmatprep.subr.mxu0 0.0
    %3375 = vmatpush1.xpose.msra.mxu0 0.0
    %3376 = vmatprep.subr.mxu0 0.0
    %3377 = vmatpush1.xpose.msra.mxu0 0.0
    %3378 = vmatprep.subr.mxu0 0.0
    %3379 = vmatpush1.xpose.msra.mxu0 0.0
    %3380 = vmatprep.subr.mxu0 0.0
    %3381 = vmatpush1.xpose.msra.mxu0 0.0
    %3382 = vmatprep.subr.mxu0 0.0
    %3383 = vmatpush1.xpose.msra.mxu0 0.0
    %3384 = vmatprep.subr.mxu0 0.0
    %3385 = vmatpush1.xpose.msra.mxu0 0.0
    %3386 = vmatprep.subr.mxu0 0.0
    %3387 = vmatpush1.xpose.msra.mxu0 0.0
    %3388 = vmatprep.subr.mxu0 0.0
    %3389 = vmatpush1.xpose.msra.mxu0 0.0
    %3390 = vmatprep.subr.mxu0 0.0
    %3391 = vmatpush1.xpose.msra.mxu0 0.0
    %3392 = vmatprep.subr.mxu0 0.0
    %3393 = vmatpush1.xpose.msra.mxu0 0.0
    %3394 = vmatprep.subr.mxu0 0.0
    %3395 = vmatpush1.xpose.msra.mxu0 0.0
    %3396 = vmatprep.subr.mxu0 0.0
    %3397 = vmatpush1.xpose.msra.mxu0 0.0
    %3398 = vmatprep.subr.mxu0 0.0
    %3399 = vmatpush1.xpose.msra.mxu0 0.0
    %3400 = vmatprep.subr.mxu0 0.0
    %3401 = vmatpush1.xpose.msra.mxu0 0.0
    %3402 = vmatprep.subr.mxu0 0.0
    %3403 = vmatpush1.xpose.msra.mxu0 0.0
    %3404 = vmatprep.subr.mxu0 0.0
    %3405 = vmatpush1.xpose.msra.mxu0 0.0
    %3406 = vmatprep.subr.mxu0 0.0
    %3407 = vmatpush1.xpose.msra.mxu0 0.0
    %3408 = vmatprep.subr.mxu0 0.0
    %3409 = vmatpush1.xpose.msra.mxu0 0.0
    %3410 = vmatprep.subr.mxu0 0.0
    %3411 = vmatpush1.xpose.msra.mxu0 0.0
    %3412 = vmatprep.subr.mxu0 0.0
    %3413 = vmatpush1.xpose.msra.mxu0 0.0
    %3414 = vmatprep.subr.mxu0 0.0
    %3415 = vmatpush1.xpose.msra.mxu0 0.0
    %3416 = vmatprep.subr.mxu0 0.0
    %3417 = vmatpush1.xpose.msra.mxu0 0.0
    %3418 = vmatprep.subr.mxu0 0.0
    %3419 = vmatpush1.xpose.msra.mxu0 0.0
    %3420 = vmatprep.subr.mxu0 0.0
    %3421 = vmatpush1.xpose.msra.mxu0 0.0
    %3422 = vmatprep.subr.mxu0 0.0
    %3423 = vmatpush1.xpose.msra.mxu0 0.0
    %3424 = vmatprep.subr.mxu0 0.0
    %3425 = vmatpush1.xpose.msra.mxu0 0.0
    %3426 = vmatprep.mubr.f32.mxu0 0.0
    %3427 = vmatmul.mubr.f32.gmra.mrb[0].mxu0 %v3350
    %v3428 = vpop.f32.mrb[0].mxu0
    %v3429 = vadd.f32 %v94, %v3428
    %v3430 = vpop.f32.mrb[0].mxu0
    %3431 = vmatprep.mubr.f32.mxu0 0.0
    %3432 = vmatmul.mubr.f32.gmra.mrb[0].mxu0 %v3352
    %v3433 = vpop.f32.mrb[0].mxu0
    %v3434 = vadd.f32 %v95, %v3433
    %v3435 = vpop.f32.mrb[0].mxu0
    %3436 = vmatprep.mubr.f32.mxu0 0.0
    %3437 = vmatmul.mubr.f32.gmra.mrb[0].mxu0 %v3354
    %v3438 = vpop.f32.mrb[0].mxu0
    %v3439 = vadd.f32 %v96, %v3438
    %v3440 = vpop.f32.mrb[0].mxu0
    %3441 = vdwg.mxu0
    %3442 = vrot.lane.b32.xlu0 %v2843, 96
    %v3443 = vpop.permute.xlu0 %3442
    %3444 = vrot.lane.b32.xlu0 %v2845, 96
    %v3445 = vpop.permute.xlu0 %3444
    %3446 = vrot.lane.b32.xlu0 %v2847, 96
    %v3447 = vpop.permute.xlu0 %3446
    %v3448 = vsel %vm310, %v2843, 0
    %v3450 = vsel %vm310, %v2845, 0
    %v3452 = vsel %vm310, %v2847, 0
    %v3454 = vsel %vm310, %v3443, 0
    %v3456 = vsel %vm310, %v3445, 0
    %v3458 = vsel %vm310, %v3447, 0
    %3460 = vmatprep.subr.mxu0 0.0
    %3461 = vmatpush1.xpose.msra.mxu0 %v3454
    %3462 = vmatprep.subr.mxu0 0.0
    %3463 = vmatpush1.xpose.msra.mxu0 %v3456
    %3464 = vmatprep.subr.mxu0 0.0
    %3465 = vmatpush1.xpose.msra.mxu0 %v3458
    %3466 = vmatprep.subr.mxu0 0.0
    %3467 = vmatpush1.xpose.msra.mxu0 0.0
    %3468 = vmatprep.subr.mxu0 0.0
    %3469 = vmatpush1.xpose.msra.mxu0 0.0
    %3470 = vmatprep.subr.mxu0 0.0
    %3471 = vmatpush1.xpose.msra.mxu0 0.0
    %3472 = vmatprep.subr.mxu0 0.0
    %3473 = vmatpush1.xpose.msra.mxu0 0.0
    %3474 = vmatprep.subr.mxu0 0.0
    %3475 = vmatpush1.xpose.msra.mxu0 0.0
    %3476 = vmatprep.subr.mxu0 0.0
    %3477 = vmatpush1.xpose.msra.mxu0 0.0
    %3478 = vmatprep.subr.mxu0 0.0
    %3479 = vmatpush1.xpose.msra.mxu0 0.0
    %3480 = vmatprep.subr.mxu0 0.0
    %3481 = vmatpush1.xpose.msra.mxu0 0.0
    %3482 = vmatprep.subr.mxu0 0.0
    %3483 = vmatpush1.xpose.msra.mxu0 0.0
    %3484 = vmatprep.subr.mxu0 0.0
    %3485 = vmatpush1.xpose.msra.mxu0 0.0
    %3486 = vmatprep.subr.mxu0 0.0
    %3487 = vmatpush1.xpose.msra.mxu0 0.0
    %3488 = vmatprep.subr.mxu0 0.0
    %3489 = vmatpush1.xpose.msra.mxu0 0.0
    %3490 = vmatprep.subr.mxu0 0.0
    %3491 = vmatpush1.xpose.msra.mxu0 0.0
    %3492 = vmatprep.subr.mxu0 0.0
    %3493 = vmatpush1.xpose.msra.mxu0 0.0
    %3494 = vmatprep.subr.mxu0 0.0
    %3495 = vmatpush1.xpose.msra.mxu0 0.0
    %3496 = vmatprep.subr.mxu0 0.0
    %3497 = vmatpush1.xpose.msra.mxu0 0.0
    %3498 = vmatprep.subr.mxu0 0.0
    %3499 = vmatpush1.xpose.msra.mxu0 0.0
    %3500 = vmatprep.subr.mxu0 0.0
    %3501 = vmatpush1.xpose.msra.mxu0 0.0
    %3502 = vmatprep.subr.mxu0 0.0
    %3503 = vmatpush1.xpose.msra.mxu0 0.0
    %3504 = vmatprep.subr.mxu0 0.0
    %3505 = vmatpush1.xpose.msra.mxu0 0.0
    %3506 = vmatprep.subr.mxu0 0.0
    %3507 = vmatpush1.xpose.msra.mxu0 0.0
    %3508 = vmatprep.subr.mxu0 0.0
    %3509 = vmatpush1.xpose.msra.mxu0 0.0
    %3510 = vmatprep.subr.mxu0 0.0
    %3511 = vmatpush1.xpose.msra.mxu0 0.0
    %3512 = vmatprep.subr.mxu0 0.0
    %3513 = vmatpush1.xpose.msra.mxu0 0.0
    %3514 = vmatprep.subr.mxu0 0.0
    %3515 = vmatpush1.xpose.msra.mxu0 0.0
    %3516 = vmatprep.subr.mxu0 0.0
    %3517 = vmatpush1.xpose.msra.mxu0 0.0
    %3518 = vmatprep.subr.mxu0 0.0
    %3519 = vmatpush1.xpose.msra.mxu0 0.0
    %3520 = vmatprep.subr.mxu0 0.0
    %3521 = vmatpush1.xpose.msra.mxu0 0.0
    %3522 = vmatprep.subr.mxu0 0.0
    %3523 = vmatpush1.xpose.msra.mxu0 0.0
    %3524 = vmatprep.mubr.f32.mxu0 0.0
    %3525 = vmatmul.mubr.f32.gmra.mrb[0].mxu0 %v3448
    %v3526 = vpop.f32.mrb[0].mxu0
    %v3527 = vadd.f32 %v94, %v3526
    %v3528 = vpop.f32.mrb[0].mxu0
    %3529 = vmatprep.mubr.f32.mxu0 0.0
    %3530 = vmatmul.mubr.f32.gmra.mrb[0].mxu0 %v3450
    %v3531 = vpop.f32.mrb[0].mxu0
    %v3532 = vadd.f32 %v95, %v3531
    %v3533 = vpop.f32.mrb[0].mxu0
    %3534 = vmatprep.mubr.f32.mxu0 0.0
    %3535 = vmatmul.mubr.f32.gmra.mrb[0].mxu0 %v3452
    %v3536 = vpop.f32.mrb[0].mxu0
    %v3537 = vadd.f32 %v96, %v3536
    %v3538 = vpop.f32.mrb[0].mxu0
    %3539 = vdwg.mxu0
    %3540 = vrot.lane.b32.xlu0 %v2849, 96
    %v3541 = vpop.permute.xlu0 %3540
    %3542 = vrot.lane.b32.xlu0 %v2851, 96
    %v3543 = vpop.permute.xlu0 %3542
    %3544 = vrot.lane.b32.xlu0 %v2853, 96
    %v3545 = vpop.permute.xlu0 %3544
    %v3546 = vsel %vm310, %v2849, 0
    %v3548 = vsel %vm310, %v2851, 0
    %v3550 = vsel %vm310, %v2853, 0
    %v3552 = vsel %vm310, %v3541, 0
    %v3554 = vsel %vm310, %v3543, 0
    %v3556 = vsel %vm310, %v3545, 0
    %3558 = vmatprep.subr.mxu0 0.0
    %3559 = vmatpush1.xpose.msra.mxu0 %v3552
    %3560 = vmatprep.subr.mxu0 0.0
    %3561 = vmatpush1.xpose.msra.mxu0 %v3554
    %3562 = vmatprep.subr.mxu0 0.0
    %3563 = vmatpush1.xpose.msra.mxu0 %v3556
    %3564 = vmatprep.subr.mxu0 0.0
    %3565 = vmatpush1.xpose.msra.mxu0 0.0
    %3566 = vmatprep.subr.mxu0 0.0
    %3567 = vmatpush1.xpose.msra.mxu0 0.0
    %3568 = vmatprep.subr.mxu0 0.0
    %3569 = vmatpush1.xpose.msra.mxu0 0.0
    %3570 = vmatprep.subr.mxu0 0.0
    %3571 = vmatpush1.xpose.msra.mxu0 0.0
    %3572 = vmatprep.subr.mxu0 0.0
    %3573 = vmatpush1.xpose.msra.mxu0 0.0
    %3574 = vmatprep.subr.mxu0 0.0
    %3575 = vmatpush1.xpose.msra.mxu0 0.0
    %3576 = vmatprep.subr.mxu0 0.0
    %3577 = vmatpush1.xpose.msra.mxu0 0.0
    %3578 = vmatprep.subr.mxu0 0.0
    %3579 = vmatpush1.xpose.msra.mxu0 0.0
    %3580 = vmatprep.subr.mxu0 0.0
    %3581 = vmatpush1.xpose.msra.mxu0 0.0
    %3582 = vmatprep.subr.mxu0 0.0
    %3583 = vmatpush1.xpose.msra.mxu0 0.0
    %3584 = vmatprep.subr.mxu0 0.0
    %3585 = vmatpush1.xpose.msra.mxu0 0.0
    %3586 = vmatprep.subr.mxu0 0.0
    %3587 = vmatpush1.xpose.msra.mxu0 0.0
    %3588 = vmatprep.subr.mxu0 0.0
    %3589 = vmatpush1.xpose.msra.mxu0 0.0
    %3590 = vmatprep.subr.mxu0 0.0
    %3591 = vmatpush1.xpose.msra.mxu0 0.0
    %3592 = vmatprep.subr.mxu0 0.0
    %3593 = vmatpush1.xpose.msra.mxu0 0.0
    %3594 = vmatprep.subr.mxu0 0.0
    %3595 = vmatpush1.xpose.msra.mxu0 0.0
    %3596 = vmatprep.subr.mxu0 0.0
    %3597 = vmatpush1.xpose.msra.mxu0 0.0
    %3598 = vmatprep.subr.mxu0 0.0
    %3599 = vmatpush1.xpose.msra.mxu0 0.0
    %3600 = vmatprep.subr.mxu0 0.0
    %3601 = vmatpush1.xpose.msra.mxu0 0.0
    %3602 = vmatprep.subr.mxu0 0.0
    %3603 = vmatpush1.xpose.msra.mxu0 0.0
    %3604 = vmatprep.subr.mxu0 0.0
    %3605 = vmatpush1.xpose.msra.mxu0 0.0
    %3606 = vmatprep.subr.mxu0 0.0
    %3607 = vmatpush1.xpose.msra.mxu0 0.0
    %3608 = vmatprep.subr.mxu0 0.0
    %3609 = vmatpush1.xpose.msra.mxu0 0.0
    %3610 = vmatprep.subr.mxu0 0.0
    %3611 = vmatpush1.xpose.msra.mxu0 0.0
    %3612 = vmatprep.subr.mxu0 0.0
    %3613 = vmatpush1.xpose.msra.mxu0 0.0
    %3614 = vmatprep.subr.mxu0 0.0
    %3615 = vmatpush1.xpose.msra.mxu0 0.0
    %3616 = vmatprep.subr.mxu0 0.0
    %3617 = vmatpush1.xpose.msra.mxu0 0.0
    %3618 = vmatprep.subr.mxu0 0.0
    %3619 = vmatpush1.xpose.msra.mxu0 0.0
    %3620 = vmatprep.subr.mxu0 0.0
    %3621 = vmatpush1.xpose.msra.mxu0 0.0
    %3622 = vmatprep.mubr.f32.mxu0 0.0
    %3623 = vmatmul.mubr.f32.gmra.mrb[0].mxu0 %v3546
    %v3624 = vpop.f32.mrb[0].mxu0
    %v3625 = vadd.f32 %v94, %v3624
    %v3626 = vpop.f32.mrb[0].mxu0
    %3627 = vmatprep.mubr.f32.mxu0 0.0
    %3628 = vmatmul.mubr.f32.gmra.mrb[0].mxu0 %v3548
    %v3629 = vpop.f32.mrb[0].mxu0
    %v3630 = vadd.f32 %v95, %v3629
    %v3631 = vpop.f32.mrb[0].mxu0
    %3632 = vmatprep.mubr.f32.mxu0 0.0
    %3633 = vmatmul.mubr.f32.gmra.mrb[0].mxu0 %v3550
    %v3634 = vpop.f32.mrb[0].mxu0
    %v3635 = vadd.f32 %v96, %v3634
    %v3636 = vpop.f32.mrb[0].mxu0
    %3637 = vdwg.mxu0
    %v3638 = vsel %vm1089, %v2939, -inf
    %3639 = vmax.xlane.f32.xlu0 %v3638
    %v3640 = vpop.xlane.xlu0 %3639
    %v3641 = vsel %vm1089, %v2944, -inf
    %3642 = vmax.xlane.f32.xlu0 %v3641
    %v3643 = vpop.xlane.xlu0 %3642
    %v3644 = vsel %vm1096, %v2949, -inf
    %3645 = vmax.xlane.f32.xlu0 %v3644
    %v3646 = vpop.xlane.xlu0 %3645
    %v3647 = vsel %vm1089, %v3037, -inf
    %3648 = vmax.xlane.f32.xlu0 %v3647
    %v3649 = vpop.xlane.xlu0 %3648
    %v3650 = vsel %vm1089, %v3042, -inf
    %3651 = vmax.xlane.f32.xlu0 %v3650
    %v3652 = vpop.xlane.xlu0 %3651
    %v3653 = vsel %vm1096, %v3047, -inf
    %3654 = vmax.xlane.f32.xlu0 %v3653
    %v3655 = vpop.xlane.xlu0 %3654
    %v3656 = vsel %vm1089, %v3135, -inf
    %3657 = vmax.xlane.f32.xlu0 %v3656
    %v3658 = vpop.xlane.xlu0 %3657
    %v3659 = vsel %vm1089, %v3140, -inf
    %3660 = vmax.xlane.f32.xlu0 %v3659
    %v3661 = vpop.xlane.xlu0 %3660
    %v3662 = vsel %vm1096, %v3145, -inf
    %3663 = vmax.xlane.f32.xlu0 %v3662
    %v3664 = vpop.xlane.xlu0 %3663
    %v3665 = vsel %vm1089, %v3233, -inf
    %3666 = vmax.xlane.f32.xlu0 %v3665
    %v3667 = vpop.xlane.xlu0 %3666
    %v3668 = vsel %vm1089, %v3238, -inf
    %3669 = vmax.xlane.f32.xlu0 %v3668
    %v3670 = vpop.xlane.xlu0 %3669
    %v3671 = vsel %vm1096, %v3243, -inf
    %3672 = vmax.xlane.f32.xlu0 %v3671
    %v3673 = vpop.xlane.xlu0 %3672
    %v3674 = vsel %vm1089, %v3331, -inf
    %3675 = vmax.xlane.f32.xlu0 %v3674
    %v3676 = vpop.xlane.xlu0 %3675
    %v3677 = vsel %vm1089, %v3336, -inf
    %3678 = vmax.xlane.f32.xlu0 %v3677
    %v3679 = vpop.xlane.xlu0 %3678
    %v3680 = vsel %vm1096, %v3341, -inf
    %3681 = vmax.xlane.f32.xlu0 %v3680
    %v3682 = vpop.xlane.xlu0 %3681
    %v3683 = vsel %vm1089, %v3429, -inf
    %3684 = vmax.xlane.f32.xlu0 %v3683
    %v3685 = vpop.xlane.xlu0 %3684
    %v3686 = vsel %vm1089, %v3434, -inf
    %3687 = vmax.xlane.f32.xlu0 %v3686
    %v3688 = vpop.xlane.xlu0 %3687
    %v3689 = vsel %vm1096, %v3439, -inf
    %3690 = vmax.xlane.f32.xlu0 %v3689
    %v3691 = vpop.xlane.xlu0 %3690
    %v3692 = vsel %vm1089, %v3527, -inf
    %3693 = vmax.xlane.f32.xlu0 %v3692
    %v3694 = vpop.xlane.xlu0 %3693
    %v3695 = vsel %vm1089, %v3532, -inf
    %3696 = vmax.xlane.f32.xlu0 %v3695
    %v3697 = vpop.xlane.xlu0 %3696
    %v3698 = vsel %vm1096, %v3537, -inf
    %3699 = vmax.xlane.f32.xlu0 %v3698
    %v3700 = vpop.xlane.xlu0 %3699
    %v3701 = vsel %vm1089, %v3625, -inf
    %3702 = vmax.xlane.f32.xlu0 %v3701
    %v3703 = vpop.xlane.xlu0 %3702
    %v3704 = vsel %vm1089, %v3630, -inf
    %3705 = vmax.xlane.f32.xlu0 %v3704
    %v3706 = vpop.xlane.xlu0 %3705
    %v3707 = vsel %vm1096, %v3635, -inf
    %3708 = vmax.xlane.f32.xlu0 %v3707
    %v3709 = vpop.xlane.xlu0 %3708
    %v3710 = vsub.f32 %v2939, %v3640
    %v3711 = vsub.f32 %v2944, %v3643
    %v3712 = vsub.f32 %v2949, %v3646
    %v3713 = vsub.f32 %v3037, %v3649
    %v3714 = vsub.f32 %v3042, %v3652
    %v3715 = vsub.f32 %v3047, %v3655
    %v3716 = vsub.f32 %v3135, %v3658
    %v3717 = vsub.f32 %v3140, %v3661
    %v3718 = vsub.f32 %v3145, %v3664
    %v3719 = vsub.f32 %v3233, %v3667
    %v3720 = vsub.f32 %v3238, %v3670
    %v3721 = vsub.f32 %v3243, %v3673
    %v3722 = vsub.f32 %v3331, %v3676
    %v3723 = vsub.f32 %v3336, %v3679
    %v3724 = vsub.f32 %v3341, %v3682
    %v3725 = vsub.f32 %v3429, %v3685
    %v3726 = vsub.f32 %v3434, %v3688
    %v3727 = vsub.f32 %v3439, %v3691
    %v3728 = vsub.f32 %v3527, %v3694
    %v3729 = vsub.f32 %v3532, %v3697
    %v3730 = vsub.f32 %v3537, %v3700
    %v3731 = vsub.f32 %v3625, %v3703
    %v3732 = vsub.f32 %v3630, %v3706
    %v3733 = vsub.f32 %v3635, %v3709
    %v3734 = vmul.f32 %v3710, 1.442695
    %v3735 = vpow.pop %v3734
    %v3736 = vmul.f32 %v3711, 1.442695
    %v3737 = vpow.pop %v3736
    %v3738 = vmul.f32 %v3712, 1.442695
    %v3739 = vpow.pop %v3738
    %v3740 = vmul.f32 %v3713, 1.442695
    %v3741 = vpow.pop %v3740
    %v3742 = vmul.f32 %v3714, 1.442695
    %v3743 = vpow.pop %v3742
    %v3744 = vmul.f32 %v3715, 1.442695
    %v3745 = vpow.pop %v3744
    %v3746 = vmul.f32 %v3716, 1.442695
    %v3747 = vpow.pop %v3746
    %v3748 = vmul.f32 %v3717, 1.442695
    %v3749 = vpow.pop %v3748
    %v3750 = vmul.f32 %v3718, 1.442695
    %v3751 = vpow.pop %v3750
    %v3752 = vmul.f32 %v3719, 1.442695
    %v3753 = vpow.pop %v3752
    %v3754 = vmul.f32 %v3720, 1.442695
    %v3755 = vpow.pop %v3754
    %v3756 = vmul.f32 %v3721, 1.442695
    %v3757 = vpow.pop %v3756
    %v3758 = vmul.f32 %v3722, 1.442695
    %v3759 = vpow.pop %v3758
    %v3760 = vmul.f32 %v3723, 1.442695
    %v3761 = vpow.pop %v3760
    %v3762 = vmul.f32 %v3724, 1.442695
    %v3763 = vpow.pop %v3762
    %v3764 = vmul.f32 %v3725, 1.442695
    %v3765 = vpow.pop %v3764
    %v3766 = vmul.f32 %v3726, 1.442695
    %v3767 = vpow.pop %v3766
    %v3768 = vmul.f32 %v3727, 1.442695
    %v3769 = vpow.pop %v3768
    %v3770 = vmul.f32 %v3728, 1.442695
    %v3771 = vpow.pop %v3770
    %v3772 = vmul.f32 %v3729, 1.442695
    %v3773 = vpow.pop %v3772
    %v3774 = vmul.f32 %v3730, 1.442695
    %v3775 = vpow.pop %v3774
    %v3776 = vmul.f32 %v3731, 1.442695
    %v3777 = vpow.pop %v3776
    %v3778 = vmul.f32 %v3732, 1.442695
    %v3779 = vpow.pop %v3778
    %v3780 = vmul.f32 %v3733, 1.442695
    %v3781 = vpow.pop %v3780
    %v3782 = vsel %vm1089, %v3735, 0.0
    %3783 = vadd.xlane.f32.xlu0 %v3782
    %v3784 = vpop.xlane.xlu0 %3783
    %v3785 = vsel %vm1089, %v3737, 0.0
    %3786 = vadd.xlane.f32.xlu0 %v3785
    %v3787 = vpop.xlane.xlu0 %3786
    %v3788 = vsel %vm1096, %v3739, 0.0
    %3789 = vadd.xlane.f32.xlu0 %v3788
    %v3790 = vpop.xlane.xlu0 %3789
    %v3791 = vsel %vm1089, %v3741, 0.0
    %3792 = vadd.xlane.f32.xlu0 %v3791
    %v3793 = vpop.xlane.xlu0 %3792
    %v3794 = vsel %vm1089, %v3743, 0.0
    %3795 = vadd.xlane.f32.xlu0 %v3794
    %v3796 = vpop.xlane.xlu0 %3795
    %v3797 = vsel %vm1096, %v3745, 0.0
    %3798 = vadd.xlane.f32.xlu0 %v3797
    %v3799 = vpop.xlane.xlu0 %3798
    %v3800 = vsel %vm1089, %v3747, 0.0
    %3801 = vadd.xlane.f32.xlu0 %v3800
    %v3802 = vpop.xlane.xlu0 %3801
    %v3803 = vsel %vm1089, %v3749, 0.0
    %3804 = vadd.xlane.f32.xlu0 %v3803
    %v3805 = vpop.xlane.xlu0 %3804
    %v3806 = vsel %vm1096, %v3751, 0.0
    %3807 = vadd.xlane.f32.xlu0 %v3806
    %v3808 = vpop.xlane.xlu0 %3807
    %v3809 = vsel %vm1089, %v3753, 0.0
    %3810 = vadd.xlane.f32.xlu0 %v3809
    %v3811 = vpop.xlane.xlu0 %3810
    %v3812 = vsel %vm1089, %v3755, 0.0
    %3813 = vadd.xlane.f32.xlu0 %v3812
    %v3814 = vpop.xlane.xlu0 %3813
    %v3815 = vsel %vm1096, %v3757, 0.0
    %3816 = vadd.xlane.f32.xlu0 %v3815
    %v3817 = vpop.xlane.xlu0 %3816
    %v3818 = vsel %vm1089, %v3759, 0.0
    %3819 = vadd.xlane.f32.xlu0 %v3818
    %v3820 = vpop.xlane.xlu0 %3819
    %v3821 = vsel %vm1089, %v3761, 0.0
    %3822 = vadd.xlane.f32.xlu0 %v3821
    %v3823 = vpop.xlane.xlu0 %3822
    %v3824 = vsel %vm1096, %v3763, 0.0
    %3825 = vadd.xlane.f32.xlu0 %v3824
    %v3826 = vpop.xlane.xlu0 %3825
    %v3827 = vsel %vm1089, %v3765, 0.0
    %3828 = vadd.xlane.f32.xlu0 %v3827
    %v3829 = vpop.xlane.xlu0 %3828
    %v3830 = vsel %vm1089, %v3767, 0.0
    %3831 = vadd.xlane.f32.xlu0 %v3830
    %v3832 = vpop.xlane.xlu0 %3831
    %v3833 = vsel %vm1096, %v3769, 0.0
    %3834 = vadd.xlane.f32.xlu0 %v3833
    %v3835 = vpop.xlane.xlu0 %3834
    %v3836 = vsel %vm1089, %v3771, 0.0
    %3837 = vadd.xlane.f32.xlu0 %v3836
    %v3838 = vpop.xlane.xlu0 %3837
    %v3839 = vsel %vm1089, %v3773, 0.0
    %3840 = vadd.xlane.f32.xlu0 %v3839
    %v3841 = vpop.xlane.xlu0 %3840
    %v3842 = vsel %vm1096, %v3775, 0.0
    %3843 = vadd.xlane.f32.xlu0 %v3842
    %v3844 = vpop.xlane.xlu0 %3843
    %v3845 = vsel %vm1089, %v3777, 0.0
    %3846 = vadd.xlane.f32.xlu0 %v3845
    %v3847 = vpop.xlane.xlu0 %3846
    %v3848 = vsel %vm1089, %v3779, 0.0
    %3849 = vadd.xlane.f32.xlu0 %v3848
    %v3850 = vpop.xlane.xlu0 %3849
    %v3851 = vsel %vm1096, %v3781, 0.0
    %3852 = vadd.xlane.f32.xlu0 %v3851
    %v3853 = vpop.xlane.xlu0 %3852
    %v3854 = vrcp.pop %v3784
    %v3855 = vmul.f32 %v3735, %v3854
    %v3856 = vrcp.pop %v3787
    %v3857 = vmul.f32 %v3737, %v3856
    %v3858 = vrcp.pop %v3790
    %v3859 = vmul.f32 %v3739, %v3858
    %v3860 = vrcp.pop %v3793
    %v3861 = vmul.f32 %v3741, %v3860
    %v3862 = vrcp.pop %v3796
    %v3863 = vmul.f32 %v3743, %v3862
    %v3864 = vrcp.pop %v3799
    %v3865 = vmul.f32 %v3745, %v3864
    %v3866 = vrcp.pop %v3802
    %v3867 = vmul.f32 %v3747, %v3866
    %v3868 = vrcp.pop %v3805
    %v3869 = vmul.f32 %v3749, %v3868
    %v3870 = vrcp.pop %v3808
    %v3871 = vmul.f32 %v3751, %v3870
    %v3872 = vrcp.pop %v3811
    %v3873 = vmul.f32 %v3753, %v3872
    %v3874 = vrcp.pop %v3814
    %v3875 = vmul.f32 %v3755, %v3874
    %v3876 = vrcp.pop %v3817
    %v3877 = vmul.f32 %v3757, %v3876
    %v3878 = vrcp.pop %v3820
    %v3879 = vmul.f32 %v3759, %v3878
    %v3880 = vrcp.pop %v3823
    %v3881 = vmul.f32 %v3761, %v3880
    %v3882 = vrcp.pop %v3826
    %v3883 = vmul.f32 %v3763, %v3882
    %v3884 = vrcp.pop %v3829
    %v3885 = vmul.f32 %v3765, %v3884
    %v3886 = vrcp.pop %v3832
    %v3887 = vmul.f32 %v3767, %v3886
    %v3888 = vrcp.pop %v3835
    %v3889 = vmul.f32 %v3769, %v3888
    %v3890 = vrcp.pop %v3838
    %v3891 = vmul.f32 %v3771, %v3890
    %v3892 = vrcp.pop %v3841
    %v3893 = vmul.f32 %v3773, %v3892
    %v3894 = vrcp.pop %v3844
    %v3895 = vmul.f32 %v3775, %v3894
    %v3896 = vrcp.pop %v3847
    %v3897 = vmul.f32 %v3777, %v3896
    %v3898 = vrcp.pop %v3850
    %v3899 = vmul.f32 %v3779, %v3898
    %v3900 = vrcp.pop %v3853
    %v3901 = vmul.f32 %v3781, %v3900
    %3902 = vrot.lane.b32.xlu0 %v2796, 64
    %v3903 = vpop.permute.xlu0 %3902
    %3904 = vrot.lane.b32.xlu0 %v2801, 64
    %v3905 = vpop.permute.xlu0 %3904
    %3906 = vrot.lane.b32.xlu0 %v2806, 64
    %v3907 = vpop.permute.xlu0 %3906
    %v3911 = vsel %vm1089, %v3855, 0
    %v3914 = vsel %vm1089, %v3857, 0
    %v3917 = vsel %vm1089, %v3859, 0
    %v3919 = vsel %vm73, %v3907, 0
    %3921 = vmatprep.subr.mxu0 0.0
    %3922 = vmatpush1.msra.mxu0 %v3903
    %3923 = vmatprep.subr.mxu0 0.0
    %3924 = vmatpush1.msra.mxu0 %v3905
    %3925 = vmatprep.subr.mxu0 0.0
    %3926 = vmatpush1.msra.mxu0 %v3919
    %3927 = vmatprep.subr.mxu0 0.0
    %3928 = vmatpush1.msra.mxu0 0.0
    %3929 = vmatprep.subr.mxu0 0.0
    %3930 = vmatpush1.msra.mxu0 0.0
    %3931 = vmatprep.subr.mxu0 0.0
    %3932 = vmatpush1.msra.mxu0 0.0
    %3933 = vmatprep.subr.mxu0 0.0
    %3934 = vmatpush1.msra.mxu0 0.0
    %3935 = vmatprep.subr.mxu0 0.0
    %3936 = vmatpush1.msra.mxu0 0.0
    %3937 = vmatprep.subr.mxu0 0.0
    %3938 = vmatpush1.msra.mxu0 0.0
    %3939 = vmatprep.subr.mxu0 0.0
    %3940 = vmatpush1.msra.mxu0 0.0
    %3941 = vmatprep.subr.mxu0 0.0
    %3942 = vmatpush1.msra.mxu0 0.0
    %3943 = vmatprep.subr.mxu0 0.0
    %3944 = vmatpush1.msra.mxu0 0.0
    %3945 = vmatprep.subr.mxu0 0.0
    %3946 = vmatpush1.msra.mxu0 0.0
    %3947 = vmatprep.subr.mxu0 0.0
    %3948 = vmatpush1.msra.mxu0 0.0
    %3949 = vmatprep.subr.mxu0 0.0
    %3950 = vmatpush1.msra.mxu0 0.0
    %3951 = vmatprep.subr.mxu0 0.0
    %3952 = vmatpush1.msra.mxu0 0.0
    %3953 = vmatprep.subr.mxu0 0.0
    %3954 = vmatpush1.msra.mxu0 0.0
    %3955 = vmatprep.subr.mxu0 0.0
    %3956 = vmatpush1.msra.mxu0 0.0
    %3957 = vmatprep.subr.mxu0 0.0
    %3958 = vmatpush1.msra.mxu0 0.0
    %3959 = vmatprep.subr.mxu0 0.0
    %3960 = vmatpush1.msra.mxu0 0.0
    %3961 = vmatprep.subr.mxu0 0.0
    %3962 = vmatpush1.msra.mxu0 0.0
    %3963 = vmatprep.subr.mxu0 0.0
    %3964 = vmatpush1.msra.mxu0 0.0
    %3965 = vmatprep.subr.mxu0 0.0
    %3966 = vmatpush1.msra.mxu0 0.0
    %3967 = vmatprep.subr.mxu0 0.0
    %3968 = vmatpush1.msra.mxu0 0.0
    %3969 = vmatprep.subr.mxu0 0.0
    %3970 = vmatpush1.msra.mxu0 0.0
    %3971 = vmatprep.subr.mxu0 0.0
    %3972 = vmatpush1.msra.mxu0 0.0
    %3973 = vmatprep.subr.mxu0 0.0
    %3974 = vmatpush1.msra.mxu0 0.0
    %3975 = vmatprep.subr.mxu0 0.0
    %3976 = vmatpush1.msra.mxu0 0.0
    %3977 = vmatprep.subr.mxu0 0.0
    %3978 = vmatpush1.msra.mxu0 0.0
    %3979 = vmatprep.subr.mxu0 0.0
    %3980 = vmatpush1.msra.mxu0 0.0
    %3981 = vmatprep.subr.mxu0 0.0
    %3982 = vmatpush1.msra.mxu0 0.0
    %3983 = vmatprep.subr.mxu0 0.0
    %3984 = vmatpush1.msra.mxu0 0.0
    %3985 = vmatprep.mubr.f32.mxu0 0.0
    %3986 = vmatmul.mubr.f32.gmra.mrb[0].mxu0 %v3911
    %v3987 = vpop.f32.mrb[0].mxu0
    %v3988 = vadd.f32 0.0, %v3987
    %v3989 = vpop.f32.mrb[0].mxu0
    %3990 = vmatprep.mubr.f32.mxu0 0.0
    %3991 = vmatmul.mubr.f32.gmra.mrb[0].mxu0 %v3914
    %v3992 = vpop.f32.mrb[0].mxu0
    %v3993 = vadd.f32 0.0, %v3992
    %v3994 = vpop.f32.mrb[0].mxu0
    %3995 = vmatprep.mubr.f32.mxu0 0.0
    %3996 = vmatmul.mubr.f32.gmra.mrb[0].mxu0 %v3917
    %v3997 = vpop.f32.mrb[0].mxu0
    %v3998 = vadd.f32 0.0, %v3997
    %v3999 = vpop.f32.mrb[0].mxu0
    %4000 = vdwg.mxu0
    %4001 = vrot.lane.b32.xlu0 %v2813, 64
    %v4002 = vpop.permute.xlu0 %4001
    %4003 = vrot.lane.b32.xlu0 %v2815, 64
    %v4004 = vpop.permute.xlu0 %4003
    %4005 = vrot.lane.b32.xlu0 %v2817, 64
    %v4006 = vpop.permute.xlu0 %4005
    %v4010 = vsel %vm1089, %v3861, 0
    %v4013 = vsel %vm1089, %v3863, 0
    %v4016 = vsel %vm1089, %v3865, 0
    %v4018 = vsel %vm73, %v4006, 0
    %4020 = vmatprep.subr.mxu0 0.0
    %4021 = vmatpush1.msra.mxu0 %v4002
    %4022 = vmatprep.subr.mxu0 0.0
    %4023 = vmatpush1.msra.mxu0 %v4004
    %4024 = vmatprep.subr.mxu0 0.0
    %4025 = vmatpush1.msra.mxu0 %v4018
    %4026 = vmatprep.subr.mxu0 0.0
    %4027 = vmatpush1.msra.mxu0 0.0
    %4028 = vmatprep.subr.mxu0 0.0
    %4029 = vmatpush1.msra.mxu0 0.0
    %4030 = vmatprep.subr.mxu0 0.0
    %4031 = vmatpush1.msra.mxu0 0.0
    %4032 = vmatprep.subr.mxu0 0.0
    %4033 = vmatpush1.msra.mxu0 0.0
    %4034 = vmatprep.subr.mxu0 0.0
    %4035 = vmatpush1.msra.mxu0 0.0
    %4036 = vmatprep.subr.mxu0 0.0
    %4037 = vmatpush1.msra.mxu0 0.0
    %4038 = vmatprep.subr.mxu0 0.0
    %4039 = vmatpush1.msra.mxu0 0.0
    %4040 = vmatprep.subr.mxu0 0.0
    %4041 = vmatpush1.msra.mxu0 0.0
    %4042 = vmatprep.subr.mxu0 0.0
    %4043 = vmatpush1.msra.mxu0 0.0
    %4044 = vmatprep.subr.mxu0 0.0
    %4045 = vmatpush1.msra.mxu0 0.0
    %4046 = vmatprep.subr.mxu0 0.0
    %4047 = vmatpush1.msra.mxu0 0.0
    %4048 = vmatprep.subr.mxu0 0.0
    %4049 = vmatpush1.msra.mxu0 0.0
    %4050 = vmatprep.subr.mxu0 0.0
    %4051 = vmatpush1.msra.mxu0 0.0
    %4052 = vmatprep.subr.mxu0 0.0
    %4053 = vmatpush1.msra.mxu0 0.0
    %4054 = vmatprep.subr.mxu0 0.0
    %4055 = vmatpush1.msra.mxu0 0.0
    %4056 = vmatprep.subr.mxu0 0.0
    %4057 = vmatpush1.msra.mxu0 0.0
    %4058 = vmatprep.subr.mxu0 0.0
    %4059 = vmatpush1.msra.mxu0 0.0
    %4060 = vmatprep.subr.mxu0 0.0
    %4061 = vmatpush1.msra.mxu0 0.0
    %4062 = vmatprep.subr.mxu0 0.0
    %4063 = vmatpush1.msra.mxu0 0.0
    %4064 = vmatprep.subr.mxu0 0.0
    %4065 = vmatpush1.msra.mxu0 0.0
    %4066 = vmatprep.subr.mxu0 0.0
    %4067 = vmatpush1.msra.mxu0 0.0
    %4068 = vmatprep.subr.mxu0 0.0
    %4069 = vmatpush1.msra.mxu0 0.0
    %4070 = vmatprep.subr.mxu0 0.0
    %4071 = vmatpush1.msra.mxu0 0.0
    %4072 = vmatprep.subr.mxu0 0.0
    %4073 = vmatpush1.msra.mxu0 0.0
    %4074 = vmatprep.subr.mxu0 0.0
    %4075 = vmatpush1.msra.mxu0 0.0
    %4076 = vmatprep.subr.mxu0 0.0
    %4077 = vmatpush1.msra.mxu0 0.0
    %4078 = vmatprep.subr.mxu0 0.0
    %4079 = vmatpush1.msra.mxu0 0.0
    %4080 = vmatprep.subr.mxu0 0.0
    %4081 = vmatpush1.msra.mxu0 0.0
    %4082 = vmatprep.subr.mxu0 0.0
    %4083 = vmatpush1.msra.mxu0 0.0
    %4084 = vmatprep.mubr.f32.mxu0 0.0
    %4085 = vmatmul.mubr.f32.gmra.mrb[0].mxu0 %v4010
    %v4086 = vpop.f32.mrb[0].mxu0
    %v4087 = vadd.f32 0.0, %v4086
    %v4088 = vpop.f32.mrb[0].mxu0
    %4089 = vmatprep.mubr.f32.mxu0 0.0
    %4090 = vmatmul.mubr.f32.gmra.mrb[0].mxu0 %v4013
    %v4091 = vpop.f32.mrb[0].mxu0
    %v4092 = vadd.f32 0.0, %v4091
    %v4093 = vpop.f32.mrb[0].mxu0
    %4094 = vmatprep.mubr.f32.mxu0 0.0
    %4095 = vmatmul.mubr.f32.gmra.mrb[0].mxu0 %v4016
    %v4096 = vpop.f32.mrb[0].mxu0
    %v4097 = vadd.f32 0.0, %v4096
    %v4098 = vpop.f32.mrb[0].mxu0
    %4099 = vdwg.mxu0
    %4100 = vrot.lane.b32.xlu0 %v2819, 64
    %v4101 = vpop.permute.xlu0 %4100
    %4102 = vrot.lane.b32.xlu0 %v2821, 64
    %v4103 = vpop.permute.xlu0 %4102
    %4104 = vrot.lane.b32.xlu0 %v2823, 64
    %v4105 = vpop.permute.xlu0 %4104
    %v4109 = vsel %vm1089, %v3867, 0
    %v4112 = vsel %vm1089, %v3869, 0
    %v4115 = vsel %vm1089, %v3871, 0
    %v4117 = vsel %vm73, %v4105, 0
    %4119 = vmatprep.subr.mxu0 0.0
    %4120 = vmatpush1.msra.mxu0 %v4101
    %4121 = vmatprep.subr.mxu0 0.0
    %4122 = vmatpush1.msra.mxu0 %v4103
    %4123 = vmatprep.subr.mxu0 0.0
    %4124 = vmatpush1.msra.mxu0 %v4117
    %4125 = vmatprep.subr.mxu0 0.0
    %4126 = vmatpush1.msra.mxu0 0.0
    %4127 = vmatprep.subr.mxu0 0.0
    %4128 = vmatpush1.msra.mxu0 0.0
    %4129 = vmatprep.subr.mxu0 0.0
    %4130 = vmatpush1.msra.mxu0 0.0
    %4131 = vmatprep.subr.mxu0 0.0
    %4132 = vmatpush1.msra.mxu0 0.0
    %4133 = vmatprep.subr.mxu0 0.0
    %4134 = vmatpush1.msra.mxu0 0.0
    %4135 = vmatprep.subr.mxu0 0.0
    %4136 = vmatpush1.msra.mxu0 0.0
    %4137 = vmatprep.subr.mxu0 0.0
    %4138 = vmatpush1.msra.mxu0 0.0
    %4139 = vmatprep.subr.mxu0 0.0
    %4140 = vmatpush1.msra.mxu0 0.0
    %4141 = vmatprep.subr.mxu0 0.0
    %4142 = vmatpush1.msra.mxu0 0.0
    %4143 = vmatprep.subr.mxu0 0.0
    %4144 = vmatpush1.msra.mxu0 0.0
    %4145 = vmatprep.subr.mxu0 0.0
    %4146 = vmatpush1.msra.mxu0 0.0
    %4147 = vmatprep.subr.mxu0 0.0
    %4148 = vmatpush1.msra.mxu0 0.0
    %4149 = vmatprep.subr.mxu0 0.0
    %4150 = vmatpush1.msra.mxu0 0.0
    %4151 = vmatprep.subr.mxu0 0.0
    %4152 = vmatpush1.msra.mxu0 0.0
    %4153 = vmatprep.subr.mxu0 0.0
    %4154 = vmatpush1.msra.mxu0 0.0
    %4155 = vmatprep.subr.mxu0 0.0
    %4156 = vmatpush1.msra.mxu0 0.0
    %4157 = vmatprep.subr.mxu0 0.0
    %4158 = vmatpush1.msra.mxu0 0.0
    %4159 = vmatprep.subr.mxu0 0.0
    %4160 = vmatpush1.msra.mxu0 0.0
    %4161 = vmatprep.subr.mxu0 0.0
    %4162 = vmatpush1.msra.mxu0 0.0
    %4163 = vmatprep.subr.mxu0 0.0
    %4164 = vmatpush1.msra.mxu0 0.0
    %4165 = vmatprep.subr.mxu0 0.0
    %4166 = vmatpush1.msra.mxu0 0.0
    %4167 = vmatprep.subr.mxu0 0.0
    %4168 = vmatpush1.msra.mxu0 0.0
    %4169 = vmatprep.subr.mxu0 0.0
    %4170 = vmatpush1.msra.mxu0 0.0
    %4171 = vmatprep.subr.mxu0 0.0
    %4172 = vmatpush1.msra.mxu0 0.0
    %4173 = vmatprep.subr.mxu0 0.0
    %4174 = vmatpush1.msra.mxu0 0.0
    %4175 = vmatprep.subr.mxu0 0.0
    %4176 = vmatpush1.msra.mxu0 0.0
    %4177 = vmatprep.subr.mxu0 0.0
    %4178 = vmatpush1.msra.mxu0 0.0
    %4179 = vmatprep.subr.mxu0 0.0
    %4180 = vmatpush1.msra.mxu0 0.0
    %4181 = vmatprep.subr.mxu0 0.0
    %4182 = vmatpush1.msra.mxu0 0.0
    %4183 = vmatprep.mubr.f32.mxu0 0.0
    %4184 = vmatmul.mubr.f32.gmra.mrb[0].mxu0 %v4109
    %v4185 = vpop.f32.mrb[0].mxu0
    %v4186 = vadd.f32 0.0, %v4185
    %v4187 = vpop.f32.mrb[0].mxu0
    %4188 = vmatprep.mubr.f32.mxu0 0.0
    %4189 = vmatmul.mubr.f32.gmra.mrb[0].mxu0 %v4112
    %v4190 = vpop.f32.mrb[0].mxu0
    %v4191 = vadd.f32 0.0, %v4190
    %v4192 = vpop.f32.mrb[0].mxu0
    %4193 = vmatprep.mubr.f32.mxu0 0.0
    %4194 = vmatmul.mubr.f32.gmra.mrb[0].mxu0 %v4115
    %v4195 = vpop.f32.mrb[0].mxu0
    %v4196 = vadd.f32 0.0, %v4195
    %v4197 = vpop.f32.mrb[0].mxu0
    %4198 = vdwg.mxu0
    %4199 = vrot.lane.b32.xlu0 %v2825, 64
    %v4200 = vpop.permute.xlu0 %4199
    %4201 = vrot.lane.b32.xlu0 %v2827, 64
    %v4202 = vpop.permute.xlu0 %4201
    %4203 = vrot.lane.b32.xlu0 %v2829, 64
    %v4204 = vpop.permute.xlu0 %4203
    %v4208 = vsel %vm1089, %v3873, 0
    %v4211 = vsel %vm1089, %v3875, 0
    %v4214 = vsel %vm1089, %v3877, 0
    %v4216 = vsel %vm73, %v4204, 0
    %4218 = vmatprep.subr.mxu0 0.0
    %4219 = vmatpush1.msra.mxu0 %v4200
    %4220 = vmatprep.subr.mxu0 0.0
    %4221 = vmatpush1.msra.mxu0 %v4202
    %4222 = vmatprep.subr.mxu0 0.0
    %4223 = vmatpush1.msra.mxu0 %v4216
    %4224 = vmatprep.subr.mxu0 0.0
    %4225 = vmatpush1.msra.mxu0 0.0
    %4226 = vmatprep.subr.mxu0 0.0
    %4227 = vmatpush1.msra.mxu0 0.0
    %4228 = vmatprep.subr.mxu0 0.0
    %4229 = vmatpush1.msra.mxu0 0.0
    %4230 = vmatprep.subr.mxu0 0.0
    %4231 = vmatpush1.msra.mxu0 0.0
    %4232 = vmatprep.subr.mxu0 0.0
    %4233 = vmatpush1.msra.mxu0 0.0
    %4234 = vmatprep.subr.mxu0 0.0
    %4235 = vmatpush1.msra.mxu0 0.0
    %4236 = vmatprep.subr.mxu0 0.0
    %4237 = vmatpush1.msra.mxu0 0.0
    %4238 = vmatprep.subr.mxu0 0.0
    %4239 = vmatpush1.msra.mxu0 0.0
    %4240 = vmatprep.subr.mxu0 0.0
    %4241 = vmatpush1.msra.mxu0 0.0
    %4242 = vmatprep.subr.mxu0 0.0
    %4243 = vmatpush1.msra.mxu0 0.0
    %4244 = vmatprep.subr.mxu0 0.0
    %4245 = vmatpush1.msra.mxu0 0.0
    %4246 = vmatprep.subr.mxu0 0.0
    %4247 = vmatpush1.msra.mxu0 0.0
    %4248 = vmatprep.subr.mxu0 0.0
    %4249 = vmatpush1.msra.mxu0 0.0
    %4250 = vmatprep.subr.mxu0 0.0
    %4251 = vmatpush1.msra.mxu0 0.0
    %4252 = vmatprep.subr.mxu0 0.0
    %4253 = vmatpush1.msra.mxu0 0.0
    %4254 = vmatprep.subr.mxu0 0.0
    %4255 = vmatpush1.msra.mxu0 0.0
    %4256 = vmatprep.subr.mxu0 0.0
    %4257 = vmatpush1.msra.mxu0 0.0
    %4258 = vmatprep.subr.mxu0 0.0
    %4259 = vmatpush1.msra.mxu0 0.0
    %4260 = vmatprep.subr.mxu0 0.0
    %4261 = vmatpush1.msra.mxu0 0.0
    %4262 = vmatprep.subr.mxu0 0.0
    %4263 = vmatpush1.msra.mxu0 0.0
    %4264 = vmatprep.subr.mxu0 0.0
    %4265 = vmatpush1.msra.mxu0 0.0
    %4266 = vmatprep.subr.mxu0 0.0
    %4267 = vmatpush1.msra.mxu0 0.0
    %4268 = vmatprep.subr.mxu0 0.0
    %4269 = vmatpush1.msra.mxu0 0.0
    %4270 = vmatprep.subr.mxu0 0.0
    %4271 = vmatpush1.msra.mxu0 0.0
    %4272 = vmatprep.subr.mxu0 0.0
    %4273 = vmatpush1.msra.mxu0 0.0
    %4274 = vmatprep.subr.mxu0 0.0
    %4275 = vmatpush1.msra.mxu0 0.0
    %4276 = vmatprep.subr.mxu0 0.0
    %4277 = vmatpush1.msra.mxu0 0.0
    %4278 = vmatprep.subr.mxu0 0.0
    %4279 = vmatpush1.msra.mxu0 0.0
    %4280 = vmatprep.subr.mxu0 0.0
    %4281 = vmatpush1.msra.mxu0 0.0
    %4282 = vmatprep.mubr.f32.mxu0 0.0
    %4283 = vmatmul.mubr.f32.gmra.mrb[0].mxu0 %v4208
    %v4284 = vpop.f32.mrb[0].mxu0
    %v4285 = vadd.f32 0.0, %v4284
    %v4286 = vpop.f32.mrb[0].mxu0
    %4287 = vmatprep.mubr.f32.mxu0 0.0
    %4288 = vmatmul.mubr.f32.gmra.mrb[0].mxu0 %v4211
    %v4289 = vpop.f32.mrb[0].mxu0
    %v4290 = vadd.f32 0.0, %v4289
    %v4291 = vpop.f32.mrb[0].mxu0
    %4292 = vmatprep.mubr.f32.mxu0 0.0
    %4293 = vmatmul.mubr.f32.gmra.mrb[0].mxu0 %v4214
    %v4294 = vpop.f32.mrb[0].mxu0
    %v4295 = vadd.f32 0.0, %v4294
    %v4296 = vpop.f32.mrb[0].mxu0
    %4297 = vdwg.mxu0
    %4298 = vrot.lane.b32.xlu0 %v2831, 64
    %v4299 = vpop.permute.xlu0 %4298
    %4300 = vrot.lane.b32.xlu0 %v2833, 64
    %v4301 = vpop.permute.xlu0 %4300
    %4302 = vrot.lane.b32.xlu0 %v2835, 64
    %v4303 = vpop.permute.xlu0 %4302
    %v4307 = vsel %vm1089, %v3879, 0
    %v4310 = vsel %vm1089, %v3881, 0
    %v4313 = vsel %vm1089, %v3883, 0
    %v4315 = vsel %vm73, %v4303, 0
    %4317 = vmatprep.subr.mxu0 0.0
    %4318 = vmatpush1.msra.mxu0 %v4299
    %4319 = vmatprep.subr.mxu0 0.0
    %4320 = vmatpush1.msra.mxu0 %v4301
    %4321 = vmatprep.subr.mxu0 0.0
    %4322 = vmatpush1.msra.mxu0 %v4315
    %4323 = vmatprep.subr.mxu0 0.0
    %4324 = vmatpush1.msra.mxu0 0.0
    %4325 = vmatprep.subr.mxu0 0.0
    %4326 = vmatpush1.msra.mxu0 0.0
    %4327 = vmatprep.subr.mxu0 0.0
    %4328 = vmatpush1.msra.mxu0 0.0
    %4329 = vmatprep.subr.mxu0 0.0
    %4330 = vmatpush1.msra.mxu0 0.0
    %4331 = vmatprep.subr.mxu0 0.0
    %4332 = vmatpush1.msra.mxu0 0.0
    %4333 = vmatprep.subr.mxu0 0.0
    %4334 = vmatpush1.msra.mxu0 0.0
    %4335 = vmatprep.subr.mxu0 0.0
    %4336 = vmatpush1.msra.mxu0 0.0
    %4337 = vmatprep.subr.mxu0 0.0
    %4338 = vmatpush1.msra.mxu0 0.0
    %4339 = vmatprep.subr.mxu0 0.0
    %4340 = vmatpush1.msra.mxu0 0.0
    %4341 = vmatprep.subr.mxu0 0.0
    %4342 = vmatpush1.msra.mxu0 0.0
    %4343 = vmatprep.subr.mxu0 0.0
    %4344 = vmatpush1.msra.mxu0 0.0
    %4345 = vmatprep.subr.mxu0 0.0
    %4346 = vmatpush1.msra.mxu0 0.0
    %4347 = vmatprep.subr.mxu0 0.0
    %4348 = vmatpush1.msra.mxu0 0.0
    %4349 = vmatprep.subr.mxu0 0.0
    %4350 = vmatpush1.msra.mxu0 0.0
    %4351 = vmatprep.subr.mxu0 0.0
    %4352 = vmatpush1.msra.mxu0 0.0
    %4353 = vmatprep.subr.mxu0 0.0
    %4354 = vmatpush1.msra.mxu0 0.0
    %4355 = vmatprep.subr.mxu0 0.0
    %4356 = vmatpush1.msra.mxu0 0.0
    %4357 = vmatprep.subr.mxu0 0.0
    %4358 = vmatpush1.msra.mxu0 0.0
    %4359 = vmatprep.subr.mxu0 0.0
    %4360 = vmatpush1.msra.mxu0 0.0
    %4361 = vmatprep.subr.mxu0 0.0
    %4362 = vmatpush1.msra.mxu0 0.0
    %4363 = vmatprep.subr.mxu0 0.0
    %4364 = vmatpush1.msra.mxu0 0.0
    %4365 = vmatprep.subr.mxu0 0.0
    %4366 = vmatpush1.msra.mxu0 0.0
    %4367 = vmatprep.subr.mxu0 0.0
    %4368 = vmatpush1.msra.mxu0 0.0
    %4369 = vmatprep.subr.mxu0 0.0
    %4370 = vmatpush1.msra.mxu0 0.0
    %4371 = vmatprep.subr.mxu0 0.0
    %4372 = vmatpush1.msra.mxu0 0.0
    %4373 = vmatprep.subr.mxu0 0.0
    %4374 = vmatpush1.msra.mxu0 0.0
    %4375 = vmatprep.subr.mxu0 0.0
    %4376 = vmatpush1.msra.mxu0 0.0
    %4377 = vmatprep.subr.mxu0 0.0
    %4378 = vmatpush1.msra.mxu0 0.0
    %4379 = vmatprep.subr.mxu0 0.0
    %4380 = vmatpush1.msra.mxu0 0.0
    %4381 = vmatprep.mubr.f32.mxu0 0.0
    %4382 = vmatmul.mubr.f32.gmra.mrb[0].mxu0 %v4307
    %v4383 = vpop.f32.mrb[0].mxu0
    %v4384 = vadd.f32 0.0, %v4383
    %v4385 = vpop.f32.mrb[0].mxu0
    %4386 = vmatprep.mubr.f32.mxu0 0.0
    %4387 = vmatmul.mubr.f32.gmra.mrb[0].mxu0 %v4310
    %v4388 = vpop.f32.mrb[0].mxu0
    %v4389 = vadd.f32 0.0, %v4388
    %v4390 = vpop.f32.mrb[0].mxu0
    %4391 = vmatprep.mubr.f32.mxu0 0.0
    %4392 = vmatmul.mubr.f32.gmra.mrb[0].mxu0 %v4313
    %v4393 = vpop.f32.mrb[0].mxu0
    %v4394 = vadd.f32 0.0, %v4393
    %v4395 = vpop.f32.mrb[0].mxu0
    %4396 = vdwg.mxu0
    %4397 = vrot.lane.b32.xlu0 %v2837, 64
    %v4398 = vpop.permute.xlu0 %4397
    %4399 = vrot.lane.b32.xlu0 %v2839, 64
    %v4400 = vpop.permute.xlu0 %4399
    %4401 = vrot.lane.b32.xlu0 %v2841, 64
    %v4402 = vpop.permute.xlu0 %4401
    %v4406 = vsel %vm1089, %v3885, 0
    %v4409 = vsel %vm1089, %v3887, 0
    %v4412 = vsel %vm1089, %v3889, 0
    %v4414 = vsel %vm73, %v4402, 0
    %4416 = vmatprep.subr.mxu0 0.0
    %4417 = vmatpush1.msra.mxu0 %v4398
    %4418 = vmatprep.subr.mxu0 0.0
    %4419 = vmatpush1.msra.mxu0 %v4400
    %4420 = vmatprep.subr.mxu0 0.0
    %4421 = vmatpush1.msra.mxu0 %v4414
    %4422 = vmatprep.subr.mxu0 0.0
    %4423 = vmatpush1.msra.mxu0 0.0
    %4424 = vmatprep.subr.mxu0 0.0
    %4425 = vmatpush1.msra.mxu0 0.0
    %4426 = vmatprep.subr.mxu0 0.0
    %4427 = vmatpush1.msra.mxu0 0.0
    %4428 = vmatprep.subr.mxu0 0.0
    %4429 = vmatpush1.msra.mxu0 0.0
    %4430 = vmatprep.subr.mxu0 0.0
    %4431 = vmatpush1.msra.mxu0 0.0
    %4432 = vmatprep.subr.mxu0 0.0
    %4433 = vmatpush1.msra.mxu0 0.0
    %4434 = vmatprep.subr.mxu0 0.0
    %4435 = vmatpush1.msra.mxu0 0.0
    %4436 = vmatprep.subr.mxu0 0.0
    %4437 = vmatpush1.msra.mxu0 0.0
    %4438 = vmatprep.subr.mxu0 0.0
    %4439 = vmatpush1.msra.mxu0 0.0
    %4440 = vmatprep.subr.mxu0 0.0
    %4441 = vmatpush1.msra.mxu0 0.0
    %4442 = vmatprep.subr.mxu0 0.0
    %4443 = vmatpush1.msra.mxu0 0.0
    %4444 = vmatprep.subr.mxu0 0.0
    %4445 = vmatpush1.msra.mxu0 0.0
    %4446 = vmatprep.subr.mxu0 0.0
    %4447 = vmatpush1.msra.mxu0 0.0
    %4448 = vmatprep.subr.mxu0 0.0
    %4449 = vmatpush1.msra.mxu0 0.0
    %4450 = vmatprep.subr.mxu0 0.0
    %4451 = vmatpush1.msra.mxu0 0.0
    %4452 = vmatprep.subr.mxu0 0.0
    %4453 = vmatpush1.msra.mxu0 0.0
    %4454 = vmatprep.subr.mxu0 0.0
    %4455 = vmatpush1.msra.mxu0 0.0
    %4456 = vmatprep.subr.mxu0 0.0
    %4457 = vmatpush1.msra.mxu0 0.0
    %4458 = vmatprep.subr.mxu0 0.0
    %4459 = vmatpush1.msra.mxu0 0.0
    %4460 = vmatprep.subr.mxu0 0.0
    %4461 = vmatpush1.msra.mxu0 0.0
    %4462 = vmatprep.subr.mxu0 0.0
    %4463 = vmatpush1.msra.mxu0 0.0
    %4464 = vmatprep.subr.mxu0 0.0
    %4465 = vmatpush1.msra.mxu0 0.0
    %4466 = vmatprep.subr.mxu0 0.0
    %4467 = vmatpush1.msra.mxu0 0.0
    %4468 = vmatprep.subr.mxu0 0.0
    %4469 = vmatpush1.msra.mxu0 0.0
    %4470 = vmatprep.subr.mxu0 0.0
    %4471 = vmatpush1.msra.mxu0 0.0
    %4472 = vmatprep.subr.mxu0 0.0
    %4473 = vmatpush1.msra.mxu0 0.0
    %4474 = vmatprep.subr.mxu0 0.0
    %4475 = vmatpush1.msra.mxu0 0.0
    %4476 = vmatprep.subr.mxu0 0.0
    %4477 = vmatpush1.msra.mxu0 0.0
    %4478 = vmatprep.subr.mxu0 0.0
    %4479 = vmatpush1.msra.mxu0 0.0
    %4480 = vmatprep.mubr.f32.mxu0 0.0
    %4481 = vmatmul.mubr.f32.gmra.mrb[0].mxu0 %v4406
    %v4482 = vpop.f32.mrb[0].mxu0
    %v4483 = vadd.f32 0.0, %v4482
    %v4484 = vpop.f32.mrb[0].mxu0
    %4485 = vmatprep.mubr.f32.mxu0 0.0
    %4486 = vmatmul.mubr.f32.gmra.mrb[0].mxu0 %v4409
    %v4487 = vpop.f32.mrb[0].mxu0
    %v4488 = vadd.f32 0.0, %v4487
    %v4489 = vpop.f32.mrb[0].mxu0
    %4490 = vmatprep.mubr.f32.mxu0 0.0
    %4491 = vmatmul.mubr.f32.gmra.mrb[0].mxu0 %v4412
    %v4492 = vpop.f32.mrb[0].mxu0
    %v4493 = vadd.f32 0.0, %v4492
    %v4494 = vpop.f32.mrb[0].mxu0
    %4495 = vdwg.mxu0
    %4496 = vrot.lane.b32.xlu0 %v2843, 64
    %v4497 = vpop.permute.xlu0 %4496
    %4498 = vrot.lane.b32.xlu0 %v2845, 64
    %v4499 = vpop.permute.xlu0 %4498
    %4500 = vrot.lane.b32.xlu0 %v2847, 64
    %v4501 = vpop.permute.xlu0 %4500
    %v4505 = vsel %vm1089, %v3891, 0
    %v4508 = vsel %vm1089, %v3893, 0
    %v4511 = vsel %vm1089, %v3895, 0
    %v4513 = vsel %vm73, %v4501, 0
    %4515 = vmatprep.subr.mxu0 0.0
    %4516 = vmatpush1.msra.mxu0 %v4497
    %4517 = vmatprep.subr.mxu0 0.0
    %4518 = vmatpush1.msra.mxu0 %v4499
    %4519 = vmatprep.subr.mxu0 0.0
    %4520 = vmatpush1.msra.mxu0 %v4513
    %4521 = vmatprep.subr.mxu0 0.0
    %4522 = vmatpush1.msra.mxu0 0.0
    %4523 = vmatprep.subr.mxu0 0.0
    %4524 = vmatpush1.msra.mxu0 0.0
    %4525 = vmatprep.subr.mxu0 0.0
    %4526 = vmatpush1.msra.mxu0 0.0
    %4527 = vmatprep.subr.mxu0 0.0
    %4528 = vmatpush1.msra.mxu0 0.0
    %4529 = vmatprep.subr.mxu0 0.0
    %4530 = vmatpush1.msra.mxu0 0.0
    %4531 = vmatprep.subr.mxu0 0.0
    %4532 = vmatpush1.msra.mxu0 0.0
    %4533 = vmatprep.subr.mxu0 0.0
    %4534 = vmatpush1.msra.mxu0 0.0
    %4535 = vmatprep.subr.mxu0 0.0
    %4536 = vmatpush1.msra.mxu0 0.0
    %4537 = vmatprep.subr.mxu0 0.0
    %4538 = vmatpush1.msra.mxu0 0.0
    %4539 = vmatprep.subr.mxu0 0.0
    %4540 = vmatpush1.msra.mxu0 0.0
    %4541 = vmatprep.subr.mxu0 0.0
    %4542 = vmatpush1.msra.mxu0 0.0
    %4543 = vmatprep.subr.mxu0 0.0
    %4544 = vmatpush1.msra.mxu0 0.0
    %4545 = vmatprep.subr.mxu0 0.0
    %4546 = vmatpush1.msra.mxu0 0.0
    %4547 = vmatprep.subr.mxu0 0.0
    %4548 = vmatpush1.msra.mxu0 0.0
    %4549 = vmatprep.subr.mxu0 0.0
    %4550 = vmatpush1.msra.mxu0 0.0
    %4551 = vmatprep.subr.mxu0 0.0
    %4552 = vmatpush1.msra.mxu0 0.0
    %4553 = vmatprep.subr.mxu0 0.0
    %4554 = vmatpush1.msra.mxu0 0.0
    %4555 = vmatprep.subr.mxu0 0.0
    %4556 = vmatpush1.msra.mxu0 0.0
    %4557 = vmatprep.subr.mxu0 0.0
    %4558 = vmatpush1.msra.mxu0 0.0
    %4559 = vmatprep.subr.mxu0 0.0
    %4560 = vmatpush1.msra.mxu0 0.0
    %4561 = vmatprep.subr.mxu0 0.0
    %4562 = vmatpush1.msra.mxu0 0.0
    %4563 = vmatprep.subr.mxu0 0.0
    %4564 = vmatpush1.msra.mxu0 0.0
    %4565 = vmatprep.subr.mxu0 0.0
    %4566 = vmatpush1.msra.mxu0 0.0
    %4567 = vmatprep.subr.mxu0 0.0
    %4568 = vmatpush1.msra.mxu0 0.0
    %4569 = vmatprep.subr.mxu0 0.0
    %4570 = vmatpush1.msra.mxu0 0.0
    %4571 = vmatprep.subr.mxu0 0.0
    %4572 = vmatpush1.msra.mxu0 0.0
    %4573 = vmatprep.subr.mxu0 0.0
    %4574 = vmatpush1.msra.mxu0 0.0
    %4575 = vmatprep.subr.mxu0 0.0
    %4576 = vmatpush1.msra.mxu0 0.0
    %4577 = vmatprep.subr.mxu0 0.0
    %4578 = vmatpush1.msra.mxu0 0.0
    %4579 = vmatprep.mubr.f32.mxu0 0.0
    %4580 = vmatmul.mubr.f32.gmra.mrb[0].mxu0 %v4505
    %v4581 = vpop.f32.mrb[0].mxu0
    %v4582 = vadd.f32 0.0, %v4581
    %v4583 = vpop.f32.mrb[0].mxu0
    %4584 = vmatprep.mubr.f32.mxu0 0.0
    %4585 = vmatmul.mubr.f32.gmra.mrb[0].mxu0 %v4508
    %v4586 = vpop.f32.mrb[0].mxu0
    %v4587 = vadd.f32 0.0, %v4586
    %v4588 = vpop.f32.mrb[0].mxu0
    %4589 = vmatprep.mubr.f32.mxu0 0.0
    %4590 = vmatmul.mubr.f32.gmra.mrb[0].mxu0 %v4511
    %v4591 = vpop.f32.mrb[0].mxu0
    %v4592 = vadd.f32 0.0, %v4591
    %v4593 = vpop.f32.mrb[0].mxu0
    %4594 = vdwg.mxu0
    %4595 = vrot.lane.b32.xlu0 %v2849, 64
    %v4596 = vpop.permute.xlu0 %4595
    %4597 = vrot.lane.b32.xlu0 %v2851, 64
    %v4598 = vpop.permute.xlu0 %4597
    %4599 = vrot.lane.b32.xlu0 %v2853, 64
    %v4600 = vpop.permute.xlu0 %4599
    %v4604 = vsel %vm1089, %v3897, 0
    %v4607 = vsel %vm1089, %v3899, 0
    %v4610 = vsel %vm1089, %v3901, 0
    %v4612 = vsel %vm73, %v4600, 0
    %4614 = vmatprep.subr.mxu0 0.0
    %4615 = vmatpush1.msra.mxu0 %v4596
    %4616 = vmatprep.subr.mxu0 0.0
    %4617 = vmatpush1.msra.mxu0 %v4598
    %4618 = vmatprep.subr.mxu0 0.0
    %4619 = vmatpush1.msra.mxu0 %v4612
    %4620 = vmatprep.subr.mxu0 0.0
    %4621 = vmatpush1.msra.mxu0 0.0
    %4622 = vmatprep.subr.mxu0 0.0
    %4623 = vmatpush1.msra.mxu0 0.0
    %4624 = vmatprep.subr.mxu0 0.0
    %4625 = vmatpush1.msra.mxu0 0.0
    %4626 = vmatprep.subr.mxu0 0.0
    %4627 = vmatpush1.msra.mxu0 0.0
    %4628 = vmatprep.subr.mxu0 0.0
    %4629 = vmatpush1.msra.mxu0 0.0
    %4630 = vmatprep.subr.mxu0 0.0
    %4631 = vmatpush1.msra.mxu0 0.0
    %4632 = vmatprep.subr.mxu0 0.0
    %4633 = vmatpush1.msra.mxu0 0.0
    %4634 = vmatprep.subr.mxu0 0.0
    %4635 = vmatpush1.msra.mxu0 0.0
    %4636 = vmatprep.subr.mxu0 0.0
    %4637 = vmatpush1.msra.mxu0 0.0
    %4638 = vmatprep.subr.mxu0 0.0
    %4639 = vmatpush1.msra.mxu0 0.0
    %4640 = vmatprep.subr.mxu0 0.0
    %4641 = vmatpush1.msra.mxu0 0.0
    %4642 = vmatprep.subr.mxu0 0.0
    %4643 = vmatpush1.msra.mxu0 0.0
    %4644 = vmatprep.subr.mxu0 0.0
    %4645 = vmatpush1.msra.mxu0 0.0
    %4646 = vmatprep.subr.mxu0 0.0
    %4647 = vmatpush1.msra.mxu0 0.0
    %4648 = vmatprep.subr.mxu0 0.0
    %4649 = vmatpush1.msra.mxu0 0.0
    %4650 = vmatprep.subr.mxu0 0.0
    %4651 = vmatpush1.msra.mxu0 0.0
    %4652 = vmatprep.subr.mxu0 0.0
    %4653 = vmatpush1.msra.mxu0 0.0
    %4654 = vmatprep.subr.mxu0 0.0
    %4655 = vmatpush1.msra.mxu0 0.0
    %4656 = vmatprep.subr.mxu0 0.0
    %4657 = vmatpush1.msra.mxu0 0.0
    %4658 = vmatprep.subr.mxu0 0.0
    %4659 = vmatpush1.msra.mxu0 0.0
    %4660 = vmatprep.subr.mxu0 0.0
    %4661 = vmatpush1.msra.mxu0 0.0
    %4662 = vmatprep.subr.mxu0 0.0
    %4663 = vmatpush1.msra.mxu0 0.0
    %4664 = vmatprep.subr.mxu0 0.0
    %4665 = vmatpush1.msra.mxu0 0.0
    %4666 = vmatprep.subr.mxu0 0.0
    %4667 = vmatpush1.msra.mxu0 0.0
    %4668 = vmatprep.subr.mxu0 0.0
    %4669 = vmatpush1.msra.mxu0 0.0
    %4670 = vmatprep.subr.mxu0 0.0
    %4671 = vmatpush1.msra.mxu0 0.0
    %4672 = vmatprep.subr.mxu0 0.0
    %4673 = vmatpush1.msra.mxu0 0.0
    %4674 = vmatprep.subr.mxu0 0.0
    %4675 = vmatpush1.msra.mxu0 0.0
    %4676 = vmatprep.subr.mxu0 0.0
    %4677 = vmatpush1.msra.mxu0 0.0
    %4678 = vmatprep.mubr.f32.mxu0 0.0
    %4679 = vmatmul.mubr.f32.gmra.mrb[0].mxu0 %v4604
    %v4680 = vpop.f32.mrb[0].mxu0
    %v4681 = vadd.f32 0.0, %v4680
    %v4682 = vpop.f32.mrb[0].mxu0
    %4683 = vmatprep.mubr.f32.mxu0 0.0
    %4684 = vmatmul.mubr.f32.gmra.mrb[0].mxu0 %v4607
    %v4685 = vpop.f32.mrb[0].mxu0
    %v4686 = vadd.f32 0.0, %v4685
    %v4687 = vpop.f32.mrb[0].mxu0
    %4688 = vmatprep.mubr.f32.mxu0 0.0
    %4689 = vmatmul.mubr.f32.gmra.mrb[0].mxu0 %v4610
    %v4690 = vpop.f32.mrb[0].mxu0
    %v4691 = vadd.f32 0.0, %v4690
    %v4692 = vpop.f32.mrb[0].mxu0
    %4693 = vdwg.mxu0
    %4697 = vrot.lane.b32.xlu0 %v4087, 4
    %v4698 = vpop.permute.xlu0 %4697
    %4699 = vrot.lane.b32.xlu0 %v4092, 4
    %v4700 = vpop.permute.xlu0 %4699
    %4701 = vrot.lane.b32.xlu0 %v4097, 4
    %v4702 = vpop.permute.xlu0 %4701
    %4709 = vrot.lane.b32.xlu0 %v4186, 8
    %v4710 = vpop.permute.xlu0 %4709
    %4711 = vrot.lane.b32.xlu0 %v4191, 8
    %v4712 = vpop.permute.xlu0 %4711
    %4713 = vrot.lane.b32.xlu0 %v4196, 8
    %v4714 = vpop.permute.xlu0 %4713
    %4721 = vrot.lane.b32.xlu0 %v4285, 12
    %v4722 = vpop.permute.xlu0 %4721
    %4723 = vrot.lane.b32.xlu0 %v4290, 12
    %v4724 = vpop.permute.xlu0 %4723
    %4725 = vrot.lane.b32.xlu0 %v4295, 12
    %v4726 = vpop.permute.xlu0 %4725
    %4733 = vrot.lane.b32.xlu0 %v4384, 16
    %v4734 = vpop.permute.xlu0 %4733
    %4735 = vrot.lane.b32.xlu0 %v4389, 16
    %v4736 = vpop.permute.xlu0 %4735
    %4737 = vrot.lane.b32.xlu0 %v4394, 16
    %v4738 = vpop.permute.xlu0 %4737
    %4745 = vrot.lane.b32.xlu0 %v4483, 20
    %v4746 = vpop.permute.xlu0 %4745
    %4747 = vrot.lane.b32.xlu0 %v4488, 20
    %v4748 = vpop.permute.xlu0 %4747
    %4749 = vrot.lane.b32.xlu0 %v4493, 20
    %v4750 = vpop.permute.xlu0 %4749
    %4757 = vrot.lane.b32.xlu0 %v4582, 24
    %v4758 = vpop.permute.xlu0 %4757
    %4759 = vrot.lane.b32.xlu0 %v4587, 24
    %v4760 = vpop.permute.xlu0 %4759
    %4761 = vrot.lane.b32.xlu0 %v4592, 24
    %v4762 = vpop.permute.xlu0 %4761
    %4769 = vrot.lane.b32.xlu0 %v4681, 28
    %v4770 = vpop.permute.xlu0 %4769
    %4771 = vrot.lane.b32.xlu0 %v4686, 28
    %v4772 = vpop.permute.xlu0 %4771
    %4773 = vrot.lane.b32.xlu0 %v4691, 28
    %v4774 = vpop.permute.xlu0 %4773
    %v4778 = vsel %vm310, %v3988, %v4698
    %v4779 = vsel %vm310, %v3993, %v4700
    %v4780 = vsel %vm310, %v3998, %v4702
    %v4781 = vsel %vm2234, %v4778, %v4710
    %v4782 = vsel %vm2234, %v4779, %v4712
    %v4783 = vsel %vm2234, %v4780, %v4714
    %v4784 = vsel %vm2238, %v4781, %v4722
    %v4785 = vsel %vm2238, %v4782, %v4724
    %v4786 = vsel %vm2238, %v4783, %v4726
    %v4787 = vsel %vm2242, %v4784, %v4734
    %v4788 = vsel %vm2242, %v4785, %v4736
    %v4789 = vsel %vm2242, %v4786, %v4738
    %v4790 = vsel %vm1089, %v4787, %v4746
    %v4791 = vsel %vm1089, %v4788, %v4748
    %v4792 = vsel %vm1089, %v4789, %v4750
    %v4793 = vsel %vm2249, %v4790, %v4758
    %v4794 = vsel %vm2249, %v4791, %v4760
    %v4795 = vsel %vm2249, %v4792, %v4762
    %v4796 = vsel %vm2253, %v4793, %v4770
    %v4797 = vsel %vm2253, %v4794, %v4772
    %v4798 = vsel %vm2253, %v4795, %v4774
    %s4799 = scalar_lea.vmem %s8, 32
    %v4800 = vld [vmem:[%s4799] sm:$0xff]
    %v4801 = vld [vmem:[%s4799 + $0x8] sm:$0xff]
    %v4802 = vld [vmem:[%s4799 + $0x10] sm:$0xff]
    %v4803 = vld [vmem:[%s4799 + $0x18] sm:$0xff]
    %v4805 = vsel %vm99, %v4796, 0
    %v4808 = vsel %vm99, %v4797, 0
    %v4811 = vsel %vm99, %v4798, 0
    %4813 = vmatprep.subr.mxu0 0.0
    %4814 = vmatpush1.msra.mxu0 %v4800
    %4815 = vmatprep.subr.mxu0 0.0
    %4816 = vmatpush1.msra.mxu0 %v4801
    %4817 = vmatprep.subr.mxu0 0.0
    %4818 = vmatpush1.msra.mxu0 %v4802
    %4819 = vmatprep.subr.mxu0 0.0
    %4820 = vmatpush1.msra.mxu0 %v4803
    %4821 = vmatprep.subr.mxu0 0.0
    %4822 = vmatpush1.msra.mxu0 0.0
    %4823 = vmatprep.subr.mxu0 0.0
    %4824 = vmatpush1.msra.mxu0 0.0
    %4825 = vmatprep.subr.mxu0 0.0
    %4826 = vmatpush1.msra.mxu0 0.0
    %4827 = vmatprep.subr.mxu0 0.0
    %4828 = vmatpush1.msra.mxu0 0.0
    %4829 = vmatprep.subr.mxu0 0.0
    %4830 = vmatpush1.msra.mxu0 0.0
    %4831 = vmatprep.subr.mxu0 0.0
    %4832 = vmatpush1.msra.mxu0 0.0
    %4833 = vmatprep.subr.mxu0 0.0
    %4834 = vmatpush1.msra.mxu0 0.0
    %4835 = vmatprep.subr.mxu0 0.0
    %4836 = vmatpush1.msra.mxu0 0.0
    %4837 = vmatprep.subr.mxu0 0.0
    %4838 = vmatpush1.msra.mxu0 0.0
    %4839 = vmatprep.subr.mxu0 0.0
    %4840 = vmatpush1.msra.mxu0 0.0
    %4841 = vmatprep.subr.mxu0 0.0
    %4842 = vmatpush1.msra.mxu0 0.0
    %4843 = vmatprep.subr.mxu0 0.0
    %4844 = vmatpush1.msra.mxu0 0.0
    %4845 = vmatprep.subr.mxu0 0.0
    %4846 = vmatpush1.msra.mxu0 0.0
    %4847 = vmatprep.subr.mxu0 0.0
    %4848 = vmatpush1.msra.mxu0 0.0
    %4849 = vmatprep.subr.mxu0 0.0
    %4850 = vmatpush1.msra.mxu0 0.0
    %4851 = vmatprep.subr.mxu0 0.0
    %4852 = vmatpush1.msra.mxu0 0.0
    %4853 = vmatprep.subr.mxu0 0.0
    %4854 = vmatpush1.msra.mxu0 0.0
    %4855 = vmatprep.subr.mxu0 0.0
    %4856 = vmatpush1.msra.mxu0 0.0
    %4857 = vmatprep.subr.mxu0 0.0
    %4858 = vmatpush1.msra.mxu0 0.0
    %4859 = vmatprep.subr.mxu0 0.0
    %4860 = vmatpush1.msra.mxu0 0.0
    %4861 = vmatprep.subr.mxu0 0.0
    %4862 = vmatpush1.msra.mxu0 0.0
    %4863 = vmatprep.subr.mxu0 0.0
    %4864 = vmatpush1.msra.mxu0 0.0
    %4865 = vmatprep.subr.mxu0 0.0
    %4866 = vmatpush1.msra.mxu0 0.0
    %4867 = vmatprep.subr.mxu0 0.0
    %4868 = vmatpush1.msra.mxu0 0.0
    %4869 = vmatprep.subr.mxu0 0.0
    %4870 = vmatpush1.msra.mxu0 0.0
    %4871 = vmatprep.subr.mxu0 0.0
    %4872 = vmatpush1.msra.mxu0 0.0
    %4873 = vmatprep.subr.mxu0 0.0
    %4874 = vmatpush1.msra.mxu0 0.0
    %4875 = vmatprep.subr.mxu0 0.0
    %4876 = vmatpush1.msra.mxu0 0.0
    %4877 = vmatprep.mubr.f32.mxu0 0.0
    %4878 = vmatmul.mubr.f32.gmra.mrb[0].mxu0 %v4805
    %v4879 = vpop.f32.mrb[0].mxu0
    %v4880 = vadd.f32 0.0, %v4879
    %v4881 = vpop.f32.mrb[0].mxu0
    %4882 = vmatprep.mubr.f32.mxu0 0.0
    %4883 = vmatmul.mubr.f32.gmra.mrb[0].mxu0 %v4808
    %v4884 = vpop.f32.mrb[0].mxu0
    %v4885 = vadd.f32 0.0, %v4884
    %v4886 = vpop.f32.mrb[0].mxu0
    %4887 = vmatprep.mubr.f32.mxu0 0.0
    %4888 = vmatmul.mubr.f32.gmra.mrb[0].mxu0 %v4811
    %v4889 = vpop.f32.mrb[0].mxu0
    %v4890 = vadd.f32 0.0, %v4889
    %v4891 = vpop.f32.mrb[0].mxu0
    %4892 = vdwg.mxu0
    %v4893 = vadd.f32 %v2643, %v4880
    %v4894 = vadd.f32 %v2644, %v4885
    %v4895 = vadd.f32 %v2645, %v4890
    %s4896 = scalar_lea.vmem %s9, 1
    %v4897 = vld [vmem:[%s4896] sm:$0x1]
    %v4899 = vlaneseq
    %v4900 = vshrl.u32 %v4899, 7
    %v4901 = vsub.s32 0, %v4900
    %v4902 = vrot.slane %v4897, %v4901
    %v4904 = vadd.f32 %v4893, %v4902
    %v4905 = vadd.f32 %v4894, %v4902
    %v4906 = vadd.f32 %v4895, %v4902
    %s4907 = scalar_lea.vmem %s10, 1
    %v4908 = vld [vmem:[%s4907] sm:$0x1]
    %s4909 = scalar_lea.vmem %s11, 1
    %v4910 = vld [vmem:[%s4909] sm:$0x1]
    %v4911 = vsel %vm99, %v4904, 0.0
    %4912 = vadd.xlane.f32.xlu0 %v4911
    %v4913 = vpop.xlane.xlu0 %4912
    %v4914 = vsel %vm99, %v4905, 0.0
    %4915 = vadd.xlane.f32.xlu0 %v4914
    %v4916 = vpop.xlane.xlu0 %4915
    %v4917 = vsel %vm106, %v4906, 0.0
    %4918 = vadd.xlane.f32.xlu0 %v4917
    %v4919 = vpop.xlane.xlu0 %4918
    %v4920 = vmul.f32 %v4913, %v110
    %v4921 = vmul.f32 %v4916, %v110
    %v4922 = vmul.f32 %v4919, %v110
    %v4923 = vsub.f32 %v4904, %v4920
    %v4924 = vsub.f32 %v4905, %v4921
    %v4925 = vsub.f32 %v4906, %v4922
    %v4926 = vmul.f32 %v4923, %v4923
    %v4927 = vmul.f32 %v4924, %v4924
    %v4928 = vmul.f32 %v4925, %v4925
    %v4929 = vsel %vm99, %v4926, 0.0
    %4930 = vadd.xlane.f32.xlu0 %v4929
    %v4931 = vpop.xlane.xlu0 %4930
    %v4932 = vsel %vm99, %v4927, 0.0
    %4933 = vadd.xlane.f32.xlu0 %v4932
    %v4934 = vpop.xlane.xlu0 %4933
    %v4935 = vsel %vm106, %v4928, 0.0
    %4936 = vadd.xlane.f32.xlu0 %v4935
    %v4937 = vpop.xlane.xlu0 %4936
    %v4938 = vmul.f32 %v4931, %v110
    %v4939 = vmul.f32 %v4934, %v110
    %v4940 = vmul.f32 %v4937, %v110
    %v4941 = vadd.f32 %v4938, 1e-06
    %v4942 = vadd.f32 %v4939, 1e-06
    %v4943 = vadd.f32 %v4940, 1e-06
    %v4944 = vrsqrt.pop %v4941
    %v4945 = vrsqrt.pop %v4942
    %v4946 = vrsqrt.pop %v4943
    %v4947 = vmul.f32 %v4923, %v4944
    %v4948 = vmul.f32 %v4924, %v4945
    %v4949 = vmul.f32 %v4925, %v4946
    %v4951 = vlaneseq
    %v4952 = vshrl.u32 %v4951, 7
    %v4953 = vsub.s32 0, %v4952
    %v4954 = vrot.slane %v4908, %v4953
    %v4956 = vmul.f32 %v4947, %v4954
    %v4957 = vmul.f32 %v4948, %v4954
    %v4958 = vmul.f32 %v4949, %v4954
    %v4960 = vlaneseq
    %v4961 = vshrl.u32 %v4960, 7
    %v4962 = vsub.s32 0, %v4961
    %v4963 = vrot.slane %v4910, %v4962
    %v4965 = vadd.f32 %v4956, %v4963
    %v4966 = vadd.f32 %v4957, %v4963
    %v4967 = vadd.f32 %v4958, %v4963
    %s4968 = scalar_lea.vmem %s12, 32
    %v4969 = vld [vmem:[%s4968] sm:$0xff]
    %v4970 = vld [vmem:[%s4968 + $0x8] sm:$0xff]
    %v4971 = vld [vmem:[%s4968 + $0x10] sm:$0xff]
    %v4972 = vld [vmem:[%s4968 + $0x18] sm:$0xff]
    %s4973 = scalar_lea.vmem %s13, 1
    %v4974 = vld [vmem:[%s4973] sm:$0x1]
    %v4976 = vlaneseq
    %v4977 = vshrl.u32 %v4976, 7
    %v4978 = vsub.s32 0, %v4977
    %v4979 = vrot.slane %v4974, %v4978
    %v4982 = vsel %vm99, %v4965, 0
    %v4985 = vsel %vm99, %v4966, 0
    %v4988 = vsel %vm99, %v4967, 0
    %4990 = vmatprep.subr.mxu0 0.0
    %4991 = vmatpush1.msra.mxu0 %v4969
    %4992 = vmatprep.subr.mxu0 0.0
    %4993 = vmatpush1.msra.mxu0 %v4970
    %4994 = vmatprep.subr.mxu0 0.0
    %4995 = vmatpush1.msra.mxu0 %v4971
    %4996 = vmatprep.subr.mxu0 0.0
    %4997 = vmatpush1.msra.mxu0 %v4972
    %4998 = vmatprep.subr.mxu0 0.0
    %4999 = vmatpush1.msra.mxu0 0.0
    %5000 = vmatprep.subr.mxu0 0.0
    %5001 = vmatpush1.msra.mxu0 0.0
    %5002 = vmatprep.subr.mxu0 0.0
    %5003 = vmatpush1.msra.mxu0 0.0
    %5004 = vmatprep.subr.mxu0 0.0
    %5005 = vmatpush1.msra.mxu0 0.0
    %5006 = vmatprep.subr.mxu0 0.0
    %5007 = vmatpush1.msra.mxu0 0.0
    %5008 = vmatprep.subr.mxu0 0.0
    %5009 = vmatpush1.msra.mxu0 0.0
    %5010 = vmatprep.subr.mxu0 0.0
    %5011 = vmatpush1.msra.mxu0 0.0
    %5012 = vmatprep.subr.mxu0 0.0
    %5013 = vmatpush1.msra.mxu0 0.0
    %5014 = vmatprep.subr.mxu0 0.0
    %5015 = vmatpush1.msra.mxu0 0.0
    %5016 = vmatprep.subr.mxu0 0.0
    %5017 = vmatpush1.msra.mxu0 0.0
    %5018 = vmatprep.subr.mxu0 0.0
    %5019 = vmatpush1.msra.mxu0 0.0
    %5020 = vmatprep.subr.mxu0 0.0
    %5021 = vmatpush1.msra.mxu0 0.0
    %5022 = vmatprep.subr.mxu0 0.0
    %5023 = vmatpush1.msra.mxu0 0.0
    %5024 = vmatprep.subr.mxu0 0.0
    %5025 = vmatpush1.msra.mxu0 0.0
    %5026 = vmatprep.subr.mxu0 0.0
    %5027 = vmatpush1.msra.mxu0 0.0
    %5028 = vmatprep.subr.mxu0 0.0
    %5029 = vmatpush1.msra.mxu0 0.0
    %5030 = vmatprep.subr.mxu0 0.0
    %5031 = vmatpush1.msra.mxu0 0.0
    %5032 = vmatprep.subr.mxu0 0.0
    %5033 = vmatpush1.msra.mxu0 0.0
    %5034 = vmatprep.subr.mxu0 0.0
    %5035 = vmatpush1.msra.mxu0 0.0
    %5036 = vmatprep.subr.mxu0 0.0
    %5037 = vmatpush1.msra.mxu0 0.0
    %5038 = vmatprep.subr.mxu0 0.0
    %5039 = vmatpush1.msra.mxu0 0.0
    %5040 = vmatprep.subr.mxu0 0.0
    %5041 = vmatpush1.msra.mxu0 0.0
    %5042 = vmatprep.subr.mxu0 0.0
    %5043 = vmatpush1.msra.mxu0 0.0
    %5044 = vmatprep.subr.mxu0 0.0
    %5045 = vmatpush1.msra.mxu0 0.0
    %5046 = vmatprep.subr.mxu0 0.0
    %5047 = vmatpush1.msra.mxu0 0.0
    %5048 = vmatprep.subr.mxu0 0.0
    %5049 = vmatpush1.msra.mxu0 0.0
    %5050 = vmatprep.subr.mxu0 0.0
    %5051 = vmatpush1.msra.mxu0 0.0
    %5052 = vmatprep.subr.mxu0 0.0
    %5053 = vmatpush1.msra.mxu0 0.0
    %5054 = vmatprep.mubr.f32.mxu0 0.0
    %5055 = vmatmul.mubr.f32.gmra.mrb[0].mxu0 %v4982
    %v5056 = vpop.f32.mrb[0].mxu0
    %v5057 = vadd.f32 %v4979, %v5056
    %v5058 = vpop.f32.mrb[0].mxu0
    %5059 = vmatprep.mubr.f32.mxu0 0.0
    %5060 = vmatmul.mubr.f32.gmra.mrb[0].mxu0 %v4985
    %v5061 = vpop.f32.mrb[0].mxu0
    %v5062 = vadd.f32 %v4979, %v5061
    %v5063 = vpop.f32.mrb[0].mxu0
    %5064 = vmatprep.mubr.f32.mxu0 0.0
    %5065 = vmatmul.mubr.f32.gmra.mrb[0].mxu0 %v4988
    %v5066 = vpop.f32.mrb[0].mxu0
    %v5067 = vadd.f32 %v4979, %v5066
    %v5068 = vpop.f32.mrb[0].mxu0
    %5069 = vdwg.mxu0
    %v5070 = vmul.f32 %v5057, 0.5
    %v5071 = vmul.f32 %v5062, 0.5
    %v5072 = vmul.f32 %v5067, 0.5
    %v5073 = vmul.f32 %v5057, 0.70710677
    %v5074 = vmul.f32 %v5062, 0.70710677
    %v5075 = vmul.f32 %v5067, 0.70710677
    %v5076 = verf.f32.pop %v5073
    %v5077 = verf.f32.pop %v5074
    %v5078 = verf.f32.pop %v5075
    %v5079 = vadd.f32 %v5076, 1.0
    %v5080 = vadd.f32 %v5077, 1.0
    %v5081 = vadd.f32 %v5078, 1.0
    %v5082 = vmul.f32 %v5070, %v5079
    %v5083 = vmul.f32 %v5071, %v5080
    %v5084 = vmul.f32 %v5072, %v5081
    %s5085 = scalar_lea.vmem %s14, 128
    %v5086 = vld [vmem:[%s5085] sm:$0xff]
    %v5087 = vld [vmem:[%s5085 + $0x8] sm:$0xff]
    %v5088 = vld [vmem:[%s5085 + $0x10] sm:$0xff]
    %v5089 = vld [vmem:[%s5085 + $0x18] sm:$0xff]
    %v5090 = vld [vmem:[%s5085 + $0x20] sm:$0xff]
    %v5091 = vld [vmem:[%s5085 + $0x28] sm:$0xff]
    %v5092 = vld [vmem:[%s5085 + $0x30] sm:$0xff]
    %v5093 = vld [vmem:[%s5085 + $0x38] sm:$0xff]
    %v5094 = vld [vmem:[%s5085 + $0x40] sm:$0xff]
    %v5095 = vld [vmem:[%s5085 + $0x48] sm:$0xff]
    %v5096 = vld [vmem:[%s5085 + $0x50] sm:$0xff]
    %v5097 = vld [vmem:[%s5085 + $0x58] sm:$0xff]
    %v5098 = vld [vmem:[%s5085 + $0x60] sm:$0xff]
    %v5099 = vld [vmem:[%s5085 + $0x68] sm:$0xff]
    %v5100 = vld [vmem:[%s5085 + $0x70] sm:$0xff]
    %v5101 = vld [vmem:[%s5085 + $0x78] sm:$0xff]
    %5102 = vmatprep.subr.mxu0 0.0
    %5103 = vmatpush1.msra.mxu0 %v5086
    %5104 = vmatprep.subr.mxu0 0.0
    %5105 = vmatpush1.msra.mxu0 %v5087
    %5106 = vmatprep.subr.mxu0 0.0
    %5107 = vmatpush1.msra.mxu0 %v5088
    %5108 = vmatprep.subr.mxu0 0.0
    %5109 = vmatpush1.msra.mxu0 %v5089
    %5110 = vmatprep.subr.mxu0 0.0
    %5111 = vmatpush1.msra.mxu0 %v5090
    %5112 = vmatprep.subr.mxu0 0.0
    %5113 = vmatpush1.msra.mxu0 %v5091
    %5114 = vmatprep.subr.mxu0 0.0
    %5115 = vmatpush1.msra.mxu0 %v5092
    %5116 = vmatprep.subr.mxu0 0.0
    %5117 = vmatpush1.msra.mxu0 %v5093
    %5118 = vmatprep.subr.mxu0 0.0
    %5119 = vmatpush1.msra.mxu0 %v5094
    %5120 = vmatprep.subr.mxu0 0.0
    %5121 = vmatpush1.msra.mxu0 %v5095
    %5122 = vmatprep.subr.mxu0 0.0
    %5123 = vmatpush1.msra.mxu0 %v5096
    %5124 = vmatprep.subr.mxu0 0.0
    %5125 = vmatpush1.msra.mxu0 %v5097
    %5126 = vmatprep.subr.mxu0 0.0
    %5127 = vmatpush1.msra.mxu0 %v5098
    %5128 = vmatprep.subr.mxu0 0.0
    %5129 = vmatpush1.msra.mxu0 %v5099
    %5130 = vmatprep.subr.mxu0 0.0
    %5131 = vmatpush1.msra.mxu0 %v5100
    %5132 = vmatprep.subr.mxu0 0.0
    %5133 = vmatpush1.msra.mxu0 %v5101
    %5134 = vmatprep.subr.mxu0 0.0
    %5135 = vmatpush1.msra.mxu0 0.0
    %5136 = vmatprep.subr.mxu0 0.0
    %5137 = vmatpush1.msra.mxu0 0.0
    %5138 = vmatprep.subr.mxu0 0.0
    %5139 = vmatpush1.msra.mxu0 0.0
    %5140 = vmatprep.subr.mxu0 0.0
    %5141 = vmatpush1.msra.mxu0 0.0
    %5142 = vmatprep.subr.mxu0 0.0
    %5143 = vmatpush1.msra.mxu0 0.0
    %5144 = vmatprep.subr.mxu0 0.0
    %5145 = vmatpush1.msra.mxu0 0.0
    %5146 = vmatprep.subr.mxu0 0.0
    %5147 = vmatpush1.msra.mxu0 0.0
    %5148 = vmatprep.subr.mxu0 0.0
    %5149 = vmatpush1.msra.mxu0 0.0
    %5150 = vmatprep.subr.mxu0 0.0
    %5151 = vmatpush1.msra.mxu0 0.0
    %5152 = vmatprep.subr.mxu0 0.0
    %5153 = vmatpush1.msra.mxu0 0.0
    %5154 = vmatprep.subr.mxu0 0.0
    %5155 = vmatpush1.msra.mxu0 0.0
    %5156 = vmatprep.subr.mxu0 0.0
    %5157 = vmatpush1.msra.mxu0 0.0
    %5158 = vmatprep.subr.mxu0 0.0
    %5159 = vmatpush1.msra.mxu0 0.0
    %5160 = vmatprep.subr.mxu0 0.0
    %5161 = vmatpush1.msra.mxu0 0.0
    %5162 = vmatprep.subr.mxu0 0.0
    %5163 = vmatpush1.msra.mxu0 0.0
    %5164 = vmatprep.subr.mxu0 0.0
    %5165 = vmatpush1.msra.mxu0 0.0
    %5166 = vmatprep.mubr.f32.mxu0 0.0
    %5167 = vmatmul.mubr.f32.gmra.mrb[0].mxu0 %v5082
    %v5168 = vpop.f32.mrb[0].mxu0
    %v5169 = vadd.f32 0.0, %v5168
    %v5170 = vpop.f32.mrb[0].mxu0
    %5171 = vmatprep.mubr.f32.mxu0 0.0
    %5172 = vmatmul.mubr.f32.gmra.mrb[0].mxu0 %v5083
    %v5173 = vpop.f32.mrb[0].mxu0
    %v5174 = vadd.f32 0.0, %v5173
    %v5175 = vpop.f32.mrb[0].mxu0
    %5176 = vmatprep.mubr.f32.mxu0 0.0
    %5177 = vmatmul.mubr.f32.gmra.mrb[0].mxu0 %v5084
    %v5178 = vpop.f32.mrb[0].mxu0
    %v5179 = vadd.f32 0.0, %v5178
    %v5180 = vpop.f32.mrb[0].mxu0
    %5181 = vdwg.mxu0
    %v5182 = vadd.f32 %v4904, %v5169
    %v5183 = vadd.f32 %v4905, %v5174
    %v5184 = vadd.f32 %v4906, %v5179
    %s5185 = scalar_lea.vmem %s15, 1
    %v5186 = vld [vmem:[%s5185] sm:$0x1]
    %v5188 = vlaneseq
    %v5189 = vshrl.u32 %v5188, 7
    %v5190 = vsub.s32 0, %v5189
    %v5191 = vrot.slane %v5186, %v5190
    %v5193 = vadd.f32 %v5182, %v5191
    %v5194 = vadd.f32 %v5183, %v5191
    %v5195 = vadd.f32 %v5184, %v5191
    %v5196 = vld [vmem:[%s16] sm:$0x1]
    %v5197 = vld [vmem:[#allocation2] sm:$0x1]
    %5199 = vset.pattern.permute.xlu0 0
    %5200 = vperm.xlu0 %5199, %v5197
    %v5201 = vpop.permute.xlu0 %5200
    %v5203 = vlaneseq
    %v5204 = vshrl.u32 %v5203, 7
    %v5205 = vsub.s32 0, %v5204
    %v5206 = vrot.slane %v5201, %v5205
    %v5210 = vrot.slane %v5193, 4
    %v5211 = vrot.slane %v5194, 4
    %v5212 = vsel %vm73, %v5210, %v5211
    %v5213 = vrot.slane %v5195, 4
    %v5214 = vsel %vm73, %v5211, %v5213
    %v5216 = vsel %vm99, %v5196, 0
    %v5218 = vsel %vm99, %v5212, 0
    %v5220 = vsel %vm99, %v5214, 0
    %5222 = vmatprep.subr.mxu0 0.0
    %5223 = vmatpush1.xpose.msra.mxu0 %v5218
    %5224 = vmatprep.subr.mxu0 0.0
    %5225 = vmatpush1.xpose.msra.mxu0 %v5220
    %5226 = vmatprep.subr.mxu0 0.0
    %5227 = vmatpush1.xpose.msra.mxu0 0.0
    %5228 = vmatprep.subr.mxu0 0.0
    %5229 = vmatpush1.xpose.msra.mxu0 0.0
    %5230 = vmatprep.subr.mxu0 0.0
    %5231 = vmatpush1.xpose.msra.mxu0 0.0
    %5232 = vmatprep.subr.mxu0 0.0
    %5233 = vmatpush1.xpose.msra.mxu0 0.0
    %5234 = vmatprep.subr.mxu0 0.0
    %5235 = vmatpush1.xpose.msra.mxu0 0.0
    %5236 = vmatprep.subr.mxu0 0.0
    %5237 = vmatpush1.xpose.msra.mxu0 0.0
    %5238 = vmatprep.subr.mxu0 0.0
    %5239 = vmatpush1.xpose.msra.mxu0 0.0
    %5240 = vmatprep.subr.mxu0 0.0
    %5241 = vmatpush1.xpose.msra.mxu0 0.0
    %5242 = vmatprep.subr.mxu0 0.0
    %5243 = vmatpush1.xpose.msra.mxu0 0.0
    %5244 = vmatprep.subr.mxu0 0.0
    %5245 = vmatpush1.xpose.msra.mxu0 0.0
    %5246 = vmatprep.subr.mxu0 0.0
    %5247 = vmatpush1.xpose.msra.mxu0 0.0
    %5248 = vmatprep.subr.mxu0 0.0
    %5249 = vmatpush1.xpose.msra.mxu0 0.0
    %5250 = vmatprep.subr.mxu0 0.0
    %5251 = vmatpush1.xpose.msra.mxu0 0.0
    %5252 = vmatprep.subr.mxu0 0.0
    %5253 = vmatpush1.xpose.msra.mxu0 0.0
    %5254 = vmatprep.subr.mxu0 0.0
    %5255 = vmatpush1.xpose.msra.mxu0 0.0
    %5256 = vmatprep.subr.mxu0 0.0
    %5257 = vmatpush1.xpose.msra.mxu0 0.0
    %5258 = vmatprep.subr.mxu0 0.0
    %5259 = vmatpush1.xpose.msra.mxu0 0.0
    %5260 = vmatprep.subr.mxu0 0.0
    %5261 = vmatpush1.xpose.msra.mxu0 0.0
    %5262 = vmatprep.subr.mxu0 0.0
    %5263 = vmatpush1.xpose.msra.mxu0 0.0
    %5264 = vmatprep.subr.mxu0 0.0
    %5265 = vmatpush1.xpose.msra.mxu0 0.0
    %5266 = vmatprep.subr.mxu0 0.0
    %5267 = vmatpush1.xpose.msra.mxu0 0.0
    %5268 = vmatprep.subr.mxu0 0.0
    %5269 = vmatpush1.xpose.msra.mxu0 0.0
    %5270 = vmatprep.subr.mxu0 0.0
    %5271 = vmatpush1.xpose.msra.mxu0 0.0
    %5272 = vmatprep.subr.mxu0 0.0
    %5273 = vmatpush1.xpose.msra.mxu0 0.0
    %5274 = vmatprep.subr.mxu0 0.0
    %5275 = vmatpush1.xpose.msra.mxu0 0.0
    %5276 = vmatprep.subr.mxu0 0.0
    %5277 = vmatpush1.xpose.msra.mxu0 0.0
    %5278 = vmatprep.subr.mxu0 0.0
    %5279 = vmatpush1.xpose.msra.mxu0 0.0
    %5280 = vmatprep.subr.mxu0 0.0
    %5281 = vmatpush1.xpose.msra.mxu0 0.0
    %5282 = vmatprep.subr.mxu0 0.0
    %5283 = vmatpush1.xpose.msra.mxu0 0.0
    %5284 = vmatprep.subr.mxu0 0.0
    %5285 = vmatpush1.xpose.msra.mxu0 0.0
    %5286 = vmatprep.mubr.f32.mxu0 0.0
    %5287 = vmatmul.mubr.f32.gmra.mrb[0].mxu0 %v5216
    %v5288 = vpop.f32.mrb[0].mxu0
    %v5289 = vadd.f32 %v5206, %v5288
    %v5290 = vpop.f32.mrb[0].mxu0
    %5291 = vdwg.mxu0
    %vm5292 = vcmask 122880
    %5293 = vst.msk [vmem:[#allocation3] sm:$0x1] %vm5292, %v5289
    // Predicated region
    $region74: #{tpu_custom_call.1} parent=1 // pred_check
      _
    $region75: #{tpu_custom_call.1} parent=1 // pred_check_branch
      %5295 = sbr.rel (0) target = $region77
    $region76: #{tpu_custom_call.1} parent=1 // pred_region
      %s5297 = ssub.s32 16, 16
      %5298 = vsyncadd [#allocation4], %s5297
      %s5300 = sshll.u32 [#allocation3], 4
      %s5301 = int_to_ptr.vmem [resolvable:$true] %s5300
      %5303 = dma.vmem_to_hbm [thread:$0]  %s5301, 16, %s18, [#allocation4]
    $region77: #{tpu_custom_call.1} parent=1 // pred_fallthru
      _
    // Predicated region
    $region78: #{tpu_custom_call.1} parent=1 // pred_check
      _
    $region79: #{tpu_custom_call.1} parent=1 // pred_check_branch
      %5305 = sbr.rel (0) target = $region81
    $region80: #{tpu_custom_call.1} parent=1 // pred_region
      %5306 = dma.done [#allocation4], 16
    $region81: #{tpu_custom_call.1} parent=1 // pred_fallthru
      _
    %5307 = vsyncpa [#allocation4], 1

</llo_original>
